<compile_context>
chip_gen: v6e
topology: v6e:2x2x1
jax: 0.10.0
libtpu: 0.0.40
codegen_flags: <defaults>
</compile_context>

<pallas_src>
import math
import jax
import jax.numpy as jnp
from jax.experimental import pallas as pl
from jax.experimental.pallas import tpu as pltpu

EMBED_DIM = 3072    # embedder_mode == 'bert'
INPUT_DIM = 1000    # self.input_dim in the module (disappears after offline fusion)
HIDDEN = 32         # hidden_dim (small, per instructions)
OUT_DIM = 4         # output_dim (e.g. 4 stance classes)
SEQ = 8             # sequence length (small)


# ---------------------------------------------------------------------------
# Single fused kernel (single grid step, everything resident in VMEM):
#   fused (reduction ∘ LSTM-input) projection for all timesteps  -> one MXU matmul
#   -> LSTM recurrence, batch=2 (headline/body), fully unrolled
#   -> feature fusion + classifier Linear + LogSoftmax
# ---------------------------------------------------------------------------
def fused_kernel(x_ref, wfused_ref, bfused_ref, whh_ref, wcls_ref, bcls_ref, o_ref):
    H = HIDDEN

    # ---- fused reduction + LSTM input projection for ALL timesteps at once ----
    # rows are interleaved: [head_t0, body_t0, head_t1, body_t1, ...]
    xg = jnp.dot(x_ref[...], wfused_ref[...],
                 preferred_element_type=jnp.float32) + bfused_ref[...]   # (2*SEQ, 4H) f32

    whh = whh_ref[...]                                                   # (H, 4H) bf16

    # ---- LSTM recurrence, batch=2 (row 0 = headline, row 1 = body) ----
    # SEQ is a compile-time constant: fully unrolled, h/c live in vregs.
    h = jnp.zeros((2, H), jnp.float32)
    c = jnp.zeros((2, H), jnp.float32)
    for t in range(SEQ):
        gates = xg[2 * t:2 * t + 2, :] + jnp.dot(
            h.astype(jnp.bfloat16), whh, preferred_element_type=jnp.float32)  # (2, 4H)
        # One full-128-lane EUP pass each for sigmoid and tanh, then cheap lane slices.
        sg = jax.nn.sigmoid(gates)
        tg = jnp.tanh(gates)
        # PyTorch gate order: i, f, g, o
        i_g = sg[:, 0:H]
        f_g = sg[:, H:2 * H]
        g_g = tg[:, 2 * H:3 * H]
        o_g = sg[:, 3 * H:4 * H]
        c = f_g * c + i_g * g_g
        h = o_g * jnp.tanh(c)

    # ---- feature fusion + classifier + LogSoftmax(dim=-1) ----
    # Avoid the (1, 5H) lane-concatenate: contract each feature block against its
    # statically-sliced (H, OUT_DIM) block of W_cls and sum.
    hh = h[0:1, :]                                           # headline final hidden (1, H)
    bb = h[1:2, :]                                           # body final hidden     (1, H)
    dot = lambda a, b: jnp.dot(a, b, preferred_element_type=jnp.float32)
    logits = (dot(hh,               wcls_ref[0 * H:1 * H, :])
              + dot(jnp.abs(hh - bb), wcls_ref[1 * H:2 * H, :])
              + dot(bb,               wcls_ref[2 * H:3 * H, :])
              + dot(hh * bb,          wcls_ref[3 * H:4 * H, :])
              + dot((hh + bb) * 0.5,  wcls_ref[4 * H:5 * H, :])
              + bcls_ref[...])                               # (1, OUT_DIM)
    m = jnp.max(logits, axis=-1, keepdims=True)
    shifted = logits - m
    lse = jnp.log(jnp.sum(jnp.exp(shifted), axis=-1, keepdims=True))
    o_ref[...] = shifted - lse


def lstm_cls_forward(h_embed, b_embed, prepared):
    """h_embed, b_embed: (1, SEQ, EMBED_DIM). Returns (1, OUT_DIM) log-probs."""
    seq = h_embed.shape[1]
    # Interleave headline/body timesteps so each timestep's batch of 2 is a
    # contiguous 2-row slice inside the kernel: row 2t = headline_t, 2t+1 = body_t.
    x = jnp.stack([h_embed.reshape(seq, EMBED_DIM),
                   b_embed.reshape(seq, EMBED_DIM)], axis=1)
    x = x.reshape(2 * seq, EMBED_DIM).astype(jnp.bfloat16)       # (16, 3072) bf16
    M = 2 * seq

    return pl.pallas_call(
        fused_kernel,
        out_shape=jax.ShapeDtypeStruct((1, OUT_DIM), jnp.float32),
        grid_spec=pltpu.PrefetchScalarGridSpec(
            num_scalar_prefetch=0,
            grid=(1,),                                                        # single step
            in_specs=[
                pl.BlockSpec((M, EMBED_DIM), lambda i: (0, 0)),               # x (bf16)
                pl.BlockSpec((EMBED_DIM, 4 * HIDDEN), lambda i: (0, 0)),      # W_fused (bf16)
                pl.BlockSpec((1, 4 * HIDDEN), lambda i: (0, 0)),              # b_fused (f32)
                pl.BlockSpec((HIDDEN, 4 * HIDDEN), lambda i: (0, 0)),         # W_hh^T (bf16)
                pl.BlockSpec((5 * HIDDEN, OUT_DIM), lambda i: (0, 0)),        # W_cls^T (f32)
                pl.BlockSpec((1, OUT_DIM), lambda i: (0, 0)),                 # b_cls
            ],
            out_specs=pl.BlockSpec((1, OUT_DIM), lambda i: (0, 0)),
        ),
        compiler_params=pltpu.CompilerParams(
            dimension_semantics=("arbitrary",)),
    )(x, prepared['w_fused'], prepared['b_fused'], prepared['w_hh_t'],
      prepared['w_cls_t'], prepared['b_cls'])


# ---------------------------------------------------------------------------
# One-time weight preprocessing: exact offline fusion of the reduction Linear
# into the LSTM input projection (no nonlinearity between them in the module):
#     x @ W_ih^T  with  x = e @ W_red^T + b_red
#   = e @ (W_red^T @ W_ih^T) + (b_red @ W_ih^T)
# Products are computed in f32; the streamed weight is cast to bf16 ONCE.
# ---------------------------------------------------------------------------
def prepare_params(params):
    w_fused = params['w_red_t'] @ params['w_ih_t']                     # (3072, 4H) f32
    b_fused = params['b_red'] @ params['w_ih_t'] + params['b_lstm']    # (1, 4H) f32
    return {
        'w_fused': w_fused.astype(jnp.bfloat16),   # dominant HBM stream, ~0.77 MB
        'b_fused': b_fused,
        'w_hh_t': params['w_hh_t'].astype(jnp.bfloat16),
        'w_cls_t': params['w_cls_t'],
        'b_cls': params['b_cls'],
    }


# ---------------------------------------------------------------------------
# Pure-JAX f32 reference (unfused, mirrors the PyTorch module) for correctness
# ---------------------------------------------------------------------------
def reference_forward(h_embed, b_embed, params):
    seq = h_embed.shape[1]
    lin = lambda x, w_t, b: x @ w_t + b
    hr = lin(h_embed.reshape(seq, EMBED_DIM), params['w_red_t'], params['b_red'])
    br = lin(b_embed.reshape(seq, EMBED_DIM), params['w_red_t'], params['b_red'])

    def lstm(xs):
        H = HIDDEN
        def step(carry, x_t):
            h, c = carry
            g = x_t @ params['w_ih_t'] + h @ params['w_hh_t'] + params['b_lstm'][0]
            i = jax.nn.sigmoid(g[0:H]); f = jax.nn.sigmoid(g[H:2 * H])
            gg = jnp.tanh(g[2 * H:3 * H]); o = jax.nn.sigmoid(g[3 * H:4 * H])
            c = f * c + i * gg
            h = o * jnp.tanh(c)
            return (h, c), h
        (h, _), _ = jax.lax.scan(step, (jnp.zeros(H), jnp.zeros(H)), xs)
        return h

    hh, bh = lstm(hr), lstm(br)
    feats = jnp.concatenate([hh, jnp.abs(hh - bh), bh, hh * bh, (hh + bh) / 2])[None, :]
    logits = feats @ params['w_cls_t'] + params['b_cls']
    return jax.nn.log_softmax(logits, axis=-1)


if __name__ == "__main__":
    key = jax.random.PRNGKey(0)
    ks = jax.random.split(key, 9)

    def u(k, shape, fan):
        s = 1.0 / math.sqrt(fan)
        return jax.random.uniform(k, shape, jnp.float32, -s, s)

    params = {
        # nn.Linear(3072, 1000): stored pre-transposed as (in, out)
        'w_red_t': u(ks[0], (EMBED_DIM, INPUT_DIM), EMBED_DIM),
        'b_red':   u(ks[1], (1, INPUT_DIM), EMBED_DIM),
        # nn.LSTM(1000, H): W_ih (4H,1000), W_hh (4H,H) stored transposed; biases combined
        'w_ih_t':  u(ks[2], (INPUT_DIM, 4 * HIDDEN), HIDDEN),
        'w_hh_t':  u(ks[3], (HIDDEN, 4 * HIDDEN), HIDDEN),
        'b_lstm':  u(ks[4], (1, 4 * HIDDEN), HIDDEN),
        # classifier nn.Linear(5*H, OUT_DIM)
        'w_cls_t': u(ks[5], (5 * HIDDEN, OUT_DIM), 5 * HIDDEN),
        'b_cls':   u(ks[6], (1, OUT_DIM), 5 * HIDDEN),
    }

    h_embed = jax.random.normal(ks[7], (1, SEQ, EMBED_DIM), jnp.float32)
    b_embed = jax.random.normal(ks[8], (1, SEQ, EMBED_DIM), jnp.float32)

    prepared = prepare_params(params)
    out = lstm_cls_forward(h_embed, b_embed, prepared)
    out = jax.block_until_ready(out)

    ref = reference_forward(h_embed, b_embed, params)
    assert out.shape == (1, OUT_DIM)
    assert bool(jnp.all(jnp.isfinite(out)))
    # Kernel uses bf16 fused/recurrent weights (f32 accumulation) vs. the f32 reference.
    assert bool(jnp.allclose(out, ref, rtol=2.5e-2, atol=2.5e-2)), (out, ref)

    print("KERNEL_OK")
</pallas_src>

<mosaic_0001>
module attributes {stable_mosaic.version = 11 : i64} {
  func.func @fused_kernel(%arg0: i32, %arg1: memref<16x3072xbf16, #tpu.memory_space<vmem>>, %arg2: memref<3072x128xbf16, #tpu.memory_space<vmem>>, %arg3: memref<1x128xf32, #tpu.memory_space<vmem>>, %arg4: memref<32x128xbf16, #tpu.memory_space<vmem>>, %arg5: memref<160x4xf32, #tpu.memory_space<vmem>>, %arg6: memref<1x4xf32, #tpu.memory_space<vmem>>, %arg7: memref<1x4xf32, #tpu.memory_space<vmem>>) attributes {dimension_semantics = [#tpu.dimension_semantics<arbitrary>], iteration_bounds = array<i64: 1>, scalar_prefetch = 0 : i64, scratch_operands = 0 : i64, tpu.core_type = #tpu.core_type<tc>, window_params = [{pipeline_mode = #tpu.pipeline_mode<synchronous>, transform_indices = @transform_0, window_bounds = array<i64: 16, 3072>}, {pipeline_mode = #tpu.pipeline_mode<synchronous>, transform_indices = @transform_1, window_bounds = array<i64: 3072, 128>}, {pipeline_mode = #tpu.pipeline_mode<synchronous>, transform_indices = @transform_2, window_bounds = array<i64: 1, 128>}, {pipeline_mode = #tpu.pipeline_mode<synchronous>, transform_indices = @transform_3, window_bounds = array<i64: 32, 128>}, {pipeline_mode = #tpu.pipeline_mode<synchronous>, transform_indices = @transform_4, window_bounds = array<i64: 160, 4>}, {pipeline_mode = #tpu.pipeline_mode<synchronous>, transform_indices = @transform_5, window_bounds = array<i64: 1, 4>}, {pipeline_mode = #tpu.pipeline_mode<synchronous>, transform_indices = @transform_6, window_bounds = array<i64: 1, 4>}]} {
    %c0 = arith.constant 0 : index
    %c0_0 = arith.constant 0 : index
    %0 = vector.load %arg1[%c0, %c0_0] : memref<16x3072xbf16, #tpu.memory_space<vmem>>, vector<16x3072xbf16>
    %c0_1 = arith.constant 0 : index
    %c0_2 = arith.constant 0 : index
    %1 = vector.load %arg2[%c0_1, %c0_2] : memref<3072x128xbf16, #tpu.memory_space<vmem>>, vector<3072x128xbf16>
    %cst = arith.constant dense<0.000000e+00> : vector<16x128xf32>
    %2 = tpu.matmul %0, %1, %cst {dimension_numbers = #tpu.dot_dimension_numbers<[1], [0], [0], [1], [0, 0, 1, 1], [], []>} : vector<16x3072xbf16>, vector<3072x128xbf16>, vector<16x128xf32> -> vector<16x128xf32>
    %c0_3 = arith.constant 0 : index
    %c0_4 = arith.constant 0 : index
    %3 = vector.load %arg3[%c0_3, %c0_4] : memref<1x128xf32, #tpu.memory_space<vmem>>, vector<1x128xf32>
    %4 = vector.broadcast %3 : vector<1x128xf32> to vector<16x128xf32>
    %5 = arith.addf %2, %4 : vector<16x128xf32>
    %c0_5 = arith.constant 0 : index
    %c0_6 = arith.constant 0 : index
    %6 = vector.load %arg4[%c0_5, %c0_6] : memref<32x128xbf16, #tpu.memory_space<vmem>>, vector<32x128xbf16>
    %cst_7 = arith.constant 0.000000e+00 : f32
    %7 = vector.broadcast %cst_7 : f32 to vector<2x32xf32>
    %cst_8 = arith.constant 0.000000e+00 : f32
    %8 = vector.broadcast %cst_8 : f32 to vector<2x32xf32>
    %9 = vector.extract_strided_slice %5 {offsets = [0, 0], sizes = [2, 128], strides = [1, 1]} : vector<16x128xf32> to vector<2x128xf32>
    %10 = arith.truncf %7 : vector<2x32xf32> to vector<2x32xbf16>
    %cst_9 = arith.constant dense<0.000000e+00> : vector<2x128xf32>
    %11 = tpu.matmul %10, %6, %cst_9 {dimension_numbers = #tpu.dot_dimension_numbers<[1], [0], [0], [1], [0, 0, 1, 1], [], []>} : vector<2x32xbf16>, vector<32x128xbf16>, vector<2x128xf32> -> vector<2x128xf32>
    %12 = arith.addf %9, %11 : vector<2x128xf32>
    %13 = arith.negf %12 : vector<2x128xf32>
    %14 = math.exp %13 : vector<2x128xf32>
    %cst_10 = arith.constant 1.000000e+00 : f32
    %15 = vector.broadcast %cst_10 : f32 to vector<2x128xf32>
    %16 = arith.addf %15, %14 : vector<2x128xf32>
    %17 = arith.divf %15, %16 : vector<2x128xf32>
    %18 = math.tanh %12 : vector<2x128xf32>
    %19 = vector.extract_strided_slice %17 {offsets = [0, 0], sizes = [2, 32], strides = [1, 1]} : vector<2x128xf32> to vector<2x32xf32>
    %20 = vector.extract_strided_slice %17 {offsets = [0, 32], sizes = [2, 32], strides = [1, 1]} : vector<2x128xf32> to vector<2x32xf32>
    %21 = vector.extract_strided_slice %18 {offsets = [0, 64], sizes = [2, 32], strides = [1, 1]} : vector<2x128xf32> to vector<2x32xf32>
    %22 = vector.extract_strided_slice %17 {offsets = [0, 96], sizes = [2, 32], strides = [1, 1]} : vector<2x128xf32> to vector<2x32xf32>
    %23 = arith.mulf %20, %8 : vector<2x32xf32>
    %24 = arith.mulf %19, %21 : vector<2x32xf32>
    %25 = arith.addf %23, %24 : vector<2x32xf32>
    %26 = math.tanh %25 : vector<2x32xf32>
    %27 = arith.mulf %22, %26 : vector<2x32xf32>
    %28 = vector.extract_strided_slice %5 {offsets = [2, 0], sizes = [2, 128], strides = [1, 1]} : vector<16x128xf32> to vector<2x128xf32>
    %29 = arith.truncf %27 : vector<2x32xf32> to vector<2x32xbf16>
    %cst_11 = arith.constant dense<0.000000e+00> : vector<2x128xf32>
    %30 = tpu.matmul %29, %6, %cst_11 {dimension_numbers = #tpu.dot_dimension_numbers<[1], [0], [0], [1], [0, 0, 1, 1], [], []>} : vector<2x32xbf16>, vector<32x128xbf16>, vector<2x128xf32> -> vector<2x128xf32>
    %31 = arith.addf %28, %30 : vector<2x128xf32>
    %32 = arith.negf %31 : vector<2x128xf32>
    %33 = math.exp %32 : vector<2x128xf32>
    %cst_12 = arith.constant 1.000000e+00 : f32
    %34 = vector.broadcast %cst_12 : f32 to vector<2x128xf32>
    %35 = arith.addf %34, %33 : vector<2x128xf32>
    %36 = arith.divf %34, %35 : vector<2x128xf32>
    %37 = math.tanh %31 : vector<2x128xf32>
    %38 = vector.extract_strided_slice %36 {offsets = [0, 0], sizes = [2, 32], strides = [1, 1]} : vector<2x128xf32> to vector<2x32xf32>
    %39 = vector.extract_strided_slice %36 {offsets = [0, 32], sizes = [2, 32], strides = [1, 1]} : vector<2x128xf32> to vector<2x32xf32>
    %40 = vector.extract_strided_slice %37 {offsets = [0, 64], sizes = [2, 32], strides = [1, 1]} : vector<2x128xf32> to vector<2x32xf32>
    %41 = vector.extract_strided_slice %36 {offsets = [0, 96], sizes = [2, 32], strides = [1, 1]} : vector<2x128xf32> to vector<2x32xf32>
    %42 = arith.mulf %39, %25 : vector<2x32xf32>
    %43 = arith.mulf %38, %40 : vector<2x32xf32>
    %44 = arith.addf %42, %43 : vector<2x32xf32>
    %45 = math.tanh %44 : vector<2x32xf32>
    %46 = arith.mulf %41, %45 : vector<2x32xf32>
    %47 = vector.extract_strided_slice %5 {offsets = [4, 0], sizes = [2, 128], strides = [1, 1]} : vector<16x128xf32> to vector<2x128xf32>
    %48 = arith.truncf %46 : vector<2x32xf32> to vector<2x32xbf16>
    %cst_13 = arith.constant dense<0.000000e+00> : vector<2x128xf32>
    %49 = tpu.matmul %48, %6, %cst_13 {dimension_numbers = #tpu.dot_dimension_numbers<[1], [0], [0], [1], [0, 0, 1, 1], [], []>} : vector<2x32xbf16>, vector<32x128xbf16>, vector<2x128xf32> -> vector<2x128xf32>
    %50 = arith.addf %47, %49 : vector<2x128xf32>
    %51 = arith.negf %50 : vector<2x128xf32>
    %52 = math.exp %51 : vector<2x128xf32>
    %cst_14 = arith.constant 1.000000e+00 : f32
    %53 = vector.broadcast %cst_14 : f32 to vector<2x128xf32>
    %54 = arith.addf %53, %52 : vector<2x128xf32>
    %55 = arith.divf %53, %54 : vector<2x128xf32>
    %56 = math.tanh %50 : vector<2x128xf32>
    %57 = vector.extract_strided_slice %55 {offsets = [0, 0], sizes = [2, 32], strides = [1, 1]} : vector<2x128xf32> to vector<2x32xf32>
    %58 = vector.extract_strided_slice %55 {offsets = [0, 32], sizes = [2, 32], strides = [1, 1]} : vector<2x128xf32> to vector<2x32xf32>
    %59 = vector.extract_strided_slice %56 {offsets = [0, 64], sizes = [2, 32], strides = [1, 1]} : vector<2x128xf32> to vector<2x32xf32>
    %60 = vector.extract_strided_slice %55 {offsets = [0, 96], sizes = [2, 32], strides = [1, 1]} : vector<2x128xf32> to vector<2x32xf32>
    %61 = arith.mulf %58, %44 : vector<2x32xf32>
    %62 = arith.mulf %57, %59 : vector<2x32xf32>
    %63 = arith.addf %61, %62 : vector<2x32xf32>
    %64 = math.tanh %63 : vector<2x32xf32>
    %65 = arith.mulf %60, %64 : vector<2x32xf32>
    %66 = vector.extract_strided_slice %5 {offsets = [6, 0], sizes = [2, 128], strides = [1, 1]} : vector<16x128xf32> to vector<2x128xf32>
    %67 = arith.truncf %65 : vector<2x32xf32> to vector<2x32xbf16>
    %cst_15 = arith.constant dense<0.000000e+00> : vector<2x128xf32>
    %68 = tpu.matmul %67, %6, %cst_15 {dimension_numbers = #tpu.dot_dimension_numbers<[1], [0], [0], [1], [0, 0, 1, 1], [], []>} : vector<2x32xbf16>, vector<32x128xbf16>, vector<2x128xf32> -> vector<2x128xf32>
    %69 = arith.addf %66, %68 : vector<2x128xf32>
    %70 = arith.negf %69 : vector<2x128xf32>
    %71 = math.exp %70 : vector<2x128xf32>
    %cst_16 = arith.constant 1.000000e+00 : f32
    %72 = vector.broadcast %cst_16 : f32 to vector<2x128xf32>
    %73 = arith.addf %72, %71 : vector<2x128xf32>
    %74 = arith.divf %72, %73 : vector<2x128xf32>
    %75 = math.tanh %69 : vector<2x128xf32>
    %76 = vector.extract_strided_slice %74 {offsets = [0, 0], sizes = [2, 32], strides = [1, 1]} : vector<2x128xf32> to vector<2x32xf32>
    %77 = vector.extract_strided_slice %74 {offsets = [0, 32], sizes = [2, 32], strides = [1, 1]} : vector<2x128xf32> to vector<2x32xf32>
    %78 = vector.extract_strided_slice %75 {offsets = [0, 64], sizes = [2, 32], strides = [1, 1]} : vector<2x128xf32> to vector<2x32xf32>
    %79 = vector.extract_strided_slice %74 {offsets = [0, 96], sizes = [2, 32], strides = [1, 1]} : vector<2x128xf32> to vector<2x32xf32>
    %80 = arith.mulf %77, %63 : vector<2x32xf32>
    %81 = arith.mulf %76, %78 : vector<2x32xf32>
    %82 = arith.addf %80, %81 : vector<2x32xf32>
    %83 = math.tanh %82 : vector<2x32xf32>
    %84 = arith.mulf %79, %83 : vector<2x32xf32>
    %85 = vector.extract_strided_slice %5 {offsets = [8, 0], sizes = [2, 128], strides = [1, 1]} : vector<16x128xf32> to vector<2x128xf32>
    %86 = arith.truncf %84 : vector<2x32xf32> to vector<2x32xbf16>
    %cst_17 = arith.constant dense<0.000000e+00> : vector<2x128xf32>
    %87 = tpu.matmul %86, %6, %cst_17 {dimension_numbers = #tpu.dot_dimension_numbers<[1], [0], [0], [1], [0, 0, 1, 1], [], []>} : vector<2x32xbf16>, vector<32x128xbf16>, vector<2x128xf32> -> vector<2x128xf32>
    %88 = arith.addf %85, %87 : vector<2x128xf32>
    %89 = arith.negf %88 : vector<2x128xf32>
    %90 = math.exp %89 : vector<2x128xf32>
    %cst_18 = arith.constant 1.000000e+00 : f32
    %91 = vector.broadcast %cst_18 : f32 to vector<2x128xf32>
    %92 = arith.addf %91, %90 : vector<2x128xf32>
    %93 = arith.divf %91, %92 : vector<2x128xf32>
    %94 = math.tanh %88 : vector<2x128xf32>
    %95 = vector.extract_strided_slice %93 {offsets = [0, 0], sizes = [2, 32], strides = [1, 1]} : vector<2x128xf32> to vector<2x32xf32>
    %96 = vector.extract_strided_slice %93 {offsets = [0, 32], sizes = [2, 32], strides = [1, 1]} : vector<2x128xf32> to vector<2x32xf32>
    %97 = vector.extract_strided_slice %94 {offsets = [0, 64], sizes = [2, 32], strides = [1, 1]} : vector<2x128xf32> to vector<2x32xf32>
    %98 = vector.extract_strided_slice %93 {offsets = [0, 96], sizes = [2, 32], strides = [1, 1]} : vector<2x128xf32> to vector<2x32xf32>
    %99 = arith.mulf %96, %82 : vector<2x32xf32>
    %100 = arith.mulf %95, %97 : vector<2x32xf32>
    %101 = arith.addf %99, %100 : vector<2x32xf32>
    %102 = math.tanh %101 : vector<2x32xf32>
    %103 = arith.mulf %98, %102 : vector<2x32xf32>
    %104 = vector.extract_strided_slice %5 {offsets = [10, 0], sizes = [2, 128], strides = [1, 1]} : vector<16x128xf32> to vector<2x128xf32>
    %105 = arith.truncf %103 : vector<2x32xf32> to vector<2x32xbf16>
    %cst_19 = arith.constant dense<0.000000e+00> : vector<2x128xf32>
    %106 = tpu.matmul %105, %6, %cst_19 {dimension_numbers = #tpu.dot_dimension_numbers<[1], [0], [0], [1], [0, 0, 1, 1], [], []>} : vector<2x32xbf16>, vector<32x128xbf16>, vector<2x128xf32> -> vector<2x128xf32>
    %107 = arith.addf %104, %106 : vector<2x128xf32>
    %108 = arith.negf %107 : vector<2x128xf32>
    %109 = math.exp %108 : vector<2x128xf32>
    %cst_20 = arith.constant 1.000000e+00 : f32
    %110 = vector.broadcast %cst_20 : f32 to vector<2x128xf32>
    %111 = arith.addf %110, %109 : vector<2x128xf32>
    %112 = arith.divf %110, %111 : vector<2x128xf32>
    %113 = math.tanh %107 : vector<2x128xf32>
    %114 = vector.extract_strided_slice %112 {offsets = [0, 0], sizes = [2, 32], strides = [1, 1]} : vector<2x128xf32> to vector<2x32xf32>
    %115 = vector.extract_strided_slice %112 {offsets = [0, 32], sizes = [2, 32], strides = [1, 1]} : vector<2x128xf32> to vector<2x32xf32>
    %116 = vector.extract_strided_slice %113 {offsets = [0, 64], sizes = [2, 32], strides = [1, 1]} : vector<2x128xf32> to vector<2x32xf32>
    %117 = vector.extract_strided_slice %112 {offsets = [0, 96], sizes = [2, 32], strides = [1, 1]} : vector<2x128xf32> to vector<2x32xf32>
    %118 = arith.mulf %115, %101 : vector<2x32xf32>
    %119 = arith.mulf %114, %116 : vector<2x32xf32>
    %120 = arith.addf %118, %119 : vector<2x32xf32>
    %121 = math.tanh %120 : vector<2x32xf32>
    %122 = arith.mulf %117, %121 : vector<2x32xf32>
    %123 = vector.extract_strided_slice %5 {offsets = [12, 0], sizes = [2, 128], strides = [1, 1]} : vector<16x128xf32> to vector<2x128xf32>
    %124 = arith.truncf %122 : vector<2x32xf32> to vector<2x32xbf16>
    %cst_21 = arith.constant dense<0.000000e+00> : vector<2x128xf32>
    %125 = tpu.matmul %124, %6, %cst_21 {dimension_numbers = #tpu.dot_dimension_numbers<[1], [0], [0], [1], [0, 0, 1, 1], [], []>} : vector<2x32xbf16>, vector<32x128xbf16>, vector<2x128xf32> -> vector<2x128xf32>
    %126 = arith.addf %123, %125 : vector<2x128xf32>
    %127 = arith.negf %126 : vector<2x128xf32>
    %128 = math.exp %127 : vector<2x128xf32>
    %cst_22 = arith.constant 1.000000e+00 : f32
    %129 = vector.broadcast %cst_22 : f32 to vector<2x128xf32>
    %130 = arith.addf %129, %128 : vector<2x128xf32>
    %131 = arith.divf %129, %130 : vector<2x128xf32>
    %132 = math.tanh %126 : vector<2x128xf32>
    %133 = vector.extract_strided_slice %131 {offsets = [0, 0], sizes = [2, 32], strides = [1, 1]} : vector<2x128xf32> to vector<2x32xf32>
    %134 = vector.extract_strided_slice %131 {offsets = [0, 32], sizes = [2, 32], strides = [1, 1]} : vector<2x128xf32> to vector<2x32xf32>
    %135 = vector.extract_strided_slice %132 {offsets = [0, 64], sizes = [2, 32], strides = [1, 1]} : vector<2x128xf32> to vector<2x32xf32>
    %136 = vector.extract_strided_slice %131 {offsets = [0, 96], sizes = [2, 32], strides = [1, 1]} : vector<2x128xf32> to vector<2x32xf32>
    %137 = arith.mulf %134, %120 : vector<2x32xf32>
    %138 = arith.mulf %133, %135 : vector<2x32xf32>
    %139 = arith.addf %137, %138 : vector<2x32xf32>
    %140 = math.tanh %139 : vector<2x32xf32>
    %141 = arith.mulf %136, %140 : vector<2x32xf32>
    %142 = vector.extract_strided_slice %5 {offsets = [14, 0], sizes = [2, 128], strides = [1, 1]} : vector<16x128xf32> to vector<2x128xf32>
    %143 = arith.truncf %141 : vector<2x32xf32> to vector<2x32xbf16>
    %cst_23 = arith.constant dense<0.000000e+00> : vector<2x128xf32>
    %144 = tpu.matmul %143, %6, %cst_23 {dimension_numbers = #tpu.dot_dimension_numbers<[1], [0], [0], [1], [0, 0, 1, 1], [], []>} : vector<2x32xbf16>, vector<32x128xbf16>, vector<2x128xf32> -> vector<2x128xf32>
    %145 = arith.addf %142, %144 : vector<2x128xf32>
    %146 = arith.negf %145 : vector<2x128xf32>
    %147 = math.exp %146 : vector<2x128xf32>
    %cst_24 = arith.constant 1.000000e+00 : f32
    %148 = vector.broadcast %cst_24 : f32 to vector<2x128xf32>
    %149 = arith.addf %148, %147 : vector<2x128xf32>
    %150 = arith.divf %148, %149 : vector<2x128xf32>
    %151 = math.tanh %145 : vector<2x128xf32>
    %152 = vector.extract_strided_slice %150 {offsets = [0, 0], sizes = [2, 32], strides = [1, 1]} : vector<2x128xf32> to vector<2x32xf32>
    %153 = vector.extract_strided_slice %150 {offsets = [0, 32], sizes = [2, 32], strides = [1, 1]} : vector<2x128xf32> to vector<2x32xf32>
    %154 = vector.extract_strided_slice %151 {offsets = [0, 64], sizes = [2, 32], strides = [1, 1]} : vector<2x128xf32> to vector<2x32xf32>
    %155 = vector.extract_strided_slice %150 {offsets = [0, 96], sizes = [2, 32], strides = [1, 1]} : vector<2x128xf32> to vector<2x32xf32>
    %156 = arith.mulf %153, %139 : vector<2x32xf32>
    %157 = arith.mulf %152, %154 : vector<2x32xf32>
    %158 = arith.addf %156, %157 : vector<2x32xf32>
    %159 = math.tanh %158 : vector<2x32xf32>
    %160 = arith.mulf %155, %159 : vector<2x32xf32>
    %161 = vector.extract_strided_slice %160 {offsets = [0, 0], sizes = [1, 32], strides = [1, 1]} : vector<2x32xf32> to vector<1x32xf32>
    %162 = vector.extract_strided_slice %160 {offsets = [1, 0], sizes = [1, 32], strides = [1, 1]} : vector<2x32xf32> to vector<1x32xf32>
    %c0_25 = arith.constant 0 : index
    %c0_26 = arith.constant 0 : index
    %163 = vector.load %arg5[%c0_25, %c0_26] : memref<160x4xf32, #tpu.memory_space<vmem>>, vector<32x4xf32>
    %cst_27 = arith.constant dense<0.000000e+00> : vector<1x4xf32>
    %164 = tpu.matmul %161, %163, %cst_27 {dimension_numbers = #tpu.dot_dimension_numbers<[1], [0], [0], [1], [0, 0, 1, 1], [], []>} : vector<1x32xf32>, vector<32x4xf32>, vector<1x4xf32> -> vector<1x4xf32>
    %165 = arith.subf %161, %162 : vector<1x32xf32>
    %166 = math.absf %165 : vector<1x32xf32>
    %c32 = arith.constant 32 : index
    %c0_28 = arith.constant 0 : index
    %167 = vector.load %arg5[%c32, %c0_28] : memref<160x4xf32, #tpu.memory_space<vmem>>, vector<32x4xf32>
    %cst_29 = arith.constant dense<0.000000e+00> : vector<1x4xf32>
    %168 = tpu.matmul %166, %167, %cst_29 {dimension_numbers = #tpu.dot_dimension_numbers<[1], [0], [0], [1], [0, 0, 1, 1], [], []>} : vector<1x32xf32>, vector<32x4xf32>, vector<1x4xf32> -> vector<1x4xf32>
    %169 = arith.addf %164, %168 : vector<1x4xf32>
    %c64 = arith.constant 64 : index
    %c0_30 = arith.constant 0 : index
    %170 = vector.load %arg5[%c64, %c0_30] : memref<160x4xf32, #tpu.memory_space<vmem>>, vector<32x4xf32>
    %cst_31 = arith.constant dense<0.000000e+00> : vector<1x4xf32>
    %171 = tpu.matmul %162, %170, %cst_31 {dimension_numbers = #tpu.dot_dimension_numbers<[1], [0], [0], [1], [0, 0, 1, 1], [], []>} : vector<1x32xf32>, vector<32x4xf32>, vector<1x4xf32> -> vector<1x4xf32>
    %172 = arith.addf %169, %171 : vector<1x4xf32>
    %173 = arith.mulf %161, %162 : vector<1x32xf32>
    %c96 = arith.constant 96 : index
    %c0_32 = arith.constant 0 : index
    %174 = vector.load %arg5[%c96, %c0_32] : memref<160x4xf32, #tpu.memory_space<vmem>>, vector<32x4xf32>
    %cst_33 = arith.constant dense<0.000000e+00> : vector<1x4xf32>
    %175 = tpu.matmul %173, %174, %cst_33 {dimension_numbers = #tpu.dot_dimension_numbers<[1], [0], [0], [1], [0, 0, 1, 1], [], []>} : vector<1x32xf32>, vector<32x4xf32>, vector<1x4xf32> -> vector<1x4xf32>
    %176 = arith.addf %172, %175 : vector<1x4xf32>
    %177 = arith.addf %161, %162 : vector<1x32xf32>
    %cst_34 = arith.constant 5.000000e-01 : f32
    %178 = vector.broadcast %cst_34 : f32 to vector<1x32xf32>
    %179 = arith.mulf %177, %178 : vector<1x32xf32>
    %c128 = arith.constant 128 : index
    %c0_35 = arith.constant 0 : index
    %180 = vector.load %arg5[%c128, %c0_35] : memref<160x4xf32, #tpu.memory_space<vmem>>, vector<32x4xf32>
    %cst_36 = arith.constant dense<0.000000e+00> : vector<1x4xf32>
    %181 = tpu.matmul %179, %180, %cst_36 {dimension_numbers = #tpu.dot_dimension_numbers<[1], [0], [0], [1], [0, 0, 1, 1], [], []>} : vector<1x32xf32>, vector<32x4xf32>, vector<1x4xf32> -> vector<1x4xf32>
    %182 = arith.addf %176, %181 : vector<1x4xf32>
    %c0_37 = arith.constant 0 : index
    %c0_38 = arith.constant 0 : index
    %183 = vector.load %arg6[%c0_37, %c0_38] : memref<1x4xf32, #tpu.memory_space<vmem>>, vector<1x4xf32>
    %184 = arith.addf %182, %183 : vector<1x4xf32>
    %cst_39 = arith.constant dense<0xFF800000> : vector<1xf32>
    %185 = vector.multi_reduction <maximumf>, %184, %cst_39 [1] : vector<1x4xf32> to vector<1xf32>
    %186 = vector.shape_cast %185 : vector<1xf32> to vector<1x1xf32>
    %187 = vector.broadcast %186 : vector<1x1xf32> to vector<1x4xf32>
    %188 = arith.subf %184, %187 : vector<1x4xf32>
    %189 = math.exp %188 : vector<1x4xf32>
    %cst_40 = arith.constant dense<0.000000e+00> : vector<1xf32>
    %190 = vector.multi_reduction <add>, %189, %cst_40 [1] : vector<1x4xf32> to vector<1xf32>
    %191 = vector.shape_cast %190 : vector<1xf32> to vector<1x1xf32>
    %192 = math.log %191 : vector<1x1xf32>
    %193 = vector.broadcast %192 : vector<1x1xf32> to vector<1x4xf32>
    %194 = arith.subf %188, %193 : vector<1x4xf32>
    %c0_41 = arith.constant 0 : index
    %c0_42 = arith.constant 0 : index
    %195 = vector.load %arg7[%c0_41, %c0_42] : memref<1x4xf32, #tpu.memory_space<vmem>>, vector<1x4xf32>
    tpu.vector_store %arg7[%c0_41, %c0_42], %194 {strides = array<i32>} : memref<1x4xf32, #tpu.memory_space<vmem>>, vector<1x4xf32>,
    return
  }
  func.func @transform_0(%arg0: i32) -> (i32, i32) {
    %c0_i32 = arith.constant 0 : i32
    %c0_i32_0 = arith.constant 0 : i32
    %c0_i32_1 = arith.constant 0 : i32
    return %c0_i32, %c0_i32_0 : i32, i32
  }
  func.func @transform_1(%arg0: i32) -> (i32, i32) {
    %c0_i32 = arith.constant 0 : i32
    %c0_i32_0 = arith.constant 0 : i32
    %c0_i32_1 = arith.constant 0 : i32
    return %c0_i32, %c0_i32_0 : i32, i32
  }
  func.func @transform_2(%arg0: i32) -> (i32, i32) {
    %c0_i32 = arith.constant 0 : i32
    %c0_i32_0 = arith.constant 0 : i32
    %c0_i32_1 = arith.constant 0 : i32
    return %c0_i32, %c0_i32_0 : i32, i32
  }
  func.func @transform_3(%arg0: i32) -> (i32, i32) {
    %c0_i32 = arith.constant 0 : i32
    %c0_i32_0 = arith.constant 0 : i32
    %c0_i32_1 = arith.constant 0 : i32
    return %c0_i32, %c0_i32_0 : i32, i32
  }
  func.func @transform_4(%arg0: i32) -> (i32, i32) {
    %c0_i32 = arith.constant 0 : i32
    %c0_i32_0 = arith.constant 0 : i32
    %c0_i32_1 = arith.constant 0 : i32
    return %c0_i32, %c0_i32_0 : i32, i32
  }
  func.func @transform_5(%arg0: i32) -> (i32, i32) {
    %c0_i32 = arith.constant 0 : i32
    %c0_i32_0 = arith.constant 0 : i32
    %c0_i32_1 = arith.constant 0 : i32
    return %c0_i32, %c0_i32_0 : i32, i32
  }
  func.func @transform_6(%arg0: i32) -> (i32, i32) {
    %c0_i32 = arith.constant 0 : i32
    %c0_i32_0 = arith.constant 0 : i32
    %c0_i32_1 = arith.constant 0 : i32
    return %c0_i32, %c0_i32_0 : i32, i32
  }
}

</mosaic_0001>

<llo_original>
// kernel: tpu_custom_call.1
$region0: #{tpu_custom_call.1}
  #allocation0 [shape = 'u32[]', space=smem, size = 0x4, offset = 0x4, fixed_abs, tag = 'smem constant byte address 0x4 - core index']
  #allocation1 [shape = 'u32[144,128]{1,0:T(1,128)}', space=vmem, size = 0x12000, scoped, tag = 'internal scratch']
  %s0 = inlined_call_operand.hbm [shape: bf16[16,3072], index: 0, kind: input, shape index: {}]
  %s1 = inlined_call_operand.hbm [shape: bf16[3072,128], index: 1, kind: input, shape index: {}]
  %s2 = inlined_call_operand.vmem [shape: f32[1,128], index: 2, kind: input, shape index: {}]
  %s3 = inlined_call_operand.vmem [shape: bf16[32,128], index: 3, kind: input, shape index: {}]
  %s4 = inlined_call_operand.vmem [shape: f32[160,4], index: 4, kind: input, shape index: {}]
  %s5 = inlined_call_operand.vmem [shape: f32[1,4], index: 5, kind: input, shape index: {}]
  %s6 = inlined_call_operand.hbm [shape: f32[1,4], index: 6, kind: output, shape index: {}]
  %s7 = sld [smem:[#allocation0]]
  $region42: #{tpu_custom_call.1} parent=0
    _
  %s9 = ssub.s32 1, %s7
  %s10 = scalar_select 0, %s9, %s7
  $region1: #{tpu_custom_call.1} parent=0
    #allocation2 [shape = 'u8[98304]{0}', space=vmem, size = 0x18000, scoped, tag = 'input window, operand 0, single buffered']
    #allocation3 [shape = 's32[1]{0}', space=sflag, size = 0x4, scoped, tag = 'scoped memory for tpu_custom_call.1']
    #allocation4 [shape = 's32[1]{0}', space=sflag, size = 0x4, scoped, tag = 'scoped memory for tpu_custom_call.1']
    #allocation5 [shape = 'u8[786432]{0}', space=vmem, size = 0xc0000, scoped, tag = 'input window, operand 1, single buffered']
    #allocation6 [shape = 's32[1]{0}', space=sflag, size = 0x4, scoped, tag = 'scoped memory for tpu_custom_call.1']
    #allocation7 [shape = 'u8[512]{0}', space=vmem, size = 0x400, scoped, tag = 'output window, operand 0, single buffered']
    %11 = vsyncpa [#allocation3], 0
    %12 = vsyncpa [#allocation6], 0
    %13 = vsyncpa [#allocation4], 0
    // Predicated region
    $region2: #{tpu_custom_call.1} parent=1 // pred_check
      _
    $region3: #{tpu_custom_call.1} parent=1 // pred_check_branch
      %15 = sbr.rel (0) target = $region5
    $region4: #{tpu_custom_call.1} parent=1 // pred_region
      %s17 = ssub.s32 3072, 3072
      %18 = vsyncadd [#allocation3], %s17
      %s19 = sshll.u32 [#allocation2], 4
      %s20 = int_to_ptr.vmem [resolvable:$true] %s19
      %25 = dma.hbm_to_vmem [thread:$0]  %s0, 3072, %s20, [#allocation3], 1536, 1536, 96
    $region5: #{tpu_custom_call.1} parent=1 // pred_fallthru
      _
    // Predicated region
    $region6: #{tpu_custom_call.1} parent=1 // pred_check
      _
    $region7: #{tpu_custom_call.1} parent=1 // pred_check_branch
      %27 = sbr.rel (0) target = $region9
    $region8: #{tpu_custom_call.1} parent=1 // pred_region
      %s29 = ssub.s32 24576, 24576
      %30 = vsyncadd [#allocation6], %s29
      %s31 = sshll.u32 [#allocation5], 4
      %s32 = int_to_ptr.vmem [resolvable:$true] %s31
      %37 = dma.hbm_to_vmem [thread:$0]  %s1, 24576, %s32, [#allocation6], 64, 64, 4
    $region9: #{tpu_custom_call.1} parent=1 // pred_fallthru
      _
    // Predicated region
    $region10: #{tpu_custom_call.1} parent=1 // pred_check
      _
    $region11: #{tpu_custom_call.1} parent=1 // pred_check_branch
      %39 = sbr.rel (0) target = $region13
    $region12: #{tpu_custom_call.1} parent=1 // pred_region
      _
    $region13: #{tpu_custom_call.1} parent=1 // pred_fallthru
      _
    // Predicated region
    $region14: #{tpu_custom_call.1} parent=1 // pred_check
      _
    $region15: #{tpu_custom_call.1} parent=1 // pred_check_branch
      %41 = sbr.rel (0) target = $region17
    $region16: #{tpu_custom_call.1} parent=1 // pred_region
      _
    $region17: #{tpu_custom_call.1} parent=1 // pred_fallthru
      _
    // Predicated region
    $region18: #{tpu_custom_call.1} parent=1 // pred_check
      _
    $region19: #{tpu_custom_call.1} parent=1 // pred_check_branch
      %43 = sbr.rel (0) target = $region21
    $region20: #{tpu_custom_call.1} parent=1 // pred_region
      _
    $region21: #{tpu_custom_call.1} parent=1 // pred_fallthru
      _
    // Predicated region
    $region22: #{tpu_custom_call.1} parent=1 // pred_check
      _
    $region23: #{tpu_custom_call.1} parent=1 // pred_check_branch
      %45 = sbr.rel (0) target = $region25
    $region24: #{tpu_custom_call.1} parent=1 // pred_region
      _
    $region25: #{tpu_custom_call.1} parent=1 // pred_fallthru
      _
    // Predicated region
    $region26: #{tpu_custom_call.1} parent=1 // pred_check
      _
    $region27: #{tpu_custom_call.1} parent=1 // pred_check_branch
      %47 = sbr.rel (0) target = $region29
    $region28: #{tpu_custom_call.1} parent=1 // pred_region
      %48 = dma.done [#allocation3], 3072
    $region29: #{tpu_custom_call.1} parent=1 // pred_fallthru
      _
    // Predicated region
    $region30: #{tpu_custom_call.1} parent=1 // pred_check
      _
    $region31: #{tpu_custom_call.1} parent=1 // pred_check_branch
      %50 = sbr.rel (0) target = $region33
    $region32: #{tpu_custom_call.1} parent=1 // pred_region
      %51 = dma.done [#allocation6], 24576
    $region33: #{tpu_custom_call.1} parent=1 // pred_fallthru
      _
    %v53 = vld [vmem:[#allocation2] sm:$0xff]
    %v54 = vld [vmem:[#allocation2 + $0x8] sm:$0xff]
    %v55 = vld [vmem:[#allocation2 + $0x10] sm:$0xff]
    %v56 = vld [vmem:[#allocation2 + $0x18] sm:$0xff]
    %v57 = vld [vmem:[#allocation2 + $0x20] sm:$0xff]
    %v58 = vld [vmem:[#allocation2 + $0x28] sm:$0xff]
    %v59 = vld [vmem:[#allocation2 + $0x30] sm:$0xff]
    %v60 = vld [vmem:[#allocation2 + $0x38] sm:$0xff]
    %v61 = vld [vmem:[#allocation2 + $0x40] sm:$0xff]
    %v62 = vld [vmem:[#allocation2 + $0x48] sm:$0xff]
    %v63 = vld [vmem:[#allocation2 + $0x50] sm:$0xff]
    %v64 = vld [vmem:[#allocation2 + $0x58] sm:$0xff]
    %v65 = vld [vmem:[#allocation2 + $0x60] sm:$0xff]
    %v66 = vld [vmem:[#allocation2 + $0x68] sm:$0xff]
    %v67 = vld [vmem:[#allocation2 + $0x70] sm:$0xff]
    %v68 = vld [vmem:[#allocation2 + $0x78] sm:$0xff]
    %v69 = vld [vmem:[#allocation2 + $0x80] sm:$0xff]
    %v70 = vld [vmem:[#allocation2 + $0x88] sm:$0xff]
    %v71 = vld [vmem:[#allocation2 + $0x90] sm:$0xff]
    %v72 = vld [vmem:[#allocation2 + $0x98] sm:$0xff]
    %v73 = vld [vmem:[#allocation2 + $0xa0] sm:$0xff]
    %v74 = vld [vmem:[#allocation2 + $0xa8] sm:$0xff]
    %v75 = vld [vmem:[#allocation2 + $0xb0] sm:$0xff]
    %v76 = vld [vmem:[#allocation2 + $0xb8] sm:$0xff]
    %v77 = vld [vmem:[#allocation5] sm:$0xf]
    %v78 = vld [vmem:[#allocation5 + $0x4] sm:$0xf]
    %v79 = vld [vmem:[#allocation5 + $0x8] sm:$0xf]
    %v80 = vld [vmem:[#allocation5 + $0xc] sm:$0xf]
    %v81 = vld [vmem:[#allocation5 + $0x10] sm:$0xf]
    %v82 = vld [vmem:[#allocation5 + $0x14] sm:$0xf]
    %v83 = vld [vmem:[#allocation5 + $0x18] sm:$0xf]
    %v84 = vld [vmem:[#allocation5 + $0x1c] sm:$0xf]
    %v85 = vld [vmem:[#allocation5 + $0x20] sm:$0xf]
    %v86 = vld [vmem:[#allocation5 + $0x24] sm:$0xf]
    %v87 = vld [vmem:[#allocation5 + $0x28] sm:$0xf]
    %v88 = vld [vmem:[#allocation5 + $0x2c] sm:$0xf]
    %v89 = vld [vmem:[#allocation5 + $0x30] sm:$0xf]
    %v90 = vld [vmem:[#allocation5 + $0x34] sm:$0xf]
    %v91 = vld [vmem:[#allocation5 + $0x38] sm:$0xf]
    %v92 = vld [vmem:[#allocation5 + $0x3c] sm:$0xf]
    %v93 = vld [vmem:[#allocation5 + $0x40] sm:$0xf]
    %v94 = vld [vmem:[#allocation5 + $0x44] sm:$0xf]
    %v95 = vld [vmem:[#allocation5 + $0x48] sm:$0xf]
    %v96 = vld [vmem:[#allocation5 + $0x4c] sm:$0xf]
    %v97 = vld [vmem:[#allocation5 + $0x50] sm:$0xf]
    %v98 = vld [vmem:[#allocation5 + $0x54] sm:$0xf]
    %v99 = vld [vmem:[#allocation5 + $0x58] sm:$0xf]
    %v100 = vld [vmem:[#allocation5 + $0x5c] sm:$0xf]
    %v101 = vld [vmem:[#allocation5 + $0x60] sm:$0xf]
    %v102 = vld [vmem:[#allocation5 + $0x64] sm:$0xf]
    %v103 = vld [vmem:[#allocation5 + $0x68] sm:$0xf]
    %v104 = vld [vmem:[#allocation5 + $0x6c] sm:$0xf]
    %v105 = vld [vmem:[#allocation5 + $0x70] sm:$0xf]
    %v106 = vld [vmem:[#allocation5 + $0x74] sm:$0xf]
    %v107 = vld [vmem:[#allocation5 + $0x78] sm:$0xf]
    %v108 = vld [vmem:[#allocation5 + $0x7c] sm:$0xf]
    %v109 = vld [vmem:[#allocation5 + $0x80] sm:$0xf]
    %v110 = vld [vmem:[#allocation5 + $0x84] sm:$0xf]
    %v111 = vld [vmem:[#allocation5 + $0x88] sm:$0xf]
    %v112 = vld [vmem:[#allocation5 + $0x8c] sm:$0xf]
    %v113 = vld [vmem:[#allocation5 + $0x90] sm:$0xf]
    %v114 = vld [vmem:[#allocation5 + $0x94] sm:$0xf]
    %v115 = vld [vmem:[#allocation5 + $0x98] sm:$0xf]
    %v116 = vld [vmem:[#allocation5 + $0x9c] sm:$0xf]
    %v117 = vld [vmem:[#allocation5 + $0xa0] sm:$0xf]
    %v118 = vld [vmem:[#allocation5 + $0xa4] sm:$0xf]
    %v119 = vld [vmem:[#allocation5 + $0xa8] sm:$0xf]
    %v120 = vld [vmem:[#allocation5 + $0xac] sm:$0xf]
    %v121 = vld [vmem:[#allocation5 + $0xb0] sm:$0xf]
    %v122 = vld [vmem:[#allocation5 + $0xb4] sm:$0xf]
    %v123 = vld [vmem:[#allocation5 + $0xb8] sm:$0xf]
    %v124 = vld [vmem:[#allocation5 + $0xbc] sm:$0xf]
    %v125 = vld [vmem:[#allocation5 + $0xc0] sm:$0xf]
    %v126 = vld [vmem:[#allocation5 + $0xc4] sm:$0xf]
    %v127 = vld [vmem:[#allocation5 + $0xc8] sm:$0xf]
    %v128 = vld [vmem:[#allocation5 + $0xcc] sm:$0xf]
    %v129 = vld [vmem:[#allocation5 + $0xd0] sm:$0xf]
    %v130 = vld [vmem:[#allocation5 + $0xd4] sm:$0xf]
    %v131 = vld [vmem:[#allocation5 + $0xd8] sm:$0xf]
    %v132 = vld [vmem:[#allocation5 + $0xdc] sm:$0xf]
    %v133 = vld [vmem:[#allocation5 + $0xe0] sm:$0xf]
    %v134 = vld [vmem:[#allocation5 + $0xe4] sm:$0xf]
    %v135 = vld [vmem:[#allocation5 + $0xe8] sm:$0xf]
    %v136 = vld [vmem:[#allocation5 + $0xec] sm:$0xf]
    %v137 = vld [vmem:[#allocation5 + $0xf0] sm:$0xf]
    %v138 = vld [vmem:[#allocation5 + $0xf4] sm:$0xf]
    %v139 = vld [vmem:[#allocation5 + $0xf8] sm:$0xf]
    %v140 = vld [vmem:[#allocation5 + $0xfc] sm:$0xf]
    %v141 = vld [vmem:[#allocation5 + $0x100] sm:$0xf]
    %v142 = vld [vmem:[#allocation5 + $0x104] sm:$0xf]
    %v143 = vld [vmem:[#allocation5 + $0x108] sm:$0xf]
    %v144 = vld [vmem:[#allocation5 + $0x10c] sm:$0xf]
    %v145 = vld [vmem:[#allocation5 + $0x110] sm:$0xf]
    %v146 = vld [vmem:[#allocation5 + $0x114] sm:$0xf]
    %v147 = vld [vmem:[#allocation5 + $0x118] sm:$0xf]
    %v148 = vld [vmem:[#allocation5 + $0x11c] sm:$0xf]
    %v149 = vld [vmem:[#allocation5 + $0x120] sm:$0xf]
    %v150 = vld [vmem:[#allocation5 + $0x124] sm:$0xf]
    %v151 = vld [vmem:[#allocation5 + $0x128] sm:$0xf]
    %v152 = vld [vmem:[#allocation5 + $0x12c] sm:$0xf]
    %v153 = vld [vmem:[#allocation5 + $0x130] sm:$0xf]
    %v154 = vld [vmem:[#allocation5 + $0x134] sm:$0xf]
    %v155 = vld [vmem:[#allocation5 + $0x138] sm:$0xf]
    %v156 = vld [vmem:[#allocation5 + $0x13c] sm:$0xf]
    %v157 = vld [vmem:[#allocation5 + $0x140] sm:$0xf]
    %v158 = vld [vmem:[#allocation5 + $0x144] sm:$0xf]
    %v159 = vld [vmem:[#allocation5 + $0x148] sm:$0xf]
    %v160 = vld [vmem:[#allocation5 + $0x14c] sm:$0xf]
    %v161 = vld [vmem:[#allocation5 + $0x150] sm:$0xf]
    %v162 = vld [vmem:[#allocation5 + $0x154] sm:$0xf]
    %v163 = vld [vmem:[#allocation5 + $0x158] sm:$0xf]
    %v164 = vld [vmem:[#allocation5 + $0x15c] sm:$0xf]
    %v165 = vld [vmem:[#allocation5 + $0x160] sm:$0xf]
    %v166 = vld [vmem:[#allocation5 + $0x164] sm:$0xf]
    %v167 = vld [vmem:[#allocation5 + $0x168] sm:$0xf]
    %v168 = vld [vmem:[#allocation5 + $0x16c] sm:$0xf]
    %v169 = vld [vmem:[#allocation5 + $0x170] sm:$0xf]
    %v170 = vld [vmem:[#allocation5 + $0x174] sm:$0xf]
    %v171 = vld [vmem:[#allocation5 + $0x178] sm:$0xf]
    %v172 = vld [vmem:[#allocation5 + $0x17c] sm:$0xf]
    %v173 = vld [vmem:[#allocation5 + $0x180] sm:$0xf]
    %v174 = vld [vmem:[#allocation5 + $0x184] sm:$0xf]
    %v175 = vld [vmem:[#allocation5 + $0x188] sm:$0xf]
    %v176 = vld [vmem:[#allocation5 + $0x18c] sm:$0xf]
    %v177 = vld [vmem:[#allocation5 + $0x190] sm:$0xf]
    %v178 = vld [vmem:[#allocation5 + $0x194] sm:$0xf]
    %v179 = vld [vmem:[#allocation5 + $0x198] sm:$0xf]
    %v180 = vld [vmem:[#allocation5 + $0x19c] sm:$0xf]
    %v181 = vld [vmem:[#allocation5 + $0x1a0] sm:$0xf]
    %v182 = vld [vmem:[#allocation5 + $0x1a4] sm:$0xf]
    %v183 = vld [vmem:[#allocation5 + $0x1a8] sm:$0xf]
    %v184 = vld [vmem:[#allocation5 + $0x1ac] sm:$0xf]
    %v185 = vld [vmem:[#allocation5 + $0x1b0] sm:$0xf]
    %v186 = vld [vmem:[#allocation5 + $0x1b4] sm:$0xf]
    %v187 = vld [vmem:[#allocation5 + $0x1b8] sm:$0xf]
    %v188 = vld [vmem:[#allocation5 + $0x1bc] sm:$0xf]
    %v189 = vld [vmem:[#allocation5 + $0x1c0] sm:$0xf]
    %v190 = vld [vmem:[#allocation5 + $0x1c4] sm:$0xf]
    %v191 = vld [vmem:[#allocation5 + $0x1c8] sm:$0xf]
    %v192 = vld [vmem:[#allocation5 + $0x1cc] sm:$0xf]
    %v193 = vld [vmem:[#allocation5 + $0x1d0] sm:$0xf]
    %v194 = vld [vmem:[#allocation5 + $0x1d4] sm:$0xf]
    %v195 = vld [vmem:[#allocation5 + $0x1d8] sm:$0xf]
    %v196 = vld [vmem:[#allocation5 + $0x1dc] sm:$0xf]
    %v197 = vld [vmem:[#allocation5 + $0x1e0] sm:$0xf]
    %v198 = vld [vmem:[#allocation5 + $0x1e4] sm:$0xf]
    %v199 = vld [vmem:[#allocation5 + $0x1e8] sm:$0xf]
    %v200 = vld [vmem:[#allocation5 + $0x1ec] sm:$0xf]
    %v201 = vld [vmem:[#allocation5 + $0x1f0] sm:$0xf]
    %v202 = vld [vmem:[#allocation5 + $0x1f4] sm:$0xf]
    %v203 = vld [vmem:[#allocation5 + $0x1f8] sm:$0xf]
    %v204 = vld [vmem:[#allocation5 + $0x1fc] sm:$0xf]
    %v205 = vld [vmem:[#allocation5 + $0x200] sm:$0xf]
    %v206 = vld [vmem:[#allocation5 + $0x204] sm:$0xf]
    %v207 = vld [vmem:[#allocation5 + $0x208] sm:$0xf]
    %v208 = vld [vmem:[#allocation5 + $0x20c] sm:$0xf]
    %v209 = vld [vmem:[#allocation5 + $0x210] sm:$0xf]
    %v210 = vld [vmem:[#allocation5 + $0x214] sm:$0xf]
    %v211 = vld [vmem:[#allocation5 + $0x218] sm:$0xf]
    %v212 = vld [vmem:[#allocation5 + $0x21c] sm:$0xf]
    %v213 = vld [vmem:[#allocation5 + $0x220] sm:$0xf]
    %v214 = vld [vmem:[#allocation5 + $0x224] sm:$0xf]
    %v215 = vld [vmem:[#allocation5 + $0x228] sm:$0xf]
    %v216 = vld [vmem:[#allocation5 + $0x22c] sm:$0xf]
    %v217 = vld [vmem:[#allocation5 + $0x230] sm:$0xf]
    %v218 = vld [vmem:[#allocation5 + $0x234] sm:$0xf]
    %v219 = vld [vmem:[#allocation5 + $0x238] sm:$0xf]
    %v220 = vld [vmem:[#allocation5 + $0x23c] sm:$0xf]
    %v221 = vld [vmem:[#allocation5 + $0x240] sm:$0xf]
    %v222 = vld [vmem:[#allocation5 + $0x244] sm:$0xf]
    %v223 = vld [vmem:[#allocation5 + $0x248] sm:$0xf]
    %v224 = vld [vmem:[#allocation5 + $0x24c] sm:$0xf]
    %v225 = vld [vmem:[#allocation5 + $0x250] sm:$0xf]
    %v226 = vld [vmem:[#allocation5 + $0x254] sm:$0xf]
    %v227 = vld [vmem:[#allocation5 + $0x258] sm:$0xf]
    %v228 = vld [vmem:[#allocation5 + $0x25c] sm:$0xf]
    %v229 = vld [vmem:[#allocation5 + $0x260] sm:$0xf]
    %v230 = vld [vmem:[#allocation5 + $0x264] sm:$0xf]
    %v231 = vld [vmem:[#allocation5 + $0x268] sm:$0xf]
    %v232 = vld [vmem:[#allocation5 + $0x26c] sm:$0xf]
    %v233 = vld [vmem:[#allocation5 + $0x270] sm:$0xf]
    %v234 = vld [vmem:[#allocation5 + $0x274] sm:$0xf]
    %v235 = vld [vmem:[#allocation5 + $0x278] sm:$0xf]
    %v236 = vld [vmem:[#allocation5 + $0x27c] sm:$0xf]
    %v237 = vld [vmem:[#allocation5 + $0x280] sm:$0xf]
    %v238 = vld [vmem:[#allocation5 + $0x284] sm:$0xf]
    %v239 = vld [vmem:[#allocation5 + $0x288] sm:$0xf]
    %v240 = vld [vmem:[#allocation5 + $0x28c] sm:$0xf]
    %v241 = vld [vmem:[#allocation5 + $0x290] sm:$0xf]
    %v242 = vld [vmem:[#allocation5 + $0x294] sm:$0xf]
    %v243 = vld [vmem:[#allocation5 + $0x298] sm:$0xf]
    %v244 = vld [vmem:[#allocation5 + $0x29c] sm:$0xf]
    %v245 = vld [vmem:[#allocation5 + $0x2a0] sm:$0xf]
    %v246 = vld [vmem:[#allocation5 + $0x2a4] sm:$0xf]
    %v247 = vld [vmem:[#allocation5 + $0x2a8] sm:$0xf]
    %v248 = vld [vmem:[#allocation5 + $0x2ac] sm:$0xf]
    %v249 = vld [vmem:[#allocation5 + $0x2b0] sm:$0xf]
    %v250 = vld [vmem:[#allocation5 + $0x2b4] sm:$0xf]
    %v251 = vld [vmem:[#allocation5 + $0x2b8] sm:$0xf]
    %v252 = vld [vmem:[#allocation5 + $0x2bc] sm:$0xf]
    %v253 = vld [vmem:[#allocation5 + $0x2c0] sm:$0xf]
    %v254 = vld [vmem:[#allocation5 + $0x2c4] sm:$0xf]
    %v255 = vld [vmem:[#allocation5 + $0x2c8] sm:$0xf]
    %v256 = vld [vmem:[#allocation5 + $0x2cc] sm:$0xf]
    %v257 = vld [vmem:[#allocation5 + $0x2d0] sm:$0xf]
    %v258 = vld [vmem:[#allocation5 + $0x2d4] sm:$0xf]
    %v259 = vld [vmem:[#allocation5 + $0x2d8] sm:$0xf]
    %v260 = vld [vmem:[#allocation5 + $0x2dc] sm:$0xf]
    %v261 = vld [vmem:[#allocation5 + $0x2e0] sm:$0xf]
    %v262 = vld [vmem:[#allocation5 + $0x2e4] sm:$0xf]
    %v263 = vld [vmem:[#allocation5 + $0x2e8] sm:$0xf]
    %v264 = vld [vmem:[#allocation5 + $0x2ec] sm:$0xf]
    %v265 = vld [vmem:[#allocation5 + $0x2f0] sm:$0xf]
    %v266 = vld [vmem:[#allocation5 + $0x2f4] sm:$0xf]
    %v267 = vld [vmem:[#allocation5 + $0x2f8] sm:$0xf]
    %v268 = vld [vmem:[#allocation5 + $0x2fc] sm:$0xf]
    %v269 = vld [vmem:[#allocation5 + $0x300] sm:$0xf]
    %v270 = vld [vmem:[#allocation5 + $0x304] sm:$0xf]
    %v271 = vld [vmem:[#allocation5 + $0x308] sm:$0xf]
    %v272 = vld [vmem:[#allocation5 + $0x30c] sm:$0xf]
    %v273 = vld [vmem:[#allocation5 + $0x310] sm:$0xf]
    %v274 = vld [vmem:[#allocation5 + $0x314] sm:$0xf]
    %v275 = vld [vmem:[#allocation5 + $0x318] sm:$0xf]
    %v276 = vld [vmem:[#allocation5 + $0x31c] sm:$0xf]
    %v277 = vld [vmem:[#allocation5 + $0x320] sm:$0xf]
    %v278 = vld [vmem:[#allocation5 + $0x324] sm:$0xf]
    %v279 = vld [vmem:[#allocation5 + $0x328] sm:$0xf]
    %v280 = vld [vmem:[#allocation5 + $0x32c] sm:$0xf]
    %v281 = vld [vmem:[#allocation5 + $0x330] sm:$0xf]
    %v282 = vld [vmem:[#allocation5 + $0x334] sm:$0xf]
    %v283 = vld [vmem:[#allocation5 + $0x338] sm:$0xf]
    %v284 = vld [vmem:[#allocation5 + $0x33c] sm:$0xf]
    %v285 = vld [vmem:[#allocation5 + $0x340] sm:$0xf]
    %v286 = vld [vmem:[#allocation5 + $0x344] sm:$0xf]
    %v287 = vld [vmem:[#allocation5 + $0x348] sm:$0xf]
    %v288 = vld [vmem:[#allocation5 + $0x34c] sm:$0xf]
    %v289 = vld [vmem:[#allocation5 + $0x350] sm:$0xf]
    %v290 = vld [vmem:[#allocation5 + $0x354] sm:$0xf]
    %v291 = vld [vmem:[#allocation5 + $0x358] sm:$0xf]
    %v292 = vld [vmem:[#allocation5 + $0x35c] sm:$0xf]
    %v293 = vld [vmem:[#allocation5 + $0x360] sm:$0xf]
    %v294 = vld [vmem:[#allocation5 + $0x364] sm:$0xf]
    %v295 = vld [vmem:[#allocation5 + $0x368] sm:$0xf]
    %v296 = vld [vmem:[#allocation5 + $0x36c] sm:$0xf]
    %v297 = vld [vmem:[#allocation5 + $0x370] sm:$0xf]
    %v298 = vld [vmem:[#allocation5 + $0x374] sm:$0xf]
    %v299 = vld [vmem:[#allocation5 + $0x378] sm:$0xf]
    %v300 = vld [vmem:[#allocation5 + $0x37c] sm:$0xf]
    %v301 = vld [vmem:[#allocation5 + $0x380] sm:$0xf]
    %v302 = vld [vmem:[#allocation5 + $0x384] sm:$0xf]
    %v303 = vld [vmem:[#allocation5 + $0x388] sm:$0xf]
    %v304 = vld [vmem:[#allocation5 + $0x38c] sm:$0xf]
    %v305 = vld [vmem:[#allocation5 + $0x390] sm:$0xf]
    %v306 = vld [vmem:[#allocation5 + $0x394] sm:$0xf]
    %v307 = vld [vmem:[#allocation5 + $0x398] sm:$0xf]
    %v308 = vld [vmem:[#allocation5 + $0x39c] sm:$0xf]
    %v309 = vld [vmem:[#allocation5 + $0x3a0] sm:$0xf]
    %v310 = vld [vmem:[#allocation5 + $0x3a4] sm:$0xf]
    %v311 = vld [vmem:[#allocation5 + $0x3a8] sm:$0xf]
    %v312 = vld [vmem:[#allocation5 + $0x3ac] sm:$0xf]
    %v313 = vld [vmem:[#allocation5 + $0x3b0] sm:$0xf]
    %v314 = vld [vmem:[#allocation5 + $0x3b4] sm:$0xf]
    %v315 = vld [vmem:[#allocation5 + $0x3b8] sm:$0xf]
    %v316 = vld [vmem:[#allocation5 + $0x3bc] sm:$0xf]
    %v317 = vld [vmem:[#allocation5 + $0x3c0] sm:$0xf]
    %v318 = vld [vmem:[#allocation5 + $0x3c4] sm:$0xf]
    %v319 = vld [vmem:[#allocation5 + $0x3c8] sm:$0xf]
    %v320 = vld [vmem:[#allocation5 + $0x3cc] sm:$0xf]
    %v321 = vld [vmem:[#allocation5 + $0x3d0] sm:$0xf]
    %v322 = vld [vmem:[#allocation5 + $0x3d4] sm:$0xf]
    %v323 = vld [vmem:[#allocation5 + $0x3d8] sm:$0xf]
    %v324 = vld [vmem:[#allocation5 + $0x3dc] sm:$0xf]
    %v325 = vld [vmem:[#allocation5 + $0x3e0] sm:$0xf]
    %v326 = vld [vmem:[#allocation5 + $0x3e4] sm:$0xf]
    %v327 = vld [vmem:[#allocation5 + $0x3e8] sm:$0xf]
    %v328 = vld [vmem:[#allocation5 + $0x3ec] sm:$0xf]
    %v329 = vld [vmem:[#allocation5 + $0x3f0] sm:$0xf]
    %v330 = vld [vmem:[#allocation5 + $0x3f4] sm:$0xf]
    %v331 = vld [vmem:[#allocation5 + $0x3f8] sm:$0xf]
    %v332 = vld [vmem:[#allocation5 + $0x3fc] sm:$0xf]
    %v333 = vld [vmem:[#allocation5 + $0x400] sm:$0xf]
    %v334 = vld [vmem:[#allocation5 + $0x404] sm:$0xf]
    %v335 = vld [vmem:[#allocation5 + $0x408] sm:$0xf]
    %v336 = vld [vmem:[#allocation5 + $0x40c] sm:$0xf]
    %v337 = vld [vmem:[#allocation5 + $0x410] sm:$0xf]
    %v338 = vld [vmem:[#allocation5 + $0x414] sm:$0xf]
    %v339 = vld [vmem:[#allocation5 + $0x418] sm:$0xf]
    %v340 = vld [vmem:[#allocation5 + $0x41c] sm:$0xf]
    %v341 = vld [vmem:[#allocation5 + $0x420] sm:$0xf]
    %v342 = vld [vmem:[#allocation5 + $0x424] sm:$0xf]
    %v343 = vld [vmem:[#allocation5 + $0x428] sm:$0xf]
    %v344 = vld [vmem:[#allocation5 + $0x42c] sm:$0xf]
    %v345 = vld [vmem:[#allocation5 + $0x430] sm:$0xf]
    %v346 = vld [vmem:[#allocation5 + $0x434] sm:$0xf]
    %v347 = vld [vmem:[#allocation5 + $0x438] sm:$0xf]
    %v348 = vld [vmem:[#allocation5 + $0x43c] sm:$0xf]
    %v349 = vld [vmem:[#allocation5 + $0x440] sm:$0xf]
    %v350 = vld [vmem:[#allocation5 + $0x444] sm:$0xf]
    %v351 = vld [vmem:[#allocation5 + $0x448] sm:$0xf]
    %v352 = vld [vmem:[#allocation5 + $0x44c] sm:$0xf]
    %v353 = vld [vmem:[#allocation5 + $0x450] sm:$0xf]
    %v354 = vld [vmem:[#allocation5 + $0x454] sm:$0xf]
    %v355 = vld [vmem:[#allocation5 + $0x458] sm:$0xf]
    %v356 = vld [vmem:[#allocation5 + $0x45c] sm:$0xf]
    %v357 = vld [vmem:[#allocation5 + $0x460] sm:$0xf]
    %v358 = vld [vmem:[#allocation5 + $0x464] sm:$0xf]
    %v359 = vld [vmem:[#allocation5 + $0x468] sm:$0xf]
    %v360 = vld [vmem:[#allocation5 + $0x46c] sm:$0xf]
    %v361 = vld [vmem:[#allocation5 + $0x470] sm:$0xf]
    %v362 = vld [vmem:[#allocation5 + $0x474] sm:$0xf]
    %v363 = vld [vmem:[#allocation5 + $0x478] sm:$0xf]
    %v364 = vld [vmem:[#allocation5 + $0x47c] sm:$0xf]
    %v365 = vld [vmem:[#allocation5 + $0x480] sm:$0xf]
    %v366 = vld [vmem:[#allocation5 + $0x484] sm:$0xf]
    %v367 = vld [vmem:[#allocation5 + $0x488] sm:$0xf]
    %v368 = vld [vmem:[#allocation5 + $0x48c] sm:$0xf]
    %v369 = vld [vmem:[#allocation5 + $0x490] sm:$0xf]
    %v370 = vld [vmem:[#allocation5 + $0x494] sm:$0xf]
    %v371 = vld [vmem:[#allocation5 + $0x498] sm:$0xf]
    %v372 = vld [vmem:[#allocation5 + $0x49c] sm:$0xf]
    %v373 = vld [vmem:[#allocation5 + $0x4a0] sm:$0xf]
    %v374 = vld [vmem:[#allocation5 + $0x4a4] sm:$0xf]
    %v375 = vld [vmem:[#allocation5 + $0x4a8] sm:$0xf]
    %v376 = vld [vmem:[#allocation5 + $0x4ac] sm:$0xf]
    %v377 = vld [vmem:[#allocation5 + $0x4b0] sm:$0xf]
    %v378 = vld [vmem:[#allocation5 + $0x4b4] sm:$0xf]
    %v379 = vld [vmem:[#allocation5 + $0x4b8] sm:$0xf]
    %v380 = vld [vmem:[#allocation5 + $0x4bc] sm:$0xf]
    %v381 = vld [vmem:[#allocation5 + $0x4c0] sm:$0xf]
    %v382 = vld [vmem:[#allocation5 + $0x4c4] sm:$0xf]
    %v383 = vld [vmem:[#allocation5 + $0x4c8] sm:$0xf]
    %v384 = vld [vmem:[#allocation5 + $0x4cc] sm:$0xf]
    %v385 = vld [vmem:[#allocation5 + $0x4d0] sm:$0xf]
    %v386 = vld [vmem:[#allocation5 + $0x4d4] sm:$0xf]
    %v387 = vld [vmem:[#allocation5 + $0x4d8] sm:$0xf]
    %v388 = vld [vmem:[#allocation5 + $0x4dc] sm:$0xf]
    %v389 = vld [vmem:[#allocation5 + $0x4e0] sm:$0xf]
    %v390 = vld [vmem:[#allocation5 + $0x4e4] sm:$0xf]
    %v391 = vld [vmem:[#allocation5 + $0x4e8] sm:$0xf]
    %v392 = vld [vmem:[#allocation5 + $0x4ec] sm:$0xf]
    %v393 = vld [vmem:[#allocation5 + $0x4f0] sm:$0xf]
    %v394 = vld [vmem:[#allocation5 + $0x4f4] sm:$0xf]
    %v395 = vld [vmem:[#allocation5 + $0x4f8] sm:$0xf]
    %v396 = vld [vmem:[#allocation5 + $0x4fc] sm:$0xf]
    %v397 = vld [vmem:[#allocation5 + $0x500] sm:$0xf]
    %v398 = vld [vmem:[#allocation5 + $0x504] sm:$0xf]
    %v399 = vld [vmem:[#allocation5 + $0x508] sm:$0xf]
    %v400 = vld [vmem:[#allocation5 + $0x50c] sm:$0xf]
    %v401 = vld [vmem:[#allocation5 + $0x510] sm:$0xf]
    %v402 = vld [vmem:[#allocation5 + $0x514] sm:$0xf]
    %v403 = vld [vmem:[#allocation5 + $0x518] sm:$0xf]
    %v404 = vld [vmem:[#allocation5 + $0x51c] sm:$0xf]
    %v405 = vld [vmem:[#allocation5 + $0x520] sm:$0xf]
    %v406 = vld [vmem:[#allocation5 + $0x524] sm:$0xf]
    %v407 = vld [vmem:[#allocation5 + $0x528] sm:$0xf]
    %v408 = vld [vmem:[#allocation5 + $0x52c] sm:$0xf]
    %v409 = vld [vmem:[#allocation5 + $0x530] sm:$0xf]
    %v410 = vld [vmem:[#allocation5 + $0x534] sm:$0xf]
    %v411 = vld [vmem:[#allocation5 + $0x538] sm:$0xf]
    %v412 = vld [vmem:[#allocation5 + $0x53c] sm:$0xf]
    %v413 = vld [vmem:[#allocation5 + $0x540] sm:$0xf]
    %v414 = vld [vmem:[#allocation5 + $0x544] sm:$0xf]
    %v415 = vld [vmem:[#allocation5 + $0x548] sm:$0xf]
    %v416 = vld [vmem:[#allocation5 + $0x54c] sm:$0xf]
    %v417 = vld [vmem:[#allocation5 + $0x550] sm:$0xf]
    %v418 = vld [vmem:[#allocation5 + $0x554] sm:$0xf]
    %v419 = vld [vmem:[#allocation5 + $0x558] sm:$0xf]
    %v420 = vld [vmem:[#allocation5 + $0x55c] sm:$0xf]
    %v421 = vld [vmem:[#allocation5 + $0x560] sm:$0xf]
    %v422 = vld [vmem:[#allocation5 + $0x564] sm:$0xf]
    %v423 = vld [vmem:[#allocation5 + $0x568] sm:$0xf]
    %v424 = vld [vmem:[#allocation5 + $0x56c] sm:$0xf]
    %v425 = vld [vmem:[#allocation5 + $0x570] sm:$0xf]
    %v426 = vld [vmem:[#allocation5 + $0x574] sm:$0xf]
    %v427 = vld [vmem:[#allocation5 + $0x578] sm:$0xf]
    %v428 = vld [vmem:[#allocation5 + $0x57c] sm:$0xf]
    %v429 = vld [vmem:[#allocation5 + $0x580] sm:$0xf]
    %v430 = vld [vmem:[#allocation5 + $0x584] sm:$0xf]
    %v431 = vld [vmem:[#allocation5 + $0x588] sm:$0xf]
    %v432 = vld [vmem:[#allocation5 + $0x58c] sm:$0xf]
    %v433 = vld [vmem:[#allocation5 + $0x590] sm:$0xf]
    %v434 = vld [vmem:[#allocation5 + $0x594] sm:$0xf]
    %v435 = vld [vmem:[#allocation5 + $0x598] sm:$0xf]
    %v436 = vld [vmem:[#allocation5 + $0x59c] sm:$0xf]
    %v437 = vld [vmem:[#allocation5 + $0x5a0] sm:$0xf]
    %v438 = vld [vmem:[#allocation5 + $0x5a4] sm:$0xf]
    %v439 = vld [vmem:[#allocation5 + $0x5a8] sm:$0xf]
    %v440 = vld [vmem:[#allocation5 + $0x5ac] sm:$0xf]
    %v441 = vld [vmem:[#allocation5 + $0x5b0] sm:$0xf]
    %v442 = vld [vmem:[#allocation5 + $0x5b4] sm:$0xf]
    %v443 = vld [vmem:[#allocation5 + $0x5b8] sm:$0xf]
    %v444 = vld [vmem:[#allocation5 + $0x5bc] sm:$0xf]
    %v445 = vld [vmem:[#allocation5 + $0x5c0] sm:$0xf]
    %v446 = vld [vmem:[#allocation5 + $0x5c4] sm:$0xf]
    %v447 = vld [vmem:[#allocation5 + $0x5c8] sm:$0xf]
    %v448 = vld [vmem:[#allocation5 + $0x5cc] sm:$0xf]
    %v449 = vld [vmem:[#allocation5 + $0x5d0] sm:$0xf]
    %v450 = vld [vmem:[#allocation5 + $0x5d4] sm:$0xf]
    %v451 = vld [vmem:[#allocation5 + $0x5d8] sm:$0xf]
    %v452 = vld [vmem:[#allocation5 + $0x5dc] sm:$0xf]
    %v453 = vld [vmem:[#allocation5 + $0x5e0] sm:$0xf]
    %v454 = vld [vmem:[#allocation5 + $0x5e4] sm:$0xf]
    %v455 = vld [vmem:[#allocation5 + $0x5e8] sm:$0xf]
    %v456 = vld [vmem:[#allocation5 + $0x5ec] sm:$0xf]
    %v457 = vld [vmem:[#allocation5 + $0x5f0] sm:$0xf]
    %v458 = vld [vmem:[#allocation5 + $0x5f4] sm:$0xf]
    %v459 = vld [vmem:[#allocation5 + $0x5f8] sm:$0xf]
    %v460 = vld [vmem:[#allocation5 + $0x5fc] sm:$0xf]
    %v461 = vld [vmem:[%s2] sm:$0x1]
    %v463 = vlaneseq
    %v464 = vshrl.u32 %v463, 7
    %v465 = vsub.s32 0, %v464
    %v466 = vrot.slane %v461, %v465
    %v492 = vunpack.c.l.b16 %v53
    %v493 = vunpack.c.h.b16 %v53
    %v494 = vunpack.c.l.b16 %v54
    %v495 = vunpack.c.h.b16 %v54
    %v496 = vunpack.c.l.b16 %v55
    %v497 = vunpack.c.h.b16 %v55
    %v498 = vunpack.c.l.b16 %v56
    %v499 = vunpack.c.h.b16 %v56
    %v500 = vunpack.c.l.b16 %v57
    %v501 = vunpack.c.h.b16 %v57
    %v502 = vunpack.c.l.b16 %v58
    %v503 = vunpack.c.h.b16 %v58
    %v504 = vunpack.c.l.b16 %v59
    %v505 = vunpack.c.h.b16 %v59
    %v506 = vunpack.c.l.b16 %v60
    %v507 = vunpack.c.h.b16 %v60
    %v508 = vunpack.c.l.b16 %v61
    %v509 = vunpack.c.h.b16 %v61
    %v510 = vunpack.c.l.b16 %v62
    %v511 = vunpack.c.h.b16 %v62
    %v512 = vunpack.c.l.b16 %v63
    %v513 = vunpack.c.h.b16 %v63
    %v514 = vunpack.c.l.b16 %v64
    %v515 = vunpack.c.h.b16 %v64
    %v516 = vunpack.c.l.b16 %v65
    %v517 = vunpack.c.h.b16 %v65
    %v518 = vunpack.c.l.b16 %v66
    %v519 = vunpack.c.h.b16 %v66
    %v520 = vunpack.c.l.b16 %v67
    %v521 = vunpack.c.h.b16 %v67
    %v522 = vunpack.c.l.b16 %v68
    %v523 = vunpack.c.h.b16 %v68
    %v524 = vunpack.c.l.b16 %v69
    %v525 = vunpack.c.h.b16 %v69
    %v526 = vunpack.c.l.b16 %v70
    %v527 = vunpack.c.h.b16 %v70
    %v528 = vunpack.c.l.b16 %v71
    %v529 = vunpack.c.h.b16 %v71
    %v530 = vunpack.c.l.b16 %v72
    %v531 = vunpack.c.h.b16 %v72
    %v532 = vunpack.c.l.b16 %v73
    %v533 = vunpack.c.h.b16 %v73
    %v534 = vunpack.c.l.b16 %v74
    %v535 = vunpack.c.h.b16 %v74
    %v536 = vunpack.c.l.b16 %v75
    %v537 = vunpack.c.h.b16 %v75
    %v538 = vunpack.c.l.b16 %v76
    %v539 = vunpack.c.h.b16 %v76
    %v540 = vpack.c.b16 %v516, %v492
    %v541 = vpack.c.b16 %v517, %v493
    %v542 = vpack.c.b16 %v518, %v494
    %v543 = vpack.c.b16 %v519, %v495
    %v544 = vpack.c.b16 %v520, %v496
    %v545 = vpack.c.b16 %v521, %v497
    %v546 = vpack.c.b16 %v522, %v498
    %v547 = vpack.c.b16 %v523, %v499
    %v548 = vpack.c.b16 %v524, %v500
    %v549 = vpack.c.b16 %v525, %v501
    %v550 = vpack.c.b16 %v526, %v502
    %v551 = vpack.c.b16 %v527, %v503
    %v552 = vpack.c.b16 %v528, %v504
    %v553 = vpack.c.b16 %v529, %v505
    %v554 = vpack.c.b16 %v530, %v506
    %v555 = vpack.c.b16 %v531, %v507
    %v556 = vpack.c.b16 %v532, %v508
    %v557 = vpack.c.b16 %v533, %v509
    %v558 = vpack.c.b16 %v534, %v510
    %v559 = vpack.c.b16 %v535, %v511
    %v560 = vpack.c.b16 %v536, %v512
    %v561 = vpack.c.b16 %v537, %v513
    %v562 = vpack.c.b16 %v538, %v514
    %v563 = vpack.c.b16 %v539, %v515
    %v972 = vunpack.c.l.b16 %v77
    %v973 = vunpack.c.l.b16 %v78
    %v974 = vunpack.c.l.b16 %v79
    %v975 = vunpack.c.l.b16 %v80
    %v976 = vunpack.c.l.b16 %v81
    %v977 = vunpack.c.l.b16 %v82
    %v978 = vunpack.c.l.b16 %v83
    %v979 = vunpack.c.l.b16 %v84
    %v980 = vunpack.c.l.b16 %v85
    %v981 = vunpack.c.l.b16 %v86
    %v982 = vunpack.c.l.b16 %v87
    %v983 = vunpack.c.l.b16 %v88
    %v984 = vunpack.c.l.b16 %v89
    %v985 = vunpack.c.l.b16 %v90
    %v986 = vunpack.c.l.b16 %v91
    %v987 = vunpack.c.l.b16 %v92
    %v988 = vunpack.c.l.b16 %v93
    %v989 = vunpack.c.l.b16 %v94
    %v990 = vunpack.c.l.b16 %v95
    %v991 = vunpack.c.l.b16 %v96
    %v992 = vunpack.c.l.b16 %v97
    %v993 = vunpack.c.l.b16 %v98
    %v994 = vunpack.c.l.b16 %v99
    %v995 = vunpack.c.l.b16 %v100
    %v996 = vunpack.c.l.b16 %v101
    %v997 = vunpack.c.l.b16 %v102
    %v998 = vunpack.c.l.b16 %v103
    %v999 = vunpack.c.l.b16 %v104
    %v1000 = vunpack.c.l.b16 %v105
    %v1001 = vunpack.c.l.b16 %v106
    %v1002 = vunpack.c.l.b16 %v107
    %v1003 = vunpack.c.l.b16 %v108
    %v1004 = vunpack.c.l.b16 %v109
    %v1005 = vunpack.c.l.b16 %v110
    %v1006 = vunpack.c.l.b16 %v111
    %v1007 = vunpack.c.l.b16 %v112
    %v1008 = vunpack.c.l.b16 %v113
    %v1009 = vunpack.c.l.b16 %v114
    %v1010 = vunpack.c.l.b16 %v115
    %v1011 = vunpack.c.l.b16 %v116
    %v1012 = vunpack.c.l.b16 %v117
    %v1013 = vunpack.c.l.b16 %v118
    %v1014 = vunpack.c.l.b16 %v119
    %v1015 = vunpack.c.l.b16 %v120
    %v1016 = vunpack.c.l.b16 %v121
    %v1017 = vunpack.c.l.b16 %v122
    %v1018 = vunpack.c.l.b16 %v123
    %v1019 = vunpack.c.l.b16 %v124
    %v1020 = vunpack.c.l.b16 %v125
    %v1021 = vunpack.c.l.b16 %v126
    %v1022 = vunpack.c.l.b16 %v127
    %v1023 = vunpack.c.l.b16 %v128
    %v1024 = vunpack.c.l.b16 %v129
    %v1025 = vunpack.c.l.b16 %v130
    %v1026 = vunpack.c.l.b16 %v131
    %v1027 = vunpack.c.l.b16 %v132
    %v1028 = vunpack.c.l.b16 %v133
    %v1029 = vunpack.c.l.b16 %v134
    %v1030 = vunpack.c.l.b16 %v135
    %v1031 = vunpack.c.l.b16 %v136
    %v1032 = vunpack.c.l.b16 %v137
    %v1033 = vunpack.c.l.b16 %v138
    %v1034 = vunpack.c.l.b16 %v139
    %v1035 = vunpack.c.l.b16 %v140
    %v1036 = vunpack.c.l.b16 %v141
    %v1037 = vunpack.c.l.b16 %v142
    %v1038 = vunpack.c.l.b16 %v143
    %v1039 = vunpack.c.l.b16 %v144
    %v1040 = vunpack.c.l.b16 %v145
    %v1041 = vunpack.c.l.b16 %v146
    %v1042 = vunpack.c.l.b16 %v147
    %v1043 = vunpack.c.l.b16 %v148
    %v1044 = vunpack.c.l.b16 %v149
    %v1045 = vunpack.c.l.b16 %v150
    %v1046 = vunpack.c.l.b16 %v151
    %v1047 = vunpack.c.l.b16 %v152
    %v1048 = vunpack.c.l.b16 %v153
    %v1049 = vunpack.c.l.b16 %v154
    %v1050 = vunpack.c.l.b16 %v155
    %v1051 = vunpack.c.l.b16 %v156
    %v1052 = vunpack.c.l.b16 %v157
    %v1053 = vunpack.c.l.b16 %v158
    %v1054 = vunpack.c.l.b16 %v159
    %v1055 = vunpack.c.l.b16 %v160
    %v1056 = vunpack.c.l.b16 %v161
    %v1057 = vunpack.c.l.b16 %v162
    %v1058 = vunpack.c.l.b16 %v163
    %v1059 = vunpack.c.l.b16 %v164
    %v1060 = vunpack.c.l.b16 %v165
    %v1061 = vunpack.c.l.b16 %v166
    %v1062 = vunpack.c.l.b16 %v167
    %v1063 = vunpack.c.l.b16 %v168
    %v1064 = vunpack.c.l.b16 %v169
    %v1065 = vunpack.c.l.b16 %v170
    %v1066 = vunpack.c.l.b16 %v171
    %v1067 = vunpack.c.l.b16 %v172
    %v1068 = vunpack.c.l.b16 %v173
    %v1069 = vunpack.c.l.b16 %v174
    %v1070 = vunpack.c.l.b16 %v175
    %v1071 = vunpack.c.l.b16 %v176
    %v1072 = vunpack.c.l.b16 %v177
    %v1073 = vunpack.c.l.b16 %v178
    %v1074 = vunpack.c.l.b16 %v179
    %v1075 = vunpack.c.l.b16 %v180
    %v1076 = vunpack.c.l.b16 %v181
    %v1077 = vunpack.c.l.b16 %v182
    %v1078 = vunpack.c.l.b16 %v183
    %v1079 = vunpack.c.l.b16 %v184
    %v1080 = vunpack.c.l.b16 %v185
    %v1081 = vunpack.c.l.b16 %v186
    %v1082 = vunpack.c.l.b16 %v187
    %v1083 = vunpack.c.l.b16 %v188
    %v1084 = vunpack.c.l.b16 %v189
    %v1085 = vunpack.c.l.b16 %v190
    %v1086 = vunpack.c.l.b16 %v191
    %v1087 = vunpack.c.l.b16 %v192
    %v1088 = vunpack.c.l.b16 %v193
    %v1089 = vunpack.c.l.b16 %v194
    %v1090 = vunpack.c.l.b16 %v195
    %v1091 = vunpack.c.l.b16 %v196
    %v1092 = vunpack.c.l.b16 %v197
    %v1093 = vunpack.c.l.b16 %v198
    %v1094 = vunpack.c.l.b16 %v199
    %v1095 = vunpack.c.l.b16 %v200
    %v1096 = vunpack.c.l.b16 %v201
    %v1097 = vunpack.c.l.b16 %v202
    %v1098 = vunpack.c.l.b16 %v203
    %v1099 = vunpack.c.l.b16 %v204
    %v1100 = vunpack.c.l.b16 %v205
    %v1101 = vunpack.c.l.b16 %v206
    %v1102 = vunpack.c.l.b16 %v207
    %v1103 = vunpack.c.l.b16 %v208
    %v1104 = vunpack.c.l.b16 %v209
    %v1105 = vunpack.c.l.b16 %v210
    %v1106 = vunpack.c.l.b16 %v211
    %v1107 = vunpack.c.l.b16 %v212
    %v1108 = vunpack.c.l.b16 %v213
    %v1109 = vunpack.c.l.b16 %v214
    %v1110 = vunpack.c.l.b16 %v215
    %v1111 = vunpack.c.l.b16 %v216
    %v1112 = vunpack.c.l.b16 %v217
    %v1113 = vunpack.c.l.b16 %v218
    %v1114 = vunpack.c.l.b16 %v219
    %v1115 = vunpack.c.l.b16 %v220
    %v1116 = vunpack.c.l.b16 %v221
    %v1117 = vunpack.c.l.b16 %v222
    %v1118 = vunpack.c.l.b16 %v223
    %v1119 = vunpack.c.l.b16 %v224
    %v1120 = vunpack.c.l.b16 %v225
    %v1121 = vunpack.c.l.b16 %v226
    %v1122 = vunpack.c.l.b16 %v227
    %v1123 = vunpack.c.l.b16 %v228
    %v1124 = vunpack.c.l.b16 %v229
    %v1125 = vunpack.c.l.b16 %v230
    %v1126 = vunpack.c.l.b16 %v231
    %v1127 = vunpack.c.l.b16 %v232
    %v1128 = vunpack.c.l.b16 %v233
    %v1129 = vunpack.c.l.b16 %v234
    %v1130 = vunpack.c.l.b16 %v235
    %v1131 = vunpack.c.l.b16 %v236
    %v1132 = vunpack.c.l.b16 %v237
    %v1133 = vunpack.c.l.b16 %v238
    %v1134 = vunpack.c.l.b16 %v239
    %v1135 = vunpack.c.l.b16 %v240
    %v1136 = vunpack.c.l.b16 %v241
    %v1137 = vunpack.c.l.b16 %v242
    %v1138 = vunpack.c.l.b16 %v243
    %v1139 = vunpack.c.l.b16 %v244
    %v1140 = vunpack.c.l.b16 %v245
    %v1141 = vunpack.c.l.b16 %v246
    %v1142 = vunpack.c.l.b16 %v247
    %v1143 = vunpack.c.l.b16 %v248
    %v1144 = vunpack.c.l.b16 %v249
    %v1145 = vunpack.c.l.b16 %v250
    %v1146 = vunpack.c.l.b16 %v251
    %v1147 = vunpack.c.l.b16 %v252
    %v1148 = vunpack.c.l.b16 %v253
    %v1149 = vunpack.c.l.b16 %v254
    %v1150 = vunpack.c.l.b16 %v255
    %v1151 = vunpack.c.l.b16 %v256
    %v1152 = vunpack.c.l.b16 %v257
    %v1153 = vunpack.c.l.b16 %v258
    %v1154 = vunpack.c.l.b16 %v259
    %v1155 = vunpack.c.l.b16 %v260
    %v1156 = vunpack.c.l.b16 %v261
    %v1157 = vunpack.c.l.b16 %v262
    %v1158 = vunpack.c.l.b16 %v263
    %v1159 = vunpack.c.l.b16 %v264
    %v1160 = vunpack.c.l.b16 %v265
    %v1161 = vunpack.c.l.b16 %v266
    %v1162 = vunpack.c.l.b16 %v267
    %v1163 = vunpack.c.l.b16 %v268
    %v1164 = vunpack.c.l.b16 %v269
    %v1165 = vunpack.c.l.b16 %v270
    %v1166 = vunpack.c.l.b16 %v271
    %v1167 = vunpack.c.l.b16 %v272
    %v1168 = vunpack.c.l.b16 %v273
    %v1169 = vunpack.c.l.b16 %v274
    %v1170 = vunpack.c.l.b16 %v275
    %v1171 = vunpack.c.l.b16 %v276
    %v1172 = vunpack.c.l.b16 %v277
    %v1173 = vunpack.c.l.b16 %v278
    %v1174 = vunpack.c.l.b16 %v279
    %v1175 = vunpack.c.l.b16 %v280
    %v1176 = vunpack.c.l.b16 %v281
    %v1177 = vunpack.c.l.b16 %v282
    %v1178 = vunpack.c.l.b16 %v283
    %v1179 = vunpack.c.l.b16 %v284
    %v1180 = vunpack.c.l.b16 %v285
    %v1181 = vunpack.c.l.b16 %v286
    %v1182 = vunpack.c.l.b16 %v287
    %v1183 = vunpack.c.l.b16 %v288
    %v1184 = vunpack.c.l.b16 %v289
    %v1185 = vunpack.c.l.b16 %v290
    %v1186 = vunpack.c.l.b16 %v291
    %v1187 = vunpack.c.l.b16 %v292
    %v1188 = vunpack.c.l.b16 %v293
    %v1189 = vunpack.c.l.b16 %v294
    %v1190 = vunpack.c.l.b16 %v295
    %v1191 = vunpack.c.l.b16 %v296
    %v1192 = vunpack.c.l.b16 %v297
    %v1193 = vunpack.c.l.b16 %v298
    %v1194 = vunpack.c.l.b16 %v299
    %v1195 = vunpack.c.l.b16 %v300
    %v1196 = vunpack.c.l.b16 %v301
    %v1197 = vunpack.c.l.b16 %v302
    %v1198 = vunpack.c.l.b16 %v303
    %v1199 = vunpack.c.l.b16 %v304
    %v1200 = vunpack.c.l.b16 %v305
    %v1201 = vunpack.c.l.b16 %v306
    %v1202 = vunpack.c.l.b16 %v307
    %v1203 = vunpack.c.l.b16 %v308
    %v1204 = vunpack.c.l.b16 %v309
    %v1205 = vunpack.c.l.b16 %v310
    %v1206 = vunpack.c.l.b16 %v311
    %v1207 = vunpack.c.l.b16 %v312
    %v1208 = vunpack.c.l.b16 %v313
    %v1209 = vunpack.c.l.b16 %v314
    %v1210 = vunpack.c.l.b16 %v315
    %v1211 = vunpack.c.l.b16 %v316
    %v1212 = vunpack.c.l.b16 %v317
    %v1213 = vunpack.c.l.b16 %v318
    %v1214 = vunpack.c.l.b16 %v319
    %v1215 = vunpack.c.l.b16 %v320
    %v1216 = vunpack.c.l.b16 %v321
    %v1217 = vunpack.c.l.b16 %v322
    %v1218 = vunpack.c.l.b16 %v323
    %v1219 = vunpack.c.l.b16 %v324
    %v1220 = vunpack.c.l.b16 %v325
    %v1221 = vunpack.c.l.b16 %v326
    %v1222 = vunpack.c.l.b16 %v327
    %v1223 = vunpack.c.l.b16 %v328
    %v1224 = vunpack.c.l.b16 %v329
    %v1225 = vunpack.c.l.b16 %v330
    %v1226 = vunpack.c.l.b16 %v331
    %v1227 = vunpack.c.l.b16 %v332
    %v1228 = vunpack.c.l.b16 %v333
    %v1229 = vunpack.c.l.b16 %v334
    %v1230 = vunpack.c.l.b16 %v335
    %v1231 = vunpack.c.l.b16 %v336
    %v1232 = vunpack.c.l.b16 %v337
    %v1233 = vunpack.c.l.b16 %v338
    %v1234 = vunpack.c.l.b16 %v339
    %v1235 = vunpack.c.l.b16 %v340
    %v1236 = vunpack.c.l.b16 %v341
    %v1237 = vunpack.c.l.b16 %v342
    %v1238 = vunpack.c.l.b16 %v343
    %v1239 = vunpack.c.l.b16 %v344
    %v1240 = vunpack.c.l.b16 %v345
    %v1241 = vunpack.c.l.b16 %v346
    %v1242 = vunpack.c.l.b16 %v347
    %v1243 = vunpack.c.l.b16 %v348
    %v1244 = vunpack.c.l.b16 %v349
    %v1245 = vunpack.c.l.b16 %v350
    %v1246 = vunpack.c.l.b16 %v351
    %v1247 = vunpack.c.l.b16 %v352
    %v1248 = vunpack.c.l.b16 %v353
    %v1249 = vunpack.c.l.b16 %v354
    %v1250 = vunpack.c.l.b16 %v355
    %v1251 = vunpack.c.l.b16 %v356
    %v1252 = vunpack.c.l.b16 %v357
    %v1253 = vunpack.c.l.b16 %v358
    %v1254 = vunpack.c.l.b16 %v359
    %v1255 = vunpack.c.l.b16 %v360
    %v1256 = vunpack.c.l.b16 %v361
    %v1257 = vunpack.c.l.b16 %v362
    %v1258 = vunpack.c.l.b16 %v363
    %v1259 = vunpack.c.l.b16 %v364
    %v1260 = vunpack.c.l.b16 %v365
    %v1261 = vunpack.c.l.b16 %v366
    %v1262 = vunpack.c.l.b16 %v367
    %v1263 = vunpack.c.l.b16 %v368
    %v1264 = vunpack.c.l.b16 %v369
    %v1265 = vunpack.c.l.b16 %v370
    %v1266 = vunpack.c.l.b16 %v371
    %v1267 = vunpack.c.l.b16 %v372
    %v1268 = vunpack.c.l.b16 %v373
    %v1269 = vunpack.c.l.b16 %v374
    %v1270 = vunpack.c.l.b16 %v375
    %v1271 = vunpack.c.l.b16 %v376
    %v1272 = vunpack.c.l.b16 %v377
    %v1273 = vunpack.c.l.b16 %v378
    %v1274 = vunpack.c.l.b16 %v379
    %v1275 = vunpack.c.l.b16 %v380
    %v1276 = vunpack.c.l.b16 %v381
    %v1277 = vunpack.c.l.b16 %v382
    %v1278 = vunpack.c.l.b16 %v383
    %v1279 = vunpack.c.l.b16 %v384
    %v1280 = vunpack.c.l.b16 %v385
    %v1281 = vunpack.c.l.b16 %v386
    %v1282 = vunpack.c.l.b16 %v387
    %v1283 = vunpack.c.l.b16 %v388
    %v1284 = vunpack.c.l.b16 %v389
    %v1285 = vunpack.c.l.b16 %v390
    %v1286 = vunpack.c.l.b16 %v391
    %v1287 = vunpack.c.l.b16 %v392
    %v1288 = vunpack.c.l.b16 %v393
    %v1289 = vunpack.c.l.b16 %v394
    %v1290 = vunpack.c.l.b16 %v395
    %v1291 = vunpack.c.l.b16 %v396
    %v1292 = vunpack.c.l.b16 %v397
    %v1293 = vunpack.c.l.b16 %v398
    %v1294 = vunpack.c.l.b16 %v399
    %v1295 = vunpack.c.l.b16 %v400
    %v1296 = vunpack.c.l.b16 %v401
    %v1297 = vunpack.c.l.b16 %v402
    %v1298 = vunpack.c.l.b16 %v403
    %v1299 = vunpack.c.l.b16 %v404
    %v1300 = vunpack.c.l.b16 %v405
    %v1301 = vunpack.c.l.b16 %v406
    %v1302 = vunpack.c.l.b16 %v407
    %v1303 = vunpack.c.l.b16 %v408
    %v1304 = vunpack.c.l.b16 %v409
    %v1305 = vunpack.c.l.b16 %v410
    %v1306 = vunpack.c.l.b16 %v411
    %v1307 = vunpack.c.l.b16 %v412
    %v1308 = vunpack.c.l.b16 %v413
    %v1309 = vunpack.c.l.b16 %v414
    %v1310 = vunpack.c.l.b16 %v415
    %v1311 = vunpack.c.l.b16 %v416
    %v1312 = vunpack.c.l.b16 %v417
    %v1313 = vunpack.c.l.b16 %v418
    %v1314 = vunpack.c.l.b16 %v419
    %v1315 = vunpack.c.l.b16 %v420
    %v1316 = vunpack.c.l.b16 %v421
    %v1317 = vunpack.c.l.b16 %v422
    %v1318 = vunpack.c.l.b16 %v423
    %v1319 = vunpack.c.l.b16 %v424
    %v1320 = vunpack.c.l.b16 %v425
    %v1321 = vunpack.c.l.b16 %v426
    %v1322 = vunpack.c.l.b16 %v427
    %v1323 = vunpack.c.l.b16 %v428
    %v1324 = vunpack.c.l.b16 %v429
    %v1325 = vunpack.c.l.b16 %v430
    %v1326 = vunpack.c.l.b16 %v431
    %v1327 = vunpack.c.l.b16 %v432
    %v1328 = vunpack.c.l.b16 %v433
    %v1329 = vunpack.c.l.b16 %v434
    %v1330 = vunpack.c.l.b16 %v435
    %v1331 = vunpack.c.l.b16 %v436
    %v1332 = vunpack.c.l.b16 %v437
    %v1333 = vunpack.c.l.b16 %v438
    %v1334 = vunpack.c.l.b16 %v439
    %v1335 = vunpack.c.l.b16 %v440
    %v1336 = vunpack.c.l.b16 %v441
    %v1337 = vunpack.c.l.b16 %v442
    %v1338 = vunpack.c.l.b16 %v443
    %v1339 = vunpack.c.l.b16 %v444
    %v1340 = vunpack.c.l.b16 %v445
    %v1341 = vunpack.c.l.b16 %v446
    %v1342 = vunpack.c.l.b16 %v447
    %v1343 = vunpack.c.l.b16 %v448
    %v1344 = vunpack.c.l.b16 %v449
    %v1345 = vunpack.c.l.b16 %v450
    %v1346 = vunpack.c.l.b16 %v451
    %v1347 = vunpack.c.l.b16 %v452
    %v1348 = vunpack.c.l.b16 %v453
    %v1349 = vunpack.c.l.b16 %v454
    %v1350 = vunpack.c.l.b16 %v455
    %v1351 = vunpack.c.l.b16 %v456
    %v1352 = vunpack.c.l.b16 %v457
    %v1353 = vunpack.c.l.b16 %v458
    %v1354 = vunpack.c.l.b16 %v459
    %v1355 = vunpack.c.l.b16 %v460
    %v1356 = vpack.c.b16 %v973, %v972
    %v1357 = vpack.c.b16 %v975, %v974
    %v1358 = vpack.c.b16 %v977, %v976
    %v1359 = vpack.c.b16 %v979, %v978
    %v1360 = vpack.c.b16 %v981, %v980
    %v1361 = vpack.c.b16 %v983, %v982
    %v1362 = vpack.c.b16 %v985, %v984
    %v1363 = vpack.c.b16 %v987, %v986
    %v1364 = vpack.c.b16 %v989, %v988
    %v1365 = vpack.c.b16 %v991, %v990
    %v1366 = vpack.c.b16 %v993, %v992
    %v1367 = vpack.c.b16 %v995, %v994
    %v1368 = vpack.c.b16 %v997, %v996
    %v1369 = vpack.c.b16 %v999, %v998
    %v1370 = vpack.c.b16 %v1001, %v1000
    %v1371 = vpack.c.b16 %v1003, %v1002
    %v1372 = vpack.c.b16 %v1005, %v1004
    %v1373 = vpack.c.b16 %v1007, %v1006
    %v1374 = vpack.c.b16 %v1009, %v1008
    %v1375 = vpack.c.b16 %v1011, %v1010
    %v1376 = vpack.c.b16 %v1013, %v1012
    %v1377 = vpack.c.b16 %v1015, %v1014
    %v1378 = vpack.c.b16 %v1017, %v1016
    %v1379 = vpack.c.b16 %v1019, %v1018
    %v1380 = vpack.c.b16 %v1021, %v1020
    %v1381 = vpack.c.b16 %v1023, %v1022
    %v1382 = vpack.c.b16 %v1025, %v1024
    %v1383 = vpack.c.b16 %v1027, %v1026
    %v1384 = vpack.c.b16 %v1029, %v1028
    %v1385 = vpack.c.b16 %v1031, %v1030
    %v1386 = vpack.c.b16 %v1033, %v1032
    %v1387 = vpack.c.b16 %v1035, %v1034
    %v1388 = vpack.c.b16 %v1037, %v1036
    %v1389 = vpack.c.b16 %v1039, %v1038
    %v1390 = vpack.c.b16 %v1041, %v1040
    %v1391 = vpack.c.b16 %v1043, %v1042
    %v1392 = vpack.c.b16 %v1045, %v1044
    %v1393 = vpack.c.b16 %v1047, %v1046
    %v1394 = vpack.c.b16 %v1049, %v1048
    %v1395 = vpack.c.b16 %v1051, %v1050
    %v1396 = vpack.c.b16 %v1053, %v1052
    %v1397 = vpack.c.b16 %v1055, %v1054
    %v1398 = vpack.c.b16 %v1057, %v1056
    %v1399 = vpack.c.b16 %v1059, %v1058
    %v1400 = vpack.c.b16 %v1061, %v1060
    %v1401 = vpack.c.b16 %v1063, %v1062
    %v1402 = vpack.c.b16 %v1065, %v1064
    %v1403 = vpack.c.b16 %v1067, %v1066
    %v1404 = vpack.c.b16 %v1069, %v1068
    %v1405 = vpack.c.b16 %v1071, %v1070
    %v1406 = vpack.c.b16 %v1073, %v1072
    %v1407 = vpack.c.b16 %v1075, %v1074
    %v1408 = vpack.c.b16 %v1077, %v1076
    %v1409 = vpack.c.b16 %v1079, %v1078
    %v1410 = vpack.c.b16 %v1081, %v1080
    %v1411 = vpack.c.b16 %v1083, %v1082
    %v1412 = vpack.c.b16 %v1085, %v1084
    %v1413 = vpack.c.b16 %v1087, %v1086
    %v1414 = vpack.c.b16 %v1089, %v1088
    %v1415 = vpack.c.b16 %v1091, %v1090
    %v1416 = vpack.c.b16 %v1093, %v1092
    %v1417 = vpack.c.b16 %v1095, %v1094
    %v1418 = vpack.c.b16 %v1097, %v1096
    %v1419 = vpack.c.b16 %v1099, %v1098
    %v1420 = vpack.c.b16 %v1101, %v1100
    %v1421 = vpack.c.b16 %v1103, %v1102
    %v1422 = vpack.c.b16 %v1105, %v1104
    %v1423 = vpack.c.b16 %v1107, %v1106
    %v1424 = vpack.c.b16 %v1109, %v1108
    %v1425 = vpack.c.b16 %v1111, %v1110
    %v1426 = vpack.c.b16 %v1113, %v1112
    %v1427 = vpack.c.b16 %v1115, %v1114
    %v1428 = vpack.c.b16 %v1117, %v1116
    %v1429 = vpack.c.b16 %v1119, %v1118
    %v1430 = vpack.c.b16 %v1121, %v1120
    %v1431 = vpack.c.b16 %v1123, %v1122
    %v1432 = vpack.c.b16 %v1125, %v1124
    %v1433 = vpack.c.b16 %v1127, %v1126
    %v1434 = vpack.c.b16 %v1129, %v1128
    %v1435 = vpack.c.b16 %v1131, %v1130
    %v1436 = vpack.c.b16 %v1133, %v1132
    %v1437 = vpack.c.b16 %v1135, %v1134
    %v1438 = vpack.c.b16 %v1137, %v1136
    %v1439 = vpack.c.b16 %v1139, %v1138
    %v1440 = vpack.c.b16 %v1141, %v1140
    %v1441 = vpack.c.b16 %v1143, %v1142
    %v1442 = vpack.c.b16 %v1145, %v1144
    %v1443 = vpack.c.b16 %v1147, %v1146
    %v1444 = vpack.c.b16 %v1149, %v1148
    %v1445 = vpack.c.b16 %v1151, %v1150
    %v1446 = vpack.c.b16 %v1153, %v1152
    %v1447 = vpack.c.b16 %v1155, %v1154
    %v1448 = vpack.c.b16 %v1157, %v1156
    %v1449 = vpack.c.b16 %v1159, %v1158
    %v1450 = vpack.c.b16 %v1161, %v1160
    %v1451 = vpack.c.b16 %v1163, %v1162
    %v1452 = vpack.c.b16 %v1165, %v1164
    %v1453 = vpack.c.b16 %v1167, %v1166
    %v1454 = vpack.c.b16 %v1169, %v1168
    %v1455 = vpack.c.b16 %v1171, %v1170
    %v1456 = vpack.c.b16 %v1173, %v1172
    %v1457 = vpack.c.b16 %v1175, %v1174
    %v1458 = vpack.c.b16 %v1177, %v1176
    %v1459 = vpack.c.b16 %v1179, %v1178
    %v1460 = vpack.c.b16 %v1181, %v1180
    %v1461 = vpack.c.b16 %v1183, %v1182
    %v1462 = vpack.c.b16 %v1185, %v1184
    %v1463 = vpack.c.b16 %v1187, %v1186
    %v1464 = vpack.c.b16 %v1189, %v1188
    %v1465 = vpack.c.b16 %v1191, %v1190
    %v1466 = vpack.c.b16 %v1193, %v1192
    %v1467 = vpack.c.b16 %v1195, %v1194
    %v1468 = vpack.c.b16 %v1197, %v1196
    %v1469 = vpack.c.b16 %v1199, %v1198
    %v1470 = vpack.c.b16 %v1201, %v1200
    %v1471 = vpack.c.b16 %v1203, %v1202
    %v1472 = vpack.c.b16 %v1205, %v1204
    %v1473 = vpack.c.b16 %v1207, %v1206
    %v1474 = vpack.c.b16 %v1209, %v1208
    %v1475 = vpack.c.b16 %v1211, %v1210
    %v1476 = vpack.c.b16 %v1213, %v1212
    %v1477 = vpack.c.b16 %v1215, %v1214
    %v1478 = vpack.c.b16 %v1217, %v1216
    %v1479 = vpack.c.b16 %v1219, %v1218
    %v1480 = vpack.c.b16 %v1221, %v1220
    %v1481 = vpack.c.b16 %v1223, %v1222
    %v1482 = vpack.c.b16 %v1225, %v1224
    %v1483 = vpack.c.b16 %v1227, %v1226
    %v1484 = vpack.c.b16 %v1229, %v1228
    %v1485 = vpack.c.b16 %v1231, %v1230
    %v1486 = vpack.c.b16 %v1233, %v1232
    %v1487 = vpack.c.b16 %v1235, %v1234
    %v1488 = vpack.c.b16 %v1237, %v1236
    %v1489 = vpack.c.b16 %v1239, %v1238
    %v1490 = vpack.c.b16 %v1241, %v1240
    %v1491 = vpack.c.b16 %v1243, %v1242
    %v1492 = vpack.c.b16 %v1245, %v1244
    %v1493 = vpack.c.b16 %v1247, %v1246
    %v1494 = vpack.c.b16 %v1249, %v1248
    %v1495 = vpack.c.b16 %v1251, %v1250
    %v1496 = vpack.c.b16 %v1253, %v1252
    %v1497 = vpack.c.b16 %v1255, %v1254
    %v1498 = vpack.c.b16 %v1257, %v1256
    %v1499 = vpack.c.b16 %v1259, %v1258
    %v1500 = vpack.c.b16 %v1261, %v1260
    %v1501 = vpack.c.b16 %v1263, %v1262
    %v1502 = vpack.c.b16 %v1265, %v1264
    %v1503 = vpack.c.b16 %v1267, %v1266
    %v1504 = vpack.c.b16 %v1269, %v1268
    %v1505 = vpack.c.b16 %v1271, %v1270
    %v1506 = vpack.c.b16 %v1273, %v1272
    %v1507 = vpack.c.b16 %v1275, %v1274
    %v1508 = vpack.c.b16 %v1277, %v1276
    %v1509 = vpack.c.b16 %v1279, %v1278
    %v1510 = vpack.c.b16 %v1281, %v1280
    %v1511 = vpack.c.b16 %v1283, %v1282
    %v1512 = vpack.c.b16 %v1285, %v1284
    %v1513 = vpack.c.b16 %v1287, %v1286
    %v1514 = vpack.c.b16 %v1289, %v1288
    %v1515 = vpack.c.b16 %v1291, %v1290
    %v1516 = vpack.c.b16 %v1293, %v1292
    %v1517 = vpack.c.b16 %v1295, %v1294
    %v1518 = vpack.c.b16 %v1297, %v1296
    %v1519 = vpack.c.b16 %v1299, %v1298
    %v1520 = vpack.c.b16 %v1301, %v1300
    %v1521 = vpack.c.b16 %v1303, %v1302
    %v1522 = vpack.c.b16 %v1305, %v1304
    %v1523 = vpack.c.b16 %v1307, %v1306
    %v1524 = vpack.c.b16 %v1309, %v1308
    %v1525 = vpack.c.b16 %v1311, %v1310
    %v1526 = vpack.c.b16 %v1313, %v1312
    %v1527 = vpack.c.b16 %v1315, %v1314
    %v1528 = vpack.c.b16 %v1317, %v1316
    %v1529 = vpack.c.b16 %v1319, %v1318
    %v1530 = vpack.c.b16 %v1321, %v1320
    %v1531 = vpack.c.b16 %v1323, %v1322
    %v1532 = vpack.c.b16 %v1325, %v1324
    %v1533 = vpack.c.b16 %v1327, %v1326
    %v1534 = vpack.c.b16 %v1329, %v1328
    %v1535 = vpack.c.b16 %v1331, %v1330
    %v1536 = vpack.c.b16 %v1333, %v1332
    %v1537 = vpack.c.b16 %v1335, %v1334
    %v1538 = vpack.c.b16 %v1337, %v1336
    %v1539 = vpack.c.b16 %v1339, %v1338
    %v1540 = vpack.c.b16 %v1341, %v1340
    %v1541 = vpack.c.b16 %v1343, %v1342
    %v1542 = vpack.c.b16 %v1345, %v1344
    %v1543 = vpack.c.b16 %v1347, %v1346
    %v1544 = vpack.c.b16 %v1349, %v1348
    %v1545 = vpack.c.b16 %v1351, %v1350
    %v1546 = vpack.c.b16 %v1353, %v1352
    %v1547 = vpack.c.b16 %v1355, %v1354
    %1740 = vmatprep.subr.bf16.mxu0 0
    %1741 = vmatpush1.bf16.msra.mxu0 %v1363
    %1742 = vmatprep.subr.bf16.mxu0 0
    %1743 = vmatpush1.bf16.msra.mxu0 %v1362
    %1744 = vmatprep.subr.bf16.mxu0 0
    %1745 = vmatpush1.bf16.msra.mxu0 %v1361
    %1746 = vmatprep.subr.bf16.mxu0 0
    %1747 = vmatpush1.bf16.msra.mxu0 %v1360
    %1748 = vmatprep.subr.bf16.mxu0 0
    %1749 = vmatpush1.bf16.msra.mxu0 %v1359
    %1750 = vmatprep.subr.bf16.mxu0 0
    %1751 = vmatpush1.bf16.msra.mxu0 %v1358
    %1752 = vmatprep.subr.bf16.mxu0 0
    %1753 = vmatpush1.bf16.msra.mxu0 %v1357
    %1754 = vmatprep.subr.bf16.mxu0 0
    %1755 = vmatpush1.bf16.msra.mxu0 %v1356
    %1756 = vmatprep.subr.bf16.mxu0 0
    %1757 = vmatpush2.bf16.msra.mxu0 %v1371
    %1758 = vmatprep.subr.bf16.mxu0 0
    %1759 = vmatpush2.bf16.msra.mxu0 %v1370
    %1760 = vmatprep.subr.bf16.mxu0 0
    %1761 = vmatpush2.bf16.msra.mxu0 %v1369
    %1762 = vmatprep.subr.bf16.mxu0 0
    %1763 = vmatpush2.bf16.msra.mxu0 %v1368
    %1764 = vmatprep.subr.bf16.mxu0 0
    %1765 = vmatpush2.bf16.msra.mxu0 %v1367
    %1766 = vmatprep.subr.bf16.mxu0 0
    %1767 = vmatpush2.bf16.msra.mxu0 %v1366
    %1768 = vmatprep.subr.bf16.mxu0 0
    %1769 = vmatpush2.bf16.msra.mxu0 %v1365
    %1770 = vmatprep.subr.bf16.mxu0 0
    %1771 = vmatpush2.bf16.msra.mxu0 %v1364
    %1772 = vmatprep.mubr.bf16.mxu0 %v541
    %1773 = vmatmul.mubr.bf16.gmra.mxu0 %v540
    %v1774 = vpop.f32.mrf.mxu0
    %v1775 = vadd.f32 %v466, %v1774
    %v1776 = vpop.f32.mrf.mxu0
    %v1777 = vpop.f32.mrf.mxu0
    %v1778 = vadd.f32 %v466, %v1777
    %v1779 = vpop.f32.mrf.mxu0
    %1780 = vdwg.mxu0
    %1781 = vmatprep.subr.bf16.mxu0 0
    %1782 = vmatpush1.bf16.msra.mxu0 %v1379
    %1783 = vmatprep.subr.bf16.mxu0 0
    %1784 = vmatpush1.bf16.msra.mxu0 %v1378
    %1785 = vmatprep.subr.bf16.mxu0 0
    %1786 = vmatpush1.bf16.msra.mxu0 %v1377
    %1787 = vmatprep.subr.bf16.mxu0 0
    %1788 = vmatpush1.bf16.msra.mxu0 %v1376
    %1789 = vmatprep.subr.bf16.mxu0 0
    %1790 = vmatpush1.bf16.msra.mxu0 %v1375
    %1791 = vmatprep.subr.bf16.mxu0 0
    %1792 = vmatpush1.bf16.msra.mxu0 %v1374
    %1793 = vmatprep.subr.bf16.mxu0 0
    %1794 = vmatpush1.bf16.msra.mxu0 %v1373
    %1795 = vmatprep.subr.bf16.mxu0 0
    %1796 = vmatpush1.bf16.msra.mxu0 %v1372
    %1797 = vmatprep.subr.bf16.mxu0 0
    %1798 = vmatpush2.bf16.msra.mxu0 %v1387
    %1799 = vmatprep.subr.bf16.mxu0 0
    %1800 = vmatpush2.bf16.msra.mxu0 %v1386
    %1801 = vmatprep.subr.bf16.mxu0 0
    %1802 = vmatpush2.bf16.msra.mxu0 %v1385
    %1803 = vmatprep.subr.bf16.mxu0 0
    %1804 = vmatpush2.bf16.msra.mxu0 %v1384
    %1805 = vmatprep.subr.bf16.mxu0 0
    %1806 = vmatpush2.bf16.msra.mxu0 %v1383
    %1807 = vmatprep.subr.bf16.mxu0 0
    %1808 = vmatpush2.bf16.msra.mxu0 %v1382
    %1809 = vmatprep.subr.bf16.mxu0 0
    %1810 = vmatpush2.bf16.msra.mxu0 %v1381
    %1811 = vmatprep.subr.bf16.mxu0 0
    %1812 = vmatpush2.bf16.msra.mxu0 %v1380
    %1813 = vmatprep.mubr.bf16.mxu0 %v543
    %1814 = vmatmul.mubr.bf16.gmra.mxu0 %v542
    %v1815 = vpop.f32.mrf.mxu0
    %v1816 = vadd.f32 %v1775, %v1815
    %v1817 = vpop.f32.mrf.mxu0
    %v1818 = vpop.f32.mrf.mxu0
    %v1819 = vadd.f32 %v1778, %v1818
    %v1820 = vpop.f32.mrf.mxu0
    %1821 = vdwg.mxu0
    %1822 = vmatprep.subr.bf16.mxu0 0
    %1823 = vmatpush1.bf16.msra.mxu0 %v1395
    %1824 = vmatprep.subr.bf16.mxu0 0
    %1825 = vmatpush1.bf16.msra.mxu0 %v1394
    %1826 = vmatprep.subr.bf16.mxu0 0
    %1827 = vmatpush1.bf16.msra.mxu0 %v1393
    %1828 = vmatprep.subr.bf16.mxu0 0
    %1829 = vmatpush1.bf16.msra.mxu0 %v1392
    %1830 = vmatprep.subr.bf16.mxu0 0
    %1831 = vmatpush1.bf16.msra.mxu0 %v1391
    %1832 = vmatprep.subr.bf16.mxu0 0
    %1833 = vmatpush1.bf16.msra.mxu0 %v1390
    %1834 = vmatprep.subr.bf16.mxu0 0
    %1835 = vmatpush1.bf16.msra.mxu0 %v1389
    %1836 = vmatprep.subr.bf16.mxu0 0
    %1837 = vmatpush1.bf16.msra.mxu0 %v1388
    %1838 = vmatprep.subr.bf16.mxu0 0
    %1839 = vmatpush2.bf16.msra.mxu0 %v1403
    %1840 = vmatprep.subr.bf16.mxu0 0
    %1841 = vmatpush2.bf16.msra.mxu0 %v1402
    %1842 = vmatprep.subr.bf16.mxu0 0
    %1843 = vmatpush2.bf16.msra.mxu0 %v1401
    %1844 = vmatprep.subr.bf16.mxu0 0
    %1845 = vmatpush2.bf16.msra.mxu0 %v1400
    %1846 = vmatprep.subr.bf16.mxu0 0
    %1847 = vmatpush2.bf16.msra.mxu0 %v1399
    %1848 = vmatprep.subr.bf16.mxu0 0
    %1849 = vmatpush2.bf16.msra.mxu0 %v1398
    %1850 = vmatprep.subr.bf16.mxu0 0
    %1851 = vmatpush2.bf16.msra.mxu0 %v1397
    %1852 = vmatprep.subr.bf16.mxu0 0
    %1853 = vmatpush2.bf16.msra.mxu0 %v1396
    %1854 = vmatprep.mubr.bf16.mxu0 %v545
    %1855 = vmatmul.mubr.bf16.gmra.mxu0 %v544
    %v1856 = vpop.f32.mrf.mxu0
    %v1857 = vadd.f32 %v1816, %v1856
    %v1858 = vpop.f32.mrf.mxu0
    %v1859 = vpop.f32.mrf.mxu0
    %v1860 = vadd.f32 %v1819, %v1859
    %v1861 = vpop.f32.mrf.mxu0
    %1862 = vdwg.mxu0
    %1863 = vmatprep.subr.bf16.mxu0 0
    %1864 = vmatpush1.bf16.msra.mxu0 %v1411
    %1865 = vmatprep.subr.bf16.mxu0 0
    %1866 = vmatpush1.bf16.msra.mxu0 %v1410
    %1867 = vmatprep.subr.bf16.mxu0 0
    %1868 = vmatpush1.bf16.msra.mxu0 %v1409
    %1869 = vmatprep.subr.bf16.mxu0 0
    %1870 = vmatpush1.bf16.msra.mxu0 %v1408
    %1871 = vmatprep.subr.bf16.mxu0 0
    %1872 = vmatpush1.bf16.msra.mxu0 %v1407
    %1873 = vmatprep.subr.bf16.mxu0 0
    %1874 = vmatpush1.bf16.msra.mxu0 %v1406
    %1875 = vmatprep.subr.bf16.mxu0 0
    %1876 = vmatpush1.bf16.msra.mxu0 %v1405
    %1877 = vmatprep.subr.bf16.mxu0 0
    %1878 = vmatpush1.bf16.msra.mxu0 %v1404
    %1879 = vmatprep.subr.bf16.mxu0 0
    %1880 = vmatpush2.bf16.msra.mxu0 %v1419
    %1881 = vmatprep.subr.bf16.mxu0 0
    %1882 = vmatpush2.bf16.msra.mxu0 %v1418
    %1883 = vmatprep.subr.bf16.mxu0 0
    %1884 = vmatpush2.bf16.msra.mxu0 %v1417
    %1885 = vmatprep.subr.bf16.mxu0 0
    %1886 = vmatpush2.bf16.msra.mxu0 %v1416
    %1887 = vmatprep.subr.bf16.mxu0 0
    %1888 = vmatpush2.bf16.msra.mxu0 %v1415
    %1889 = vmatprep.subr.bf16.mxu0 0
    %1890 = vmatpush2.bf16.msra.mxu0 %v1414
    %1891 = vmatprep.subr.bf16.mxu0 0
    %1892 = vmatpush2.bf16.msra.mxu0 %v1413
    %1893 = vmatprep.subr.bf16.mxu0 0
    %1894 = vmatpush2.bf16.msra.mxu0 %v1412
    %1895 = vmatprep.mubr.bf16.mxu0 %v547
    %1896 = vmatmul.mubr.bf16.gmra.mxu0 %v546
    %v1897 = vpop.f32.mrf.mxu0
    %v1898 = vadd.f32 %v1857, %v1897
    %v1899 = vpop.f32.mrf.mxu0
    %v1900 = vpop.f32.mrf.mxu0
    %v1901 = vadd.f32 %v1860, %v1900
    %v1902 = vpop.f32.mrf.mxu0
    %1903 = vdwg.mxu0
    %1904 = vmatprep.subr.bf16.mxu0 0
    %1905 = vmatpush1.bf16.msra.mxu0 %v1427
    %1906 = vmatprep.subr.bf16.mxu0 0
    %1907 = vmatpush1.bf16.msra.mxu0 %v1426
    %1908 = vmatprep.subr.bf16.mxu0 0
    %1909 = vmatpush1.bf16.msra.mxu0 %v1425
    %1910 = vmatprep.subr.bf16.mxu0 0
    %1911 = vmatpush1.bf16.msra.mxu0 %v1424
    %1912 = vmatprep.subr.bf16.mxu0 0
    %1913 = vmatpush1.bf16.msra.mxu0 %v1423
    %1914 = vmatprep.subr.bf16.mxu0 0
    %1915 = vmatpush1.bf16.msra.mxu0 %v1422
    %1916 = vmatprep.subr.bf16.mxu0 0
    %1917 = vmatpush1.bf16.msra.mxu0 %v1421
    %1918 = vmatprep.subr.bf16.mxu0 0
    %1919 = vmatpush1.bf16.msra.mxu0 %v1420
    %1920 = vmatprep.subr.bf16.mxu0 0
    %1921 = vmatpush2.bf16.msra.mxu0 %v1435
    %1922 = vmatprep.subr.bf16.mxu0 0
    %1923 = vmatpush2.bf16.msra.mxu0 %v1434
    %1924 = vmatprep.subr.bf16.mxu0 0
    %1925 = vmatpush2.bf16.msra.mxu0 %v1433
    %1926 = vmatprep.subr.bf16.mxu0 0
    %1927 = vmatpush2.bf16.msra.mxu0 %v1432
    %1928 = vmatprep.subr.bf16.mxu0 0
    %1929 = vmatpush2.bf16.msra.mxu0 %v1431
    %1930 = vmatprep.subr.bf16.mxu0 0
    %1931 = vmatpush2.bf16.msra.mxu0 %v1430
    %1932 = vmatprep.subr.bf16.mxu0 0
    %1933 = vmatpush2.bf16.msra.mxu0 %v1429
    %1934 = vmatprep.subr.bf16.mxu0 0
    %1935 = vmatpush2.bf16.msra.mxu0 %v1428
    %1936 = vmatprep.mubr.bf16.mxu0 %v549
    %1937 = vmatmul.mubr.bf16.gmra.mxu0 %v548
    %v1938 = vpop.f32.mrf.mxu0
    %v1939 = vadd.f32 %v1898, %v1938
    %v1940 = vpop.f32.mrf.mxu0
    %v1941 = vpop.f32.mrf.mxu0
    %v1942 = vadd.f32 %v1901, %v1941
    %v1943 = vpop.f32.mrf.mxu0
    %1944 = vdwg.mxu0
    %1945 = vmatprep.subr.bf16.mxu0 0
    %1946 = vmatpush1.bf16.msra.mxu0 %v1443
    %1947 = vmatprep.subr.bf16.mxu0 0
    %1948 = vmatpush1.bf16.msra.mxu0 %v1442
    %1949 = vmatprep.subr.bf16.mxu0 0
    %1950 = vmatpush1.bf16.msra.mxu0 %v1441
    %1951 = vmatprep.subr.bf16.mxu0 0
    %1952 = vmatpush1.bf16.msra.mxu0 %v1440
    %1953 = vmatprep.subr.bf16.mxu0 0
    %1954 = vmatpush1.bf16.msra.mxu0 %v1439
    %1955 = vmatprep.subr.bf16.mxu0 0
    %1956 = vmatpush1.bf16.msra.mxu0 %v1438
    %1957 = vmatprep.subr.bf16.mxu0 0
    %1958 = vmatpush1.bf16.msra.mxu0 %v1437
    %1959 = vmatprep.subr.bf16.mxu0 0
    %1960 = vmatpush1.bf16.msra.mxu0 %v1436
    %1961 = vmatprep.subr.bf16.mxu0 0
    %1962 = vmatpush2.bf16.msra.mxu0 %v1451
    %1963 = vmatprep.subr.bf16.mxu0 0
    %1964 = vmatpush2.bf16.msra.mxu0 %v1450
    %1965 = vmatprep.subr.bf16.mxu0 0
    %1966 = vmatpush2.bf16.msra.mxu0 %v1449
    %1967 = vmatprep.subr.bf16.mxu0 0
    %1968 = vmatpush2.bf16.msra.mxu0 %v1448
    %1969 = vmatprep.subr.bf16.mxu0 0
    %1970 = vmatpush2.bf16.msra.mxu0 %v1447
    %1971 = vmatprep.subr.bf16.mxu0 0
    %1972 = vmatpush2.bf16.msra.mxu0 %v1446
    %1973 = vmatprep.subr.bf16.mxu0 0
    %1974 = vmatpush2.bf16.msra.mxu0 %v1445
    %1975 = vmatprep.subr.bf16.mxu0 0
    %1976 = vmatpush2.bf16.msra.mxu0 %v1444
    %1977 = vmatprep.mubr.bf16.mxu0 %v551
    %1978 = vmatmul.mubr.bf16.gmra.mxu0 %v550
    %v1979 = vpop.f32.mrf.mxu0
    %v1980 = vadd.f32 %v1939, %v1979
    %v1981 = vpop.f32.mrf.mxu0
    %v1982 = vpop.f32.mrf.mxu0
    %v1983 = vadd.f32 %v1942, %v1982
    %v1984 = vpop.f32.mrf.mxu0
    %1985 = vdwg.mxu0
    %1986 = vmatprep.subr.bf16.mxu0 0
    %1987 = vmatpush1.bf16.msra.mxu0 %v1459
    %1988 = vmatprep.subr.bf16.mxu0 0
    %1989 = vmatpush1.bf16.msra.mxu0 %v1458
    %1990 = vmatprep.subr.bf16.mxu0 0
    %1991 = vmatpush1.bf16.msra.mxu0 %v1457
    %1992 = vmatprep.subr.bf16.mxu0 0
    %1993 = vmatpush1.bf16.msra.mxu0 %v1456
    %1994 = vmatprep.subr.bf16.mxu0 0
    %1995 = vmatpush1.bf16.msra.mxu0 %v1455
    %1996 = vmatprep.subr.bf16.mxu0 0
    %1997 = vmatpush1.bf16.msra.mxu0 %v1454
    %1998 = vmatprep.subr.bf16.mxu0 0
    %1999 = vmatpush1.bf16.msra.mxu0 %v1453
    %2000 = vmatprep.subr.bf16.mxu0 0
    %2001 = vmatpush1.bf16.msra.mxu0 %v1452
    %2002 = vmatprep.subr.bf16.mxu0 0
    %2003 = vmatpush2.bf16.msra.mxu0 %v1467
    %2004 = vmatprep.subr.bf16.mxu0 0
    %2005 = vmatpush2.bf16.msra.mxu0 %v1466
    %2006 = vmatprep.subr.bf16.mxu0 0
    %2007 = vmatpush2.bf16.msra.mxu0 %v1465
    %2008 = vmatprep.subr.bf16.mxu0 0
    %2009 = vmatpush2.bf16.msra.mxu0 %v1464
    %2010 = vmatprep.subr.bf16.mxu0 0
    %2011 = vmatpush2.bf16.msra.mxu0 %v1463
    %2012 = vmatprep.subr.bf16.mxu0 0
    %2013 = vmatpush2.bf16.msra.mxu0 %v1462
    %2014 = vmatprep.subr.bf16.mxu0 0
    %2015 = vmatpush2.bf16.msra.mxu0 %v1461
    %2016 = vmatprep.subr.bf16.mxu0 0
    %2017 = vmatpush2.bf16.msra.mxu0 %v1460
    %2018 = vmatprep.mubr.bf16.mxu0 %v553
    %2019 = vmatmul.mubr.bf16.gmra.mxu0 %v552
    %v2020 = vpop.f32.mrf.mxu0
    %v2021 = vadd.f32 %v1980, %v2020
    %v2022 = vpop.f32.mrf.mxu0
    %v2023 = vpop.f32.mrf.mxu0
    %v2024 = vadd.f32 %v1983, %v2023
    %v2025 = vpop.f32.mrf.mxu0
    %2026 = vdwg.mxu0
    %2027 = vmatprep.subr.bf16.mxu0 0
    %2028 = vmatpush1.bf16.msra.mxu0 %v1475
    %2029 = vmatprep.subr.bf16.mxu0 0
    %2030 = vmatpush1.bf16.msra.mxu0 %v1474
    %2031 = vmatprep.subr.bf16.mxu0 0
    %2032 = vmatpush1.bf16.msra.mxu0 %v1473
    %2033 = vmatprep.subr.bf16.mxu0 0
    %2034 = vmatpush1.bf16.msra.mxu0 %v1472
    %2035 = vmatprep.subr.bf16.mxu0 0
    %2036 = vmatpush1.bf16.msra.mxu0 %v1471
    %2037 = vmatprep.subr.bf16.mxu0 0
    %2038 = vmatpush1.bf16.msra.mxu0 %v1470
    %2039 = vmatprep.subr.bf16.mxu0 0
    %2040 = vmatpush1.bf16.msra.mxu0 %v1469
    %2041 = vmatprep.subr.bf16.mxu0 0
    %2042 = vmatpush1.bf16.msra.mxu0 %v1468
    %2043 = vmatprep.subr.bf16.mxu0 0
    %2044 = vmatpush2.bf16.msra.mxu0 %v1483
    %2045 = vmatprep.subr.bf16.mxu0 0
    %2046 = vmatpush2.bf16.msra.mxu0 %v1482
    %2047 = vmatprep.subr.bf16.mxu0 0
    %2048 = vmatpush2.bf16.msra.mxu0 %v1481
    %2049 = vmatprep.subr.bf16.mxu0 0
    %2050 = vmatpush2.bf16.msra.mxu0 %v1480
    %2051 = vmatprep.subr.bf16.mxu0 0
    %2052 = vmatpush2.bf16.msra.mxu0 %v1479
    %2053 = vmatprep.subr.bf16.mxu0 0
    %2054 = vmatpush2.bf16.msra.mxu0 %v1478
    %2055 = vmatprep.subr.bf16.mxu0 0
    %2056 = vmatpush2.bf16.msra.mxu0 %v1477
    %2057 = vmatprep.subr.bf16.mxu0 0
    %2058 = vmatpush2.bf16.msra.mxu0 %v1476
    %2059 = vmatprep.mubr.bf16.mxu0 %v555
    %2060 = vmatmul.mubr.bf16.gmra.mxu0 %v554
    %v2061 = vpop.f32.mrf.mxu0
    %v2062 = vadd.f32 %v2021, %v2061
    %v2063 = vpop.f32.mrf.mxu0
    %v2064 = vpop.f32.mrf.mxu0
    %v2065 = vadd.f32 %v2024, %v2064
    %v2066 = vpop.f32.mrf.mxu0
    %2067 = vdwg.mxu0
    %2068 = vmatprep.subr.bf16.mxu0 0
    %2069 = vmatpush1.bf16.msra.mxu0 %v1491
    %2070 = vmatprep.subr.bf16.mxu0 0
    %2071 = vmatpush1.bf16.msra.mxu0 %v1490
    %2072 = vmatprep.subr.bf16.mxu0 0
    %2073 = vmatpush1.bf16.msra.mxu0 %v1489
    %2074 = vmatprep.subr.bf16.mxu0 0
    %2075 = vmatpush1.bf16.msra.mxu0 %v1488
    %2076 = vmatprep.subr.bf16.mxu0 0
    %2077 = vmatpush1.bf16.msra.mxu0 %v1487
    %2078 = vmatprep.subr.bf16.mxu0 0
    %2079 = vmatpush1.bf16.msra.mxu0 %v1486
    %2080 = vmatprep.subr.bf16.mxu0 0
    %2081 = vmatpush1.bf16.msra.mxu0 %v1485
    %2082 = vmatprep.subr.bf16.mxu0 0
    %2083 = vmatpush1.bf16.msra.mxu0 %v1484
    %2084 = vmatprep.subr.bf16.mxu0 0
    %2085 = vmatpush2.bf16.msra.mxu0 %v1499
    %2086 = vmatprep.subr.bf16.mxu0 0
    %2087 = vmatpush2.bf16.msra.mxu0 %v1498
    %2088 = vmatprep.subr.bf16.mxu0 0
    %2089 = vmatpush2.bf16.msra.mxu0 %v1497
    %2090 = vmatprep.subr.bf16.mxu0 0
    %2091 = vmatpush2.bf16.msra.mxu0 %v1496
    %2092 = vmatprep.subr.bf16.mxu0 0
    %2093 = vmatpush2.bf16.msra.mxu0 %v1495
    %2094 = vmatprep.subr.bf16.mxu0 0
    %2095 = vmatpush2.bf16.msra.mxu0 %v1494
    %2096 = vmatprep.subr.bf16.mxu0 0
    %2097 = vmatpush2.bf16.msra.mxu0 %v1493
    %2098 = vmatprep.subr.bf16.mxu0 0
    %2099 = vmatpush2.bf16.msra.mxu0 %v1492
    %2100 = vmatprep.mubr.bf16.mxu0 %v557
    %2101 = vmatmul.mubr.bf16.gmra.mxu0 %v556
    %v2102 = vpop.f32.mrf.mxu0
    %v2103 = vadd.f32 %v2062, %v2102
    %v2104 = vpop.f32.mrf.mxu0
    %v2105 = vpop.f32.mrf.mxu0
    %v2106 = vadd.f32 %v2065, %v2105
    %v2107 = vpop.f32.mrf.mxu0
    %2108 = vdwg.mxu0
    %2109 = vmatprep.subr.bf16.mxu0 0
    %2110 = vmatpush1.bf16.msra.mxu0 %v1507
    %2111 = vmatprep.subr.bf16.mxu0 0
    %2112 = vmatpush1.bf16.msra.mxu0 %v1506
    %2113 = vmatprep.subr.bf16.mxu0 0
    %2114 = vmatpush1.bf16.msra.mxu0 %v1505
    %2115 = vmatprep.subr.bf16.mxu0 0
    %2116 = vmatpush1.bf16.msra.mxu0 %v1504
    %2117 = vmatprep.subr.bf16.mxu0 0
    %2118 = vmatpush1.bf16.msra.mxu0 %v1503
    %2119 = vmatprep.subr.bf16.mxu0 0
    %2120 = vmatpush1.bf16.msra.mxu0 %v1502
    %2121 = vmatprep.subr.bf16.mxu0 0
    %2122 = vmatpush1.bf16.msra.mxu0 %v1501
    %2123 = vmatprep.subr.bf16.mxu0 0
    %2124 = vmatpush1.bf16.msra.mxu0 %v1500
    %2125 = vmatprep.subr.bf16.mxu0 0
    %2126 = vmatpush2.bf16.msra.mxu0 %v1515
    %2127 = vmatprep.subr.bf16.mxu0 0
    %2128 = vmatpush2.bf16.msra.mxu0 %v1514
    %2129 = vmatprep.subr.bf16.mxu0 0
    %2130 = vmatpush2.bf16.msra.mxu0 %v1513
    %2131 = vmatprep.subr.bf16.mxu0 0
    %2132 = vmatpush2.bf16.msra.mxu0 %v1512
    %2133 = vmatprep.subr.bf16.mxu0 0
    %2134 = vmatpush2.bf16.msra.mxu0 %v1511
    %2135 = vmatprep.subr.bf16.mxu0 0
    %2136 = vmatpush2.bf16.msra.mxu0 %v1510
    %2137 = vmatprep.subr.bf16.mxu0 0
    %2138 = vmatpush2.bf16.msra.mxu0 %v1509
    %2139 = vmatprep.subr.bf16.mxu0 0
    %2140 = vmatpush2.bf16.msra.mxu0 %v1508
    %2141 = vmatprep.mubr.bf16.mxu0 %v559
    %2142 = vmatmul.mubr.bf16.gmra.mxu0 %v558
    %v2143 = vpop.f32.mrf.mxu0
    %v2144 = vadd.f32 %v2103, %v2143
    %v2145 = vpop.f32.mrf.mxu0
    %v2146 = vpop.f32.mrf.mxu0
    %v2147 = vadd.f32 %v2106, %v2146
    %v2148 = vpop.f32.mrf.mxu0
    %2149 = vdwg.mxu0
    %2150 = vmatprep.subr.bf16.mxu0 0
    %2151 = vmatpush1.bf16.msra.mxu0 %v1523
    %2152 = vmatprep.subr.bf16.mxu0 0
    %2153 = vmatpush1.bf16.msra.mxu0 %v1522
    %2154 = vmatprep.subr.bf16.mxu0 0
    %2155 = vmatpush1.bf16.msra.mxu0 %v1521
    %2156 = vmatprep.subr.bf16.mxu0 0
    %2157 = vmatpush1.bf16.msra.mxu0 %v1520
    %2158 = vmatprep.subr.bf16.mxu0 0
    %2159 = vmatpush1.bf16.msra.mxu0 %v1519
    %2160 = vmatprep.subr.bf16.mxu0 0
    %2161 = vmatpush1.bf16.msra.mxu0 %v1518
    %2162 = vmatprep.subr.bf16.mxu0 0
    %2163 = vmatpush1.bf16.msra.mxu0 %v1517
    %2164 = vmatprep.subr.bf16.mxu0 0
    %2165 = vmatpush1.bf16.msra.mxu0 %v1516
    %2166 = vmatprep.subr.bf16.mxu0 0
    %2167 = vmatpush2.bf16.msra.mxu0 %v1531
    %2168 = vmatprep.subr.bf16.mxu0 0
    %2169 = vmatpush2.bf16.msra.mxu0 %v1530
    %2170 = vmatprep.subr.bf16.mxu0 0
    %2171 = vmatpush2.bf16.msra.mxu0 %v1529
    %2172 = vmatprep.subr.bf16.mxu0 0
    %2173 = vmatpush2.bf16.msra.mxu0 %v1528
    %2174 = vmatprep.subr.bf16.mxu0 0
    %2175 = vmatpush2.bf16.msra.mxu0 %v1527
    %2176 = vmatprep.subr.bf16.mxu0 0
    %2177 = vmatpush2.bf16.msra.mxu0 %v1526
    %2178 = vmatprep.subr.bf16.mxu0 0
    %2179 = vmatpush2.bf16.msra.mxu0 %v1525
    %2180 = vmatprep.subr.bf16.mxu0 0
    %2181 = vmatpush2.bf16.msra.mxu0 %v1524
    %2182 = vmatprep.mubr.bf16.mxu0 %v561
    %2183 = vmatmul.mubr.bf16.gmra.mxu0 %v560
    %v2184 = vpop.f32.mrf.mxu0
    %v2185 = vadd.f32 %v2144, %v2184
    %v2186 = vpop.f32.mrf.mxu0
    %v2187 = vpop.f32.mrf.mxu0
    %v2188 = vadd.f32 %v2147, %v2187
    %v2189 = vpop.f32.mrf.mxu0
    %2190 = vdwg.mxu0
    %2191 = vmatprep.subr.bf16.mxu0 0
    %2192 = vmatpush1.bf16.msra.mxu0 %v1539
    %2193 = vmatprep.subr.bf16.mxu0 0
    %2194 = vmatpush1.bf16.msra.mxu0 %v1538
    %2195 = vmatprep.subr.bf16.mxu0 0
    %2196 = vmatpush1.bf16.msra.mxu0 %v1537
    %2197 = vmatprep.subr.bf16.mxu0 0
    %2198 = vmatpush1.bf16.msra.mxu0 %v1536
    %2199 = vmatprep.subr.bf16.mxu0 0
    %2200 = vmatpush1.bf16.msra.mxu0 %v1535
    %2201 = vmatprep.subr.bf16.mxu0 0
    %2202 = vmatpush1.bf16.msra.mxu0 %v1534
    %2203 = vmatprep.subr.bf16.mxu0 0
    %2204 = vmatpush1.bf16.msra.mxu0 %v1533
    %2205 = vmatprep.subr.bf16.mxu0 0
    %2206 = vmatpush1.bf16.msra.mxu0 %v1532
    %2207 = vmatprep.subr.bf16.mxu0 0
    %2208 = vmatpush2.bf16.msra.mxu0 %v1547
    %2209 = vmatprep.subr.bf16.mxu0 0
    %2210 = vmatpush2.bf16.msra.mxu0 %v1546
    %2211 = vmatprep.subr.bf16.mxu0 0
    %2212 = vmatpush2.bf16.msra.mxu0 %v1545
    %2213 = vmatprep.subr.bf16.mxu0 0
    %2214 = vmatpush2.bf16.msra.mxu0 %v1544
    %2215 = vmatprep.subr.bf16.mxu0 0
    %2216 = vmatpush2.bf16.msra.mxu0 %v1543
    %2217 = vmatprep.subr.bf16.mxu0 0
    %2218 = vmatpush2.bf16.msra.mxu0 %v1542
    %2219 = vmatprep.subr.bf16.mxu0 0
    %2220 = vmatpush2.bf16.msra.mxu0 %v1541
    %2221 = vmatprep.subr.bf16.mxu0 0
    %2222 = vmatpush2.bf16.msra.mxu0 %v1540
    %2223 = vmatprep.mubr.bf16.mxu0 %v563
    %2224 = vmatmul.mubr.bf16.gmra.mxu0 %v562
    %v2225 = vpop.f32.mrf.mxu0
    %v2226 = vadd.f32 %v2185, %v2225
    %v2227 = vpop.f32.mrf.mxu0
    %v2228 = vpop.f32.mrf.mxu0
    %v2229 = vadd.f32 %v2188, %v2228
    %v2230 = vpop.f32.mrf.mxu0
    %2231 = vdwg.mxu0
    %v2232 = vld [vmem:[%s3] sm:$0xf]
    %v2233 = vld [vmem:[%s3 + $0x4] sm:$0xf]
    %v2234 = vld [vmem:[%s3 + $0x8] sm:$0xf]
    %v2235 = vld [vmem:[%s3 + $0xc] sm:$0xf]
    %v2240 = vunpack.c.l.b16 %v2232
    %v2241 = vunpack.c.l.b16 %v2233
    %v2242 = vunpack.c.l.b16 %v2234
    %v2243 = vunpack.c.l.b16 %v2235
    %v2244 = vpack.c.b16 %v2241, %v2240
    %v2245 = vpack.c.b16 %v2243, %v2242
    %vm2248 = vcmask 261120
    %v2250 = vsel %vm2248, 0, 0
    %2252 = vmatprep.subr.bf16.mxu0 0
    %2253 = vmatpush1.bf16.msra.mxu0 0
    %2254 = vmatprep.subr.bf16.mxu0 0
    %2255 = vmatpush1.bf16.msra.mxu0 0
    %2256 = vmatprep.subr.bf16.mxu0 0
    %2257 = vmatpush1.bf16.msra.mxu0 0
    %2258 = vmatprep.subr.bf16.mxu0 0
    %2259 = vmatpush1.bf16.msra.mxu0 0
    %2260 = vmatprep.subr.bf16.mxu0 0
    %2261 = vmatpush1.bf16.msra.mxu0 0
    %2262 = vmatprep.subr.bf16.mxu0 0
    %2263 = vmatpush1.bf16.msra.mxu0 0
    %2264 = vmatprep.subr.bf16.mxu0 0
    %2265 = vmatpush1.bf16.msra.mxu0 %v2245
    %2266 = vmatprep.subr.bf16.mxu0 0
    %2267 = vmatpush1.bf16.msra.mxu0 %v2244
    %2268 = vmatprep.subr.bf16.mxu0 0
    %2269 = vmatpush2.bf16.msra.mxu0 0
    %2270 = vmatprep.subr.bf16.mxu0 0
    %2271 = vmatpush2.bf16.msra.mxu0 0
    %2272 = vmatprep.subr.bf16.mxu0 0
    %2273 = vmatpush2.bf16.msra.mxu0 0
    %2274 = vmatprep.subr.bf16.mxu0 0
    %2275 = vmatpush2.bf16.msra.mxu0 0
    %2276 = vmatprep.subr.bf16.mxu0 0
    %2277 = vmatpush2.bf16.msra.mxu0 0
    %2278 = vmatprep.subr.bf16.mxu0 0
    %2279 = vmatpush2.bf16.msra.mxu0 0
    %2280 = vmatprep.subr.bf16.mxu0 0
    %2281 = vmatpush2.bf16.msra.mxu0 0
    %2282 = vmatprep.subr.bf16.mxu0 0
    %2283 = vmatpush2.bf16.msra.mxu0 0
    %2284 = vmatprep.mubr.bf16.mxu0 0
    %2285 = vmatmul.mubr.bf16.gmra.mxu0 %v2250
    %v2286 = vpop.f32.mrf.mxu0
    %v2287 = vadd.f32 0.0, %v2286
    %v2288 = vpop.f32.mrf.mxu0
    %v2289 = vpop.f32.mrf.mxu0
    %v2290 = vpop.f32.mrf.mxu0
    %2291 = vdwg.mxu0
    %v2292 = vadd.f32 %v2226, %v2287
    %v2293 = vxor.u32 %v2292, 2147483648
    %v2294 = vmul.f32 %v2293, 1.442695
    %v2295 = vpow.pop %v2294
    %v2296 = vadd.f32 %v2295, 1.0
    %v2297 = vrcp.pop %v2296
    %v2298 = vmul.f32 1.0, %v2297
    %v2299 = vtanh.pop %v2292
    %v2300 = vmul.f32 %v2298, 0.0
    %2302 = vrot.lane.b32.xlu0 %v2299, 64
    %v2303 = vpop.permute.xlu0 %2302
    %v2305 = vmul.f32 %v2298, %v2303
    %2307 = vrot.lane.b32.xlu0 %v2305, 32
    %v2308 = vpop.permute.xlu0 %2307
    %v2310 = vadd.f32 %v2300, %v2308
    %v2311 = vtanh.pop %v2310
    %2313 = vrot.lane.b32.xlu0 %v2311, 64
    %v2314 = vpop.permute.xlu0 %2313
    %v2316 = vmul.f32 %v2298, %v2314
    %v2317 = vpack.c.bf16 %v2316, %v2316
    %2319 = vrot.lane.b32.xlu0 %v2317, 32
    %v2320 = vpop.permute.xlu0 %2319
    %v2322 = vsel %vm2248, %v2320, 0
    %2324 = vmatprep.subr.bf16.mxu0 0
    %2325 = vmatpush1.bf16.msra.mxu0 0
    %2326 = vmatprep.subr.bf16.mxu0 0
    %2327 = vmatpush1.bf16.msra.mxu0 0
    %2328 = vmatprep.subr.bf16.mxu0 0
    %2329 = vmatpush1.bf16.msra.mxu0 0
    %2330 = vmatprep.subr.bf16.mxu0 0
    %2331 = vmatpush1.bf16.msra.mxu0 0
    %2332 = vmatprep.subr.bf16.mxu0 0
    %2333 = vmatpush1.bf16.msra.mxu0 0
    %2334 = vmatprep.subr.bf16.mxu0 0
    %2335 = vmatpush1.bf16.msra.mxu0 0
    %2336 = vmatprep.subr.bf16.mxu0 0
    %2337 = vmatpush1.bf16.msra.mxu0 %v2245
    %2338 = vmatprep.subr.bf16.mxu0 0
    %2339 = vmatpush1.bf16.msra.mxu0 %v2244
    %2340 = vmatprep.subr.bf16.mxu0 0
    %2341 = vmatpush2.bf16.msra.mxu0 0
    %2342 = vmatprep.subr.bf16.mxu0 0
    %2343 = vmatpush2.bf16.msra.mxu0 0
    %2344 = vmatprep.subr.bf16.mxu0 0
    %2345 = vmatpush2.bf16.msra.mxu0 0
    %2346 = vmatprep.subr.bf16.mxu0 0
    %2347 = vmatpush2.bf16.msra.mxu0 0
    %2348 = vmatprep.subr.bf16.mxu0 0
    %2349 = vmatpush2.bf16.msra.mxu0 0
    %2350 = vmatprep.subr.bf16.mxu0 0
    %2351 = vmatpush2.bf16.msra.mxu0 0
    %2352 = vmatprep.subr.bf16.mxu0 0
    %2353 = vmatpush2.bf16.msra.mxu0 0
    %2354 = vmatprep.subr.bf16.mxu0 0
    %2355 = vmatpush2.bf16.msra.mxu0 0
    %2356 = vmatprep.mubr.bf16.mxu0 0
    %2357 = vmatmul.mubr.bf16.gmra.mxu0 %v2322
    %v2358 = vpop.f32.mrf.mxu0
    %v2359 = vadd.f32 0.0, %v2358
    %v2360 = vpop.f32.mrf.mxu0
    %v2361 = vpop.f32.mrf.mxu0
    %v2362 = vpop.f32.mrf.mxu0
    %2363 = vdwg.mxu0
    %v2365 = vrot.slane %v2359, 6
    %v2367 = vadd.f32 %v2226, %v2365
    %v2368 = vxor.u32 %v2367, 2147483648
    %v2369 = vmul.f32 %v2368, 1.442695
    %v2370 = vpow.pop %v2369
    %v2371 = vadd.f32 %v2370, 1.0
    %v2372 = vrcp.pop %v2371
    %v2373 = vmul.f32 1.0, %v2372
    %v2374 = vtanh.pop %v2367
    %v2376 = vrot.slane %v2310, 6
    %v2378 = vmul.f32 %v2373, %v2376
    %2380 = vrot.lane.b32.xlu0 %v2374, 64
    %v2381 = vpop.permute.xlu0 %2380
    %v2383 = vmul.f32 %v2373, %v2381
    %2385 = vrot.lane.b32.xlu0 %v2383, 32
    %v2386 = vpop.permute.xlu0 %2385
    %v2388 = vadd.f32 %v2378, %v2386
    %v2389 = vtanh.pop %v2388
    %2391 = vrot.lane.b32.xlu0 %v2389, 64
    %v2392 = vpop.permute.xlu0 %2391
    %v2394 = vmul.f32 %v2373, %v2392
    %v2395 = vpack.c.bf16 %v2394, %v2394
    %v2397 = vrot.slane %v2395, 1
    %2398 = vrot.lane.b32.xlu0 %v2397, 32
    %v2399 = vpop.permute.xlu0 %2398
    %v2401 = vsel %vm2248, %v2399, 0
    %2403 = vmatprep.subr.bf16.mxu0 0
    %2404 = vmatpush1.bf16.msra.mxu0 0
    %2405 = vmatprep.subr.bf16.mxu0 0
    %2406 = vmatpush1.bf16.msra.mxu0 0
    %2407 = vmatprep.subr.bf16.mxu0 0
    %2408 = vmatpush1.bf16.msra.mxu0 0
    %2409 = vmatprep.subr.bf16.mxu0 0
    %2410 = vmatpush1.bf16.msra.mxu0 0
    %2411 = vmatprep.subr.bf16.mxu0 0
    %2412 = vmatpush1.bf16.msra.mxu0 0
    %2413 = vmatprep.subr.bf16.mxu0 0
    %2414 = vmatpush1.bf16.msra.mxu0 0
    %2415 = vmatprep.subr.bf16.mxu0 0
    %2416 = vmatpush1.bf16.msra.mxu0 %v2245
    %2417 = vmatprep.subr.bf16.mxu0 0
    %2418 = vmatpush1.bf16.msra.mxu0 %v2244
    %2419 = vmatprep.subr.bf16.mxu0 0
    %2420 = vmatpush2.bf16.msra.mxu0 0
    %2421 = vmatprep.subr.bf16.mxu0 0
    %2422 = vmatpush2.bf16.msra.mxu0 0
    %2423 = vmatprep.subr.bf16.mxu0 0
    %2424 = vmatpush2.bf16.msra.mxu0 0
    %2425 = vmatprep.subr.bf16.mxu0 0
    %2426 = vmatpush2.bf16.msra.mxu0 0
    %2427 = vmatprep.subr.bf16.mxu0 0
    %2428 = vmatpush2.bf16.msra.mxu0 0
    %2429 = vmatprep.subr.bf16.mxu0 0
    %2430 = vmatpush2.bf16.msra.mxu0 0
    %2431 = vmatprep.subr.bf16.mxu0 0
    %2432 = vmatpush2.bf16.msra.mxu0 0
    %2433 = vmatprep.subr.bf16.mxu0 0
    %2434 = vmatpush2.bf16.msra.mxu0 0
    %2435 = vmatprep.mubr.bf16.mxu0 0
    %2436 = vmatmul.mubr.bf16.gmra.mxu0 %v2401
    %v2437 = vpop.f32.mrf.mxu0
    %v2438 = vadd.f32 0.0, %v2437
    %v2439 = vpop.f32.mrf.mxu0
    %v2440 = vpop.f32.mrf.mxu0
    %v2441 = vpop.f32.mrf.mxu0
    %2442 = vdwg.mxu0
    %v2444 = vrot.slane %v2438, 4
    %v2446 = vadd.f32 %v2226, %v2444
    %v2447 = vxor.u32 %v2446, 2147483648
    %v2448 = vmul.f32 %v2447, 1.442695
    %v2449 = vpow.pop %v2448
    %v2450 = vadd.f32 %v2449, 1.0
    %v2451 = vrcp.pop %v2450
    %v2452 = vmul.f32 1.0, %v2451
    %v2453 = vtanh.pop %v2446
    %v2455 = vrot.slane %v2388, 6
    %v2457 = vmul.f32 %v2452, %v2455
    %2459 = vrot.lane.b32.xlu0 %v2453, 64
    %v2460 = vpop.permute.xlu0 %2459
    %v2462 = vmul.f32 %v2452, %v2460
    %2464 = vrot.lane.b32.xlu0 %v2462, 32
    %v2465 = vpop.permute.xlu0 %2464
    %v2467 = vadd.f32 %v2457, %v2465
    %v2468 = vtanh.pop %v2467
    %2470 = vrot.lane.b32.xlu0 %v2468, 64
    %v2471 = vpop.permute.xlu0 %2470
    %v2473 = vmul.f32 %v2452, %v2471
    %v2474 = vpack.c.bf16 %v2473, %v2473
    %v2476 = vrot.slane %v2474, 2
    %2477 = vrot.lane.b32.xlu0 %v2476, 32
    %v2478 = vpop.permute.xlu0 %2477
    %v2480 = vsel %vm2248, %v2478, 0
    %2482 = vmatprep.subr.bf16.mxu0 0
    %2483 = vmatpush1.bf16.msra.mxu0 0
    %2484 = vmatprep.subr.bf16.mxu0 0
    %2485 = vmatpush1.bf16.msra.mxu0 0
    %2486 = vmatprep.subr.bf16.mxu0 0
    %2487 = vmatpush1.bf16.msra.mxu0 0
    %2488 = vmatprep.subr.bf16.mxu0 0
    %2489 = vmatpush1.bf16.msra.mxu0 0
    %2490 = vmatprep.subr.bf16.mxu0 0
    %2491 = vmatpush1.bf16.msra.mxu0 0
    %2492 = vmatprep.subr.bf16.mxu0 0
    %2493 = vmatpush1.bf16.msra.mxu0 0
    %2494 = vmatprep.subr.bf16.mxu0 0
    %2495 = vmatpush1.bf16.msra.mxu0 %v2245
    %2496 = vmatprep.subr.bf16.mxu0 0
    %2497 = vmatpush1.bf16.msra.mxu0 %v2244
    %2498 = vmatprep.subr.bf16.mxu0 0
    %2499 = vmatpush2.bf16.msra.mxu0 0
    %2500 = vmatprep.subr.bf16.mxu0 0
    %2501 = vmatpush2.bf16.msra.mxu0 0
    %2502 = vmatprep.subr.bf16.mxu0 0
    %2503 = vmatpush2.bf16.msra.mxu0 0
    %2504 = vmatprep.subr.bf16.mxu0 0
    %2505 = vmatpush2.bf16.msra.mxu0 0
    %2506 = vmatprep.subr.bf16.mxu0 0
    %2507 = vmatpush2.bf16.msra.mxu0 0
    %2508 = vmatprep.subr.bf16.mxu0 0
    %2509 = vmatpush2.bf16.msra.mxu0 0
    %2510 = vmatprep.subr.bf16.mxu0 0
    %2511 = vmatpush2.bf16.msra.mxu0 0
    %2512 = vmatprep.subr.bf16.mxu0 0
    %2513 = vmatpush2.bf16.msra.mxu0 0
    %2514 = vmatprep.mubr.bf16.mxu0 0
    %2515 = vmatmul.mubr.bf16.gmra.mxu0 %v2480
    %v2516 = vpop.f32.mrf.mxu0
    %v2517 = vadd.f32 0.0, %v2516
    %v2518 = vpop.f32.mrf.mxu0
    %v2519 = vpop.f32.mrf.mxu0
    %v2520 = vpop.f32.mrf.mxu0
    %2521 = vdwg.mxu0
    %v2523 = vrot.slane %v2517, 2
    %v2525 = vadd.f32 %v2226, %v2523
    %v2526 = vxor.u32 %v2525, 2147483648
    %v2527 = vmul.f32 %v2526, 1.442695
    %v2528 = vpow.pop %v2527
    %v2529 = vadd.f32 %v2528, 1.0
    %v2530 = vrcp.pop %v2529
    %v2531 = vmul.f32 1.0, %v2530
    %v2532 = vtanh.pop %v2525
    %v2534 = vrot.slane %v2467, 6
    %v2536 = vmul.f32 %v2531, %v2534
    %2538 = vrot.lane.b32.xlu0 %v2532, 64
    %v2539 = vpop.permute.xlu0 %2538
    %v2541 = vmul.f32 %v2531, %v2539
    %2543 = vrot.lane.b32.xlu0 %v2541, 32
    %v2544 = vpop.permute.xlu0 %2543
    %v2546 = vadd.f32 %v2536, %v2544
    %v2547 = vtanh.pop %v2546
    %2549 = vrot.lane.b32.xlu0 %v2547, 64
    %v2550 = vpop.permute.xlu0 %2549
    %v2552 = vmul.f32 %v2531, %v2550
    %v2553 = vpack.c.bf16 %v2552, %v2552
    %v2555 = vrot.slane %v2553, 3
    %2556 = vrot.lane.b32.xlu0 %v2555, 32
    %v2557 = vpop.permute.xlu0 %2556
    %v2559 = vsel %vm2248, %v2557, 0
    %2561 = vmatprep.subr.bf16.mxu0 0
    %2562 = vmatpush1.bf16.msra.mxu0 0
    %2563 = vmatprep.subr.bf16.mxu0 0
    %2564 = vmatpush1.bf16.msra.mxu0 0
    %2565 = vmatprep.subr.bf16.mxu0 0
    %2566 = vmatpush1.bf16.msra.mxu0 0
    %2567 = vmatprep.subr.bf16.mxu0 0
    %2568 = vmatpush1.bf16.msra.mxu0 0
    %2569 = vmatprep.subr.bf16.mxu0 0
    %2570 = vmatpush1.bf16.msra.mxu0 0
    %2571 = vmatprep.subr.bf16.mxu0 0
    %2572 = vmatpush1.bf16.msra.mxu0 0
    %2573 = vmatprep.subr.bf16.mxu0 0
    %2574 = vmatpush1.bf16.msra.mxu0 %v2245
    %2575 = vmatprep.subr.bf16.mxu0 0
    %2576 = vmatpush1.bf16.msra.mxu0 %v2244
    %2577 = vmatprep.subr.bf16.mxu0 0
    %2578 = vmatpush2.bf16.msra.mxu0 0
    %2579 = vmatprep.subr.bf16.mxu0 0
    %2580 = vmatpush2.bf16.msra.mxu0 0
    %2581 = vmatprep.subr.bf16.mxu0 0
    %2582 = vmatpush2.bf16.msra.mxu0 0
    %2583 = vmatprep.subr.bf16.mxu0 0
    %2584 = vmatpush2.bf16.msra.mxu0 0
    %2585 = vmatprep.subr.bf16.mxu0 0
    %2586 = vmatpush2.bf16.msra.mxu0 0
    %2587 = vmatprep.subr.bf16.mxu0 0
    %2588 = vmatpush2.bf16.msra.mxu0 0
    %2589 = vmatprep.subr.bf16.mxu0 0
    %2590 = vmatpush2.bf16.msra.mxu0 0
    %2591 = vmatprep.subr.bf16.mxu0 0
    %2592 = vmatpush2.bf16.msra.mxu0 0
    %2593 = vmatprep.mubr.bf16.mxu0 0
    %2594 = vmatmul.mubr.bf16.gmra.mxu0 %v2559
    %v2595 = vpop.f32.mrf.mxu0
    %v2596 = vadd.f32 0.0, %v2595
    %v2597 = vpop.f32.mrf.mxu0
    %v2598 = vpop.f32.mrf.mxu0
    %v2599 = vpop.f32.mrf.mxu0
    %2600 = vdwg.mxu0
    %v2601 = vadd.f32 %v2229, %v2596
    %v2602 = vxor.u32 %v2601, 2147483648
    %v2603 = vmul.f32 %v2602, 1.442695
    %v2604 = vpow.pop %v2603
    %v2605 = vadd.f32 %v2604, 1.0
    %v2606 = vrcp.pop %v2605
    %v2607 = vmul.f32 1.0, %v2606
    %v2608 = vtanh.pop %v2601
    %v2610 = vrot.slane %v2546, 6
    %v2612 = vmul.f32 %v2607, %v2610
    %2614 = vrot.lane.b32.xlu0 %v2608, 64
    %v2615 = vpop.permute.xlu0 %2614
    %v2617 = vmul.f32 %v2607, %v2615
    %2619 = vrot.lane.b32.xlu0 %v2617, 32
    %v2620 = vpop.permute.xlu0 %2619
    %v2622 = vadd.f32 %v2612, %v2620
    %v2623 = vtanh.pop %v2622
    %2625 = vrot.lane.b32.xlu0 %v2623, 64
    %v2626 = vpop.permute.xlu0 %2625
    %v2628 = vmul.f32 %v2607, %v2626
    %v2629 = vpack.c.bf16 %v2628, %v2628
    %2631 = vrot.lane.b32.xlu0 %v2629, 32
    %v2632 = vpop.permute.xlu0 %2631
    %v2634 = vsel %vm2248, %v2632, 0
    %2636 = vmatprep.subr.bf16.mxu0 0
    %2637 = vmatpush1.bf16.msra.mxu0 0
    %2638 = vmatprep.subr.bf16.mxu0 0
    %2639 = vmatpush1.bf16.msra.mxu0 0
    %2640 = vmatprep.subr.bf16.mxu0 0
    %2641 = vmatpush1.bf16.msra.mxu0 0
    %2642 = vmatprep.subr.bf16.mxu0 0
    %2643 = vmatpush1.bf16.msra.mxu0 0
    %2644 = vmatprep.subr.bf16.mxu0 0
    %2645 = vmatpush1.bf16.msra.mxu0 0
    %2646 = vmatprep.subr.bf16.mxu0 0
    %2647 = vmatpush1.bf16.msra.mxu0 0
    %2648 = vmatprep.subr.bf16.mxu0 0
    %2649 = vmatpush1.bf16.msra.mxu0 %v2245
    %2650 = vmatprep.subr.bf16.mxu0 0
    %2651 = vmatpush1.bf16.msra.mxu0 %v2244
    %2652 = vmatprep.subr.bf16.mxu0 0
    %2653 = vmatpush2.bf16.msra.mxu0 0
    %2654 = vmatprep.subr.bf16.mxu0 0
    %2655 = vmatpush2.bf16.msra.mxu0 0
    %2656 = vmatprep.subr.bf16.mxu0 0
    %2657 = vmatpush2.bf16.msra.mxu0 0
    %2658 = vmatprep.subr.bf16.mxu0 0
    %2659 = vmatpush2.bf16.msra.mxu0 0
    %2660 = vmatprep.subr.bf16.mxu0 0
    %2661 = vmatpush2.bf16.msra.mxu0 0
    %2662 = vmatprep.subr.bf16.mxu0 0
    %2663 = vmatpush2.bf16.msra.mxu0 0
    %2664 = vmatprep.subr.bf16.mxu0 0
    %2665 = vmatpush2.bf16.msra.mxu0 0
    %2666 = vmatprep.subr.bf16.mxu0 0
    %2667 = vmatpush2.bf16.msra.mxu0 0
    %2668 = vmatprep.mubr.bf16.mxu0 0
    %2669 = vmatmul.mubr.bf16.gmra.mxu0 %v2634
    %v2670 = vpop.f32.mrf.mxu0
    %v2671 = vadd.f32 0.0, %v2670
    %v2672 = vpop.f32.mrf.mxu0
    %v2673 = vpop.f32.mrf.mxu0
    %v2674 = vpop.f32.mrf.mxu0
    %2675 = vdwg.mxu0
    %v2677 = vrot.slane %v2671, 6
    %v2679 = vadd.f32 %v2229, %v2677
    %v2680 = vxor.u32 %v2679, 2147483648
    %v2681 = vmul.f32 %v2680, 1.442695
    %v2682 = vpow.pop %v2681
    %v2683 = vadd.f32 %v2682, 1.0
    %v2684 = vrcp.pop %v2683
    %v2685 = vmul.f32 1.0, %v2684
    %v2686 = vtanh.pop %v2679
    %v2688 = vrot.slane %v2622, 6
    %v2690 = vmul.f32 %v2685, %v2688
    %2692 = vrot.lane.b32.xlu0 %v2686, 64
    %v2693 = vpop.permute.xlu0 %2692
    %v2695 = vmul.f32 %v2685, %v2693
    %2697 = vrot.lane.b32.xlu0 %v2695, 32
    %v2698 = vpop.permute.xlu0 %2697
    %v2700 = vadd.f32 %v2690, %v2698
    %v2701 = vtanh.pop %v2700
    %2703 = vrot.lane.b32.xlu0 %v2701, 64
    %v2704 = vpop.permute.xlu0 %2703
    %v2706 = vmul.f32 %v2685, %v2704
    %v2707 = vpack.c.bf16 %v2706, %v2706
    %v2709 = vrot.slane %v2707, 1
    %2710 = vrot.lane.b32.xlu0 %v2709, 32
    %v2711 = vpop.permute.xlu0 %2710
    %v2713 = vsel %vm2248, %v2711, 0
    %2715 = vmatprep.subr.bf16.mxu0 0
    %2716 = vmatpush1.bf16.msra.mxu0 0
    %2717 = vmatprep.subr.bf16.mxu0 0
    %2718 = vmatpush1.bf16.msra.mxu0 0
    %2719 = vmatprep.subr.bf16.mxu0 0
    %2720 = vmatpush1.bf16.msra.mxu0 0
    %2721 = vmatprep.subr.bf16.mxu0 0
    %2722 = vmatpush1.bf16.msra.mxu0 0
    %2723 = vmatprep.subr.bf16.mxu0 0
    %2724 = vmatpush1.bf16.msra.mxu0 0
    %2725 = vmatprep.subr.bf16.mxu0 0
    %2726 = vmatpush1.bf16.msra.mxu0 0
    %2727 = vmatprep.subr.bf16.mxu0 0
    %2728 = vmatpush1.bf16.msra.mxu0 %v2245
    %2729 = vmatprep.subr.bf16.mxu0 0
    %2730 = vmatpush1.bf16.msra.mxu0 %v2244
    %2731 = vmatprep.subr.bf16.mxu0 0
    %2732 = vmatpush2.bf16.msra.mxu0 0
    %2733 = vmatprep.subr.bf16.mxu0 0
    %2734 = vmatpush2.bf16.msra.mxu0 0
    %2735 = vmatprep.subr.bf16.mxu0 0
    %2736 = vmatpush2.bf16.msra.mxu0 0
    %2737 = vmatprep.subr.bf16.mxu0 0
    %2738 = vmatpush2.bf16.msra.mxu0 0
    %2739 = vmatprep.subr.bf16.mxu0 0
    %2740 = vmatpush2.bf16.msra.mxu0 0
    %2741 = vmatprep.subr.bf16.mxu0 0
    %2742 = vmatpush2.bf16.msra.mxu0 0
    %2743 = vmatprep.subr.bf16.mxu0 0
    %2744 = vmatpush2.bf16.msra.mxu0 0
    %2745 = vmatprep.subr.bf16.mxu0 0
    %2746 = vmatpush2.bf16.msra.mxu0 0
    %2747 = vmatprep.mubr.bf16.mxu0 0
    %2748 = vmatmul.mubr.bf16.gmra.mxu0 %v2713
    %v2749 = vpop.f32.mrf.mxu0
    %v2750 = vadd.f32 0.0, %v2749
    %v2751 = vpop.f32.mrf.mxu0
    %v2752 = vpop.f32.mrf.mxu0
    %v2753 = vpop.f32.mrf.mxu0
    %2754 = vdwg.mxu0
    %v2756 = vrot.slane %v2750, 4
    %v2758 = vadd.f32 %v2229, %v2756
    %v2759 = vxor.u32 %v2758, 2147483648
    %v2760 = vmul.f32 %v2759, 1.442695
    %v2761 = vpow.pop %v2760
    %v2762 = vadd.f32 %v2761, 1.0
    %v2763 = vrcp.pop %v2762
    %v2764 = vmul.f32 1.0, %v2763
    %v2765 = vtanh.pop %v2758
    %v2767 = vrot.slane %v2700, 6
    %v2769 = vmul.f32 %v2764, %v2767
    %2771 = vrot.lane.b32.xlu0 %v2765, 64
    %v2772 = vpop.permute.xlu0 %2771
    %v2774 = vmul.f32 %v2764, %v2772
    %2776 = vrot.lane.b32.xlu0 %v2774, 32
    %v2777 = vpop.permute.xlu0 %2776
    %v2779 = vadd.f32 %v2769, %v2777
    %v2780 = vtanh.pop %v2779
    %2782 = vrot.lane.b32.xlu0 %v2780, 64
    %v2783 = vpop.permute.xlu0 %2782
    %v2785 = vmul.f32 %v2764, %v2783
    %v2786 = vpack.c.bf16 %v2785, %v2785
    %v2788 = vrot.slane %v2786, 2
    %2789 = vrot.lane.b32.xlu0 %v2788, 32
    %v2790 = vpop.permute.xlu0 %2789
    %v2792 = vsel %vm2248, %v2790, 0
    %2794 = vmatprep.subr.bf16.mxu0 0
    %2795 = vmatpush1.bf16.msra.mxu0 0
    %2796 = vmatprep.subr.bf16.mxu0 0
    %2797 = vmatpush1.bf16.msra.mxu0 0
    %2798 = vmatprep.subr.bf16.mxu0 0
    %2799 = vmatpush1.bf16.msra.mxu0 0
    %2800 = vmatprep.subr.bf16.mxu0 0
    %2801 = vmatpush1.bf16.msra.mxu0 0
    %2802 = vmatprep.subr.bf16.mxu0 0
    %2803 = vmatpush1.bf16.msra.mxu0 0
    %2804 = vmatprep.subr.bf16.mxu0 0
    %2805 = vmatpush1.bf16.msra.mxu0 0
    %2806 = vmatprep.subr.bf16.mxu0 0
    %2807 = vmatpush1.bf16.msra.mxu0 %v2245
    %2808 = vmatprep.subr.bf16.mxu0 0
    %2809 = vmatpush1.bf16.msra.mxu0 %v2244
    %2810 = vmatprep.subr.bf16.mxu0 0
    %2811 = vmatpush2.bf16.msra.mxu0 0
    %2812 = vmatprep.subr.bf16.mxu0 0
    %2813 = vmatpush2.bf16.msra.mxu0 0
    %2814 = vmatprep.subr.bf16.mxu0 0
    %2815 = vmatpush2.bf16.msra.mxu0 0
    %2816 = vmatprep.subr.bf16.mxu0 0
    %2817 = vmatpush2.bf16.msra.mxu0 0
    %2818 = vmatprep.subr.bf16.mxu0 0
    %2819 = vmatpush2.bf16.msra.mxu0 0
    %2820 = vmatprep.subr.bf16.mxu0 0
    %2821 = vmatpush2.bf16.msra.mxu0 0
    %2822 = vmatprep.subr.bf16.mxu0 0
    %2823 = vmatpush2.bf16.msra.mxu0 0
    %2824 = vmatprep.subr.bf16.mxu0 0
    %2825 = vmatpush2.bf16.msra.mxu0 0
    %2826 = vmatprep.mubr.bf16.mxu0 0
    %2827 = vmatmul.mubr.bf16.gmra.mxu0 %v2792
    %v2828 = vpop.f32.mrf.mxu0
    %v2829 = vadd.f32 0.0, %v2828
    %v2830 = vpop.f32.mrf.mxu0
    %v2831 = vpop.f32.mrf.mxu0
    %v2832 = vpop.f32.mrf.mxu0
    %2833 = vdwg.mxu0
    %v2835 = vrot.slane %v2829, 2
    %v2837 = vadd.f32 %v2229, %v2835
    %v2838 = vxor.u32 %v2837, 2147483648
    %v2839 = vmul.f32 %v2838, 1.442695
    %v2840 = vpow.pop %v2839
    %v2841 = vadd.f32 %v2840, 1.0
    %v2842 = vrcp.pop %v2841
    %v2843 = vmul.f32 1.0, %v2842
    %v2844 = vtanh.pop %v2837
    %v2846 = vrot.slane %v2779, 6
    %v2848 = vmul.f32 %v2843, %v2846
    %2850 = vrot.lane.b32.xlu0 %v2844, 64
    %v2851 = vpop.permute.xlu0 %2850
    %v2853 = vmul.f32 %v2843, %v2851
    %2855 = vrot.lane.b32.xlu0 %v2853, 32
    %v2856 = vpop.permute.xlu0 %2855
    %v2858 = vadd.f32 %v2848, %v2856
    %v2859 = vtanh.pop %v2858
    %2861 = vrot.lane.b32.xlu0 %v2859, 64
    %v2862 = vpop.permute.xlu0 %2861
    %v2864 = vmul.f32 %v2843, %v2862
    %v2865 = vld [vmem:[%s4] sm:$0xff]
    %v2866 = vld [vmem:[%s4 + $0x8] sm:$0xff]
    %v2867 = vld [vmem:[%s4 + $0x10] sm:$0xff]
    %v2868 = vld [vmem:[%s4 + $0x18] sm:$0xff]
    %v2870 = vrot.slane %v2864, 1
    %v2872 = vsub.f32 %v2864, %v2870
    %v2873 = vand.u32 2147483647, %v2872
    %v2874 = vld [vmem:[%s4 + $0x20] sm:$0xff]
    %v2875 = vld [vmem:[%s4 + $0x28] sm:$0xff]
    %v2876 = vld [vmem:[%s4 + $0x30] sm:$0xff]
    %v2877 = vld [vmem:[%s4 + $0x38] sm:$0xff]
    %v2879 = vrot.slane %v2873, 6
    %2880 = vrot.lane.b32.xlu0 %v2879, 32
    %v2881 = vpop.permute.xlu0 %2880
    %v2882 = vsel %vm2248, %v2881, 0
    %2884 = vmatprep.subr.mxu0 0.0
    %2885 = vmatpush1.msra.mxu0 0.0
    %2886 = vmatprep.subr.mxu0 0.0
    %2887 = vmatpush1.msra.mxu0 0.0
    %2888 = vmatprep.subr.mxu0 0.0
    %2889 = vmatpush1.msra.mxu0 0.0
    %2890 = vmatprep.subr.mxu0 0.0
    %2891 = vmatpush1.msra.mxu0 0.0
    %2892 = vmatprep.subr.mxu0 0.0
    %2893 = vmatpush1.msra.mxu0 0.0
    %2894 = vmatprep.subr.mxu0 0.0
    %2895 = vmatpush1.msra.mxu0 0.0
    %2896 = vmatprep.subr.mxu0 0.0
    %2897 = vmatpush1.msra.mxu0 0.0
    %2898 = vmatprep.subr.mxu0 0.0
    %2899 = vmatpush1.msra.mxu0 0.0
    %2900 = vmatprep.subr.mxu0 0.0
    %2901 = vmatpush1.msra.mxu0 0.0
    %2902 = vmatprep.subr.mxu0 0.0
    %2903 = vmatpush1.msra.mxu0 0.0
    %2904 = vmatprep.subr.mxu0 0.0
    %2905 = vmatpush1.msra.mxu0 0.0
    %2906 = vmatprep.subr.mxu0 0.0
    %2907 = vmatpush1.msra.mxu0 0.0
    %2908 = vmatprep.subr.mxu0 0.0
    %2909 = vmatpush1.msra.mxu0 %v2877
    %2910 = vmatprep.subr.mxu0 0.0
    %2911 = vmatpush1.msra.mxu0 %v2876
    %2912 = vmatprep.subr.mxu0 0.0
    %2913 = vmatpush1.msra.mxu0 %v2875
    %2914 = vmatprep.subr.mxu0 0.0
    %2915 = vmatpush1.msra.mxu0 %v2874
    %2916 = vmatprep.subr.mxu0 0.0
    %2917 = vmatpush2.msra.mxu0 0.0
    %2918 = vmatprep.subr.mxu0 0.0
    %2919 = vmatpush2.msra.mxu0 0.0
    %2920 = vmatprep.subr.mxu0 0.0
    %2921 = vmatpush2.msra.mxu0 0.0
    %2922 = vmatprep.subr.mxu0 0.0
    %2923 = vmatpush2.msra.mxu0 0.0
    %2924 = vmatprep.subr.mxu0 0.0
    %2925 = vmatpush2.msra.mxu0 0.0
    %2926 = vmatprep.subr.mxu0 0.0
    %2927 = vmatpush2.msra.mxu0 0.0
    %2928 = vmatprep.subr.mxu0 0.0
    %2929 = vmatpush2.msra.mxu0 0.0
    %2930 = vmatprep.subr.mxu0 0.0
    %2931 = vmatpush2.msra.mxu0 0.0
    %2932 = vmatprep.subr.mxu0 0.0
    %2933 = vmatpush2.msra.mxu0 0.0
    %2934 = vmatprep.subr.mxu0 0.0
    %2935 = vmatpush2.msra.mxu0 0.0
    %2936 = vmatprep.subr.mxu0 0.0
    %2937 = vmatpush2.msra.mxu0 0.0
    %2938 = vmatprep.subr.mxu0 0.0
    %2939 = vmatpush2.msra.mxu0 0.0
    %2940 = vmatprep.subr.mxu0 0.0
    %2941 = vmatpush2.msra.mxu0 0.0
    %2942 = vmatprep.subr.mxu0 0.0
    %2943 = vmatpush2.msra.mxu0 0.0
    %2944 = vmatprep.subr.mxu0 0.0
    %2945 = vmatpush2.msra.mxu0 0.0
    %2946 = vmatprep.subr.mxu0 0.0
    %2947 = vmatpush2.msra.mxu0 0.0
    %2948 = vmatprep.mubr.f32.mxu0 0.0
    %2949 = vmatmul.mubr.f32.gmra.mxu0 %v2882
    %v2950 = vpop.f32.mrf.mxu0
    %v2951 = vadd.f32 0.0, %v2950
    %v2952 = vpop.f32.mrf.mxu0
    %2953 = vdwg.mxu0
    %v2954 = vrot.slane %v2864, 6
    %2955 = vrot.lane.b32.xlu0 %v2954, 32
    %v2956 = vpop.permute.xlu0 %2955
    %v2957 = vsel %vm2248, %v2956, 0
    %2959 = vmatprep.subr.mxu0 0.0
    %2960 = vmatpush1.msra.mxu0 0.0
    %2961 = vmatprep.subr.mxu0 0.0
    %2962 = vmatpush1.msra.mxu0 0.0
    %2963 = vmatprep.subr.mxu0 0.0
    %2964 = vmatpush1.msra.mxu0 0.0
    %2965 = vmatprep.subr.mxu0 0.0
    %2966 = vmatpush1.msra.mxu0 0.0
    %2967 = vmatprep.subr.mxu0 0.0
    %2968 = vmatpush1.msra.mxu0 0.0
    %2969 = vmatprep.subr.mxu0 0.0
    %2970 = vmatpush1.msra.mxu0 0.0
    %2971 = vmatprep.subr.mxu0 0.0
    %2972 = vmatpush1.msra.mxu0 0.0
    %2973 = vmatprep.subr.mxu0 0.0
    %2974 = vmatpush1.msra.mxu0 0.0
    %2975 = vmatprep.subr.mxu0 0.0
    %2976 = vmatpush1.msra.mxu0 0.0
    %2977 = vmatprep.subr.mxu0 0.0
    %2978 = vmatpush1.msra.mxu0 0.0
    %2979 = vmatprep.subr.mxu0 0.0
    %2980 = vmatpush1.msra.mxu0 0.0
    %2981 = vmatprep.subr.mxu0 0.0
    %2982 = vmatpush1.msra.mxu0 0.0
    %2983 = vmatprep.subr.mxu0 0.0
    %2984 = vmatpush1.msra.mxu0 %v2868
    %2985 = vmatprep.subr.mxu0 0.0
    %2986 = vmatpush1.msra.mxu0 %v2867
    %2987 = vmatprep.subr.mxu0 0.0
    %2988 = vmatpush1.msra.mxu0 %v2866
    %2989 = vmatprep.subr.mxu0 0.0
    %2990 = vmatpush1.msra.mxu0 %v2865
    %2991 = vmatprep.subr.mxu0 0.0
    %2992 = vmatpush2.msra.mxu0 0.0
    %2993 = vmatprep.subr.mxu0 0.0
    %2994 = vmatpush2.msra.mxu0 0.0
    %2995 = vmatprep.subr.mxu0 0.0
    %2996 = vmatpush2.msra.mxu0 0.0
    %2997 = vmatprep.subr.mxu0 0.0
    %2998 = vmatpush2.msra.mxu0 0.0
    %2999 = vmatprep.subr.mxu0 0.0
    %3000 = vmatpush2.msra.mxu0 0.0
    %3001 = vmatprep.subr.mxu0 0.0
    %3002 = vmatpush2.msra.mxu0 0.0
    %3003 = vmatprep.subr.mxu0 0.0
    %3004 = vmatpush2.msra.mxu0 0.0
    %3005 = vmatprep.subr.mxu0 0.0
    %3006 = vmatpush2.msra.mxu0 0.0
    %3007 = vmatprep.subr.mxu0 0.0
    %3008 = vmatpush2.msra.mxu0 0.0
    %3009 = vmatprep.subr.mxu0 0.0
    %3010 = vmatpush2.msra.mxu0 0.0
    %3011 = vmatprep.subr.mxu0 0.0
    %3012 = vmatpush2.msra.mxu0 0.0
    %3013 = vmatprep.subr.mxu0 0.0
    %3014 = vmatpush2.msra.mxu0 0.0
    %3015 = vmatprep.subr.mxu0 0.0
    %3016 = vmatpush2.msra.mxu0 0.0
    %3017 = vmatprep.subr.mxu0 0.0
    %3018 = vmatpush2.msra.mxu0 0.0
    %3019 = vmatprep.subr.mxu0 0.0
    %3020 = vmatpush2.msra.mxu0 0.0
    %3021 = vmatprep.subr.mxu0 0.0
    %3022 = vmatpush2.msra.mxu0 0.0
    %3023 = vmatprep.mubr.f32.mxu0 0.0
    %3024 = vmatmul.mubr.f32.gmra.mxu0 %v2957
    %v3025 = vpop.f32.mrf.mxu0
    %v3026 = vadd.f32 %v2951, %v3025
    %v3027 = vpop.f32.mrf.mxu0
    %3028 = vdwg.mxu0
    %v3029 = vld [vmem:[%s4 + $0x40] sm:$0xff]
    %v3030 = vld [vmem:[%s4 + $0x48] sm:$0xff]
    %v3031 = vld [vmem:[%s4 + $0x50] sm:$0xff]
    %v3032 = vld [vmem:[%s4 + $0x58] sm:$0xff]
    %v3033 = vrot.slane %v2864, 7
    %3034 = vrot.lane.b32.xlu0 %v3033, 32
    %v3035 = vpop.permute.xlu0 %3034
    %v3036 = vsel %vm2248, %v3035, 0
    %3038 = vmatprep.subr.mxu0 0.0
    %3039 = vmatpush1.msra.mxu0 0.0
    %3040 = vmatprep.subr.mxu0 0.0
    %3041 = vmatpush1.msra.mxu0 0.0
    %3042 = vmatprep.subr.mxu0 0.0
    %3043 = vmatpush1.msra.mxu0 0.0
    %3044 = vmatprep.subr.mxu0 0.0
    %3045 = vmatpush1.msra.mxu0 0.0
    %3046 = vmatprep.subr.mxu0 0.0
    %3047 = vmatpush1.msra.mxu0 0.0
    %3048 = vmatprep.subr.mxu0 0.0
    %3049 = vmatpush1.msra.mxu0 0.0
    %3050 = vmatprep.subr.mxu0 0.0
    %3051 = vmatpush1.msra.mxu0 0.0
    %3052 = vmatprep.subr.mxu0 0.0
    %3053 = vmatpush1.msra.mxu0 0.0
    %3054 = vmatprep.subr.mxu0 0.0
    %3055 = vmatpush1.msra.mxu0 0.0
    %3056 = vmatprep.subr.mxu0 0.0
    %3057 = vmatpush1.msra.mxu0 0.0
    %3058 = vmatprep.subr.mxu0 0.0
    %3059 = vmatpush1.msra.mxu0 0.0
    %3060 = vmatprep.subr.mxu0 0.0
    %3061 = vmatpush1.msra.mxu0 0.0
    %3062 = vmatprep.subr.mxu0 0.0
    %3063 = vmatpush1.msra.mxu0 %v3032
    %3064 = vmatprep.subr.mxu0 0.0
    %3065 = vmatpush1.msra.mxu0 %v3031
    %3066 = vmatprep.subr.mxu0 0.0
    %3067 = vmatpush1.msra.mxu0 %v3030
    %3068 = vmatprep.subr.mxu0 0.0
    %3069 = vmatpush1.msra.mxu0 %v3029
    %3070 = vmatprep.subr.mxu0 0.0
    %3071 = vmatpush2.msra.mxu0 0.0
    %3072 = vmatprep.subr.mxu0 0.0
    %3073 = vmatpush2.msra.mxu0 0.0
    %3074 = vmatprep.subr.mxu0 0.0
    %3075 = vmatpush2.msra.mxu0 0.0
    %3076 = vmatprep.subr.mxu0 0.0
    %3077 = vmatpush2.msra.mxu0 0.0
    %3078 = vmatprep.subr.mxu0 0.0
    %3079 = vmatpush2.msra.mxu0 0.0
    %3080 = vmatprep.subr.mxu0 0.0
    %3081 = vmatpush2.msra.mxu0 0.0
    %3082 = vmatprep.subr.mxu0 0.0
    %3083 = vmatpush2.msra.mxu0 0.0
    %3084 = vmatprep.subr.mxu0 0.0
    %3085 = vmatpush2.msra.mxu0 0.0
    %3086 = vmatprep.subr.mxu0 0.0
    %3087 = vmatpush2.msra.mxu0 0.0
    %3088 = vmatprep.subr.mxu0 0.0
    %3089 = vmatpush2.msra.mxu0 0.0
    %3090 = vmatprep.subr.mxu0 0.0
    %3091 = vmatpush2.msra.mxu0 0.0
    %3092 = vmatprep.subr.mxu0 0.0
    %3093 = vmatpush2.msra.mxu0 0.0
    %3094 = vmatprep.subr.mxu0 0.0
    %3095 = vmatpush2.msra.mxu0 0.0
    %3096 = vmatprep.subr.mxu0 0.0
    %3097 = vmatpush2.msra.mxu0 0.0
    %3098 = vmatprep.subr.mxu0 0.0
    %3099 = vmatpush2.msra.mxu0 0.0
    %3100 = vmatprep.subr.mxu0 0.0
    %3101 = vmatpush2.msra.mxu0 0.0
    %3102 = vmatprep.mubr.f32.mxu0 0.0
    %3103 = vmatmul.mubr.f32.gmra.mxu0 %v3036
    %v3104 = vpop.f32.mrf.mxu0
    %v3105 = vadd.f32 0.0, %v3104
    %v3106 = vpop.f32.mrf.mxu0
    %3107 = vdwg.mxu0
    %v3108 = vadd.f32 %v3026, %v3105
    %v3109 = vmul.f32 %v2864, %v2870
    %v3110 = vld [vmem:[%s4 + $0x60] sm:$0xff]
    %v3111 = vld [vmem:[%s4 + $0x68] sm:$0xff]
    %v3112 = vld [vmem:[%s4 + $0x70] sm:$0xff]
    %v3113 = vld [vmem:[%s4 + $0x78] sm:$0xff]
    %v3115 = vrot.slane %v3109, 6
    %3116 = vrot.lane.b32.xlu0 %v3115, 32
    %v3117 = vpop.permute.xlu0 %3116
    %v3118 = vsel %vm2248, %v3117, 0
    %3120 = vmatprep.subr.mxu0 0.0
    %3121 = vmatpush1.msra.mxu0 0.0
    %3122 = vmatprep.subr.mxu0 0.0
    %3123 = vmatpush1.msra.mxu0 0.0
    %3124 = vmatprep.subr.mxu0 0.0
    %3125 = vmatpush1.msra.mxu0 0.0
    %3126 = vmatprep.subr.mxu0 0.0
    %3127 = vmatpush1.msra.mxu0 0.0
    %3128 = vmatprep.subr.mxu0 0.0
    %3129 = vmatpush1.msra.mxu0 0.0
    %3130 = vmatprep.subr.mxu0 0.0
    %3131 = vmatpush1.msra.mxu0 0.0
    %3132 = vmatprep.subr.mxu0 0.0
    %3133 = vmatpush1.msra.mxu0 0.0
    %3134 = vmatprep.subr.mxu0 0.0
    %3135 = vmatpush1.msra.mxu0 0.0
    %3136 = vmatprep.subr.mxu0 0.0
    %3137 = vmatpush1.msra.mxu0 0.0
    %3138 = vmatprep.subr.mxu0 0.0
    %3139 = vmatpush1.msra.mxu0 0.0
    %3140 = vmatprep.subr.mxu0 0.0
    %3141 = vmatpush1.msra.mxu0 0.0
    %3142 = vmatprep.subr.mxu0 0.0
    %3143 = vmatpush1.msra.mxu0 0.0
    %3144 = vmatprep.subr.mxu0 0.0
    %3145 = vmatpush1.msra.mxu0 %v3113
    %3146 = vmatprep.subr.mxu0 0.0
    %3147 = vmatpush1.msra.mxu0 %v3112
    %3148 = vmatprep.subr.mxu0 0.0
    %3149 = vmatpush1.msra.mxu0 %v3111
    %3150 = vmatprep.subr.mxu0 0.0
    %3151 = vmatpush1.msra.mxu0 %v3110
    %3152 = vmatprep.subr.mxu0 0.0
    %3153 = vmatpush2.msra.mxu0 0.0
    %3154 = vmatprep.subr.mxu0 0.0
    %3155 = vmatpush2.msra.mxu0 0.0
    %3156 = vmatprep.subr.mxu0 0.0
    %3157 = vmatpush2.msra.mxu0 0.0
    %3158 = vmatprep.subr.mxu0 0.0
    %3159 = vmatpush2.msra.mxu0 0.0
    %3160 = vmatprep.subr.mxu0 0.0
    %3161 = vmatpush2.msra.mxu0 0.0
    %3162 = vmatprep.subr.mxu0 0.0
    %3163 = vmatpush2.msra.mxu0 0.0
    %3164 = vmatprep.subr.mxu0 0.0
    %3165 = vmatpush2.msra.mxu0 0.0
    %3166 = vmatprep.subr.mxu0 0.0
    %3167 = vmatpush2.msra.mxu0 0.0
    %3168 = vmatprep.subr.mxu0 0.0
    %3169 = vmatpush2.msra.mxu0 0.0
    %3170 = vmatprep.subr.mxu0 0.0
    %3171 = vmatpush2.msra.mxu0 0.0
    %3172 = vmatprep.subr.mxu0 0.0
    %3173 = vmatpush2.msra.mxu0 0.0
    %3174 = vmatprep.subr.mxu0 0.0
    %3175 = vmatpush2.msra.mxu0 0.0
    %3176 = vmatprep.subr.mxu0 0.0
    %3177 = vmatpush2.msra.mxu0 0.0
    %3178 = vmatprep.subr.mxu0 0.0
    %3179 = vmatpush2.msra.mxu0 0.0
    %3180 = vmatprep.subr.mxu0 0.0
    %3181 = vmatpush2.msra.mxu0 0.0
    %3182 = vmatprep.subr.mxu0 0.0
    %3183 = vmatpush2.msra.mxu0 0.0
    %3184 = vmatprep.mubr.f32.mxu0 0.0
    %3185 = vmatmul.mubr.f32.gmra.mxu0 %v3118
    %v3186 = vpop.f32.mrf.mxu0
    %v3187 = vadd.f32 0.0, %v3186
    %v3188 = vpop.f32.mrf.mxu0
    %3189 = vdwg.mxu0
    %v3190 = vadd.f32 %v3108, %v3187
    %v3191 = vadd.f32 %v2864, %v2870
    %v3192 = vmul.f32 %v3191, 0.5
    %v3193 = vld [vmem:[%s4 + $0x80] sm:$0xff]
    %v3194 = vld [vmem:[%s4 + $0x88] sm:$0xff]
    %v3195 = vld [vmem:[%s4 + $0x90] sm:$0xff]
    %v3196 = vld [vmem:[%s4 + $0x98] sm:$0xff]
    %v3198 = vrot.slane %v3192, 6
    %3199 = vrot.lane.b32.xlu0 %v3198, 32
    %v3200 = vpop.permute.xlu0 %3199
    %v3201 = vsel %vm2248, %v3200, 0
    %3203 = vmatprep.subr.mxu0 0.0
    %3204 = vmatpush1.msra.mxu0 0.0
    %3205 = vmatprep.subr.mxu0 0.0
    %3206 = vmatpush1.msra.mxu0 0.0
    %3207 = vmatprep.subr.mxu0 0.0
    %3208 = vmatpush1.msra.mxu0 0.0
    %3209 = vmatprep.subr.mxu0 0.0
    %3210 = vmatpush1.msra.mxu0 0.0
    %3211 = vmatprep.subr.mxu0 0.0
    %3212 = vmatpush1.msra.mxu0 0.0
    %3213 = vmatprep.subr.mxu0 0.0
    %3214 = vmatpush1.msra.mxu0 0.0
    %3215 = vmatprep.subr.mxu0 0.0
    %3216 = vmatpush1.msra.mxu0 0.0
    %3217 = vmatprep.subr.mxu0 0.0
    %3218 = vmatpush1.msra.mxu0 0.0
    %3219 = vmatprep.subr.mxu0 0.0
    %3220 = vmatpush1.msra.mxu0 0.0
    %3221 = vmatprep.subr.mxu0 0.0
    %3222 = vmatpush1.msra.mxu0 0.0
    %3223 = vmatprep.subr.mxu0 0.0
    %3224 = vmatpush1.msra.mxu0 0.0
    %3225 = vmatprep.subr.mxu0 0.0
    %3226 = vmatpush1.msra.mxu0 0.0
    %3227 = vmatprep.subr.mxu0 0.0
    %3228 = vmatpush1.msra.mxu0 %v3196
    %3229 = vmatprep.subr.mxu0 0.0
    %3230 = vmatpush1.msra.mxu0 %v3195
    %3231 = vmatprep.subr.mxu0 0.0
    %3232 = vmatpush1.msra.mxu0 %v3194
    %3233 = vmatprep.subr.mxu0 0.0
    %3234 = vmatpush1.msra.mxu0 %v3193
    %3235 = vmatprep.subr.mxu0 0.0
    %3236 = vmatpush2.msra.mxu0 0.0
    %3237 = vmatprep.subr.mxu0 0.0
    %3238 = vmatpush2.msra.mxu0 0.0
    %3239 = vmatprep.subr.mxu0 0.0
    %3240 = vmatpush2.msra.mxu0 0.0
    %3241 = vmatprep.subr.mxu0 0.0
    %3242 = vmatpush2.msra.mxu0 0.0
    %3243 = vmatprep.subr.mxu0 0.0
    %3244 = vmatpush2.msra.mxu0 0.0
    %3245 = vmatprep.subr.mxu0 0.0
    %3246 = vmatpush2.msra.mxu0 0.0
    %3247 = vmatprep.subr.mxu0 0.0
    %3248 = vmatpush2.msra.mxu0 0.0
    %3249 = vmatprep.subr.mxu0 0.0
    %3250 = vmatpush2.msra.mxu0 0.0
    %3251 = vmatprep.subr.mxu0 0.0
    %3252 = vmatpush2.msra.mxu0 0.0
    %3253 = vmatprep.subr.mxu0 0.0
    %3254 = vmatpush2.msra.mxu0 0.0
    %3255 = vmatprep.subr.mxu0 0.0
    %3256 = vmatpush2.msra.mxu0 0.0
    %3257 = vmatprep.subr.mxu0 0.0
    %3258 = vmatpush2.msra.mxu0 0.0
    %3259 = vmatprep.subr.mxu0 0.0
    %3260 = vmatpush2.msra.mxu0 0.0
    %3261 = vmatprep.subr.mxu0 0.0
    %3262 = vmatpush2.msra.mxu0 0.0
    %3263 = vmatprep.subr.mxu0 0.0
    %3264 = vmatpush2.msra.mxu0 0.0
    %3265 = vmatprep.subr.mxu0 0.0
    %3266 = vmatpush2.msra.mxu0 0.0
    %3267 = vmatprep.mubr.f32.mxu0 0.0
    %3268 = vmatmul.mubr.f32.gmra.mxu0 %v3201
    %v3269 = vpop.f32.mrf.mxu0
    %v3270 = vadd.f32 0.0, %v3269
    %v3271 = vpop.f32.mrf.mxu0
    %3272 = vdwg.mxu0
    %v3273 = vadd.f32 %v3190, %v3270
    %v3274 = vld [vmem:[%s5] sm:$0x1]
    %v3275 = vadd.f32 %v3273, %v3274
    %vm3276 = vcmask 24576
    %v3277 = vsel %vm3276, %v3275, -inf
    %3278 = vmax.xlane.f32.xlu0 %v3277
    %v3279 = vpop.xlane.xlu0 %3278
    %v3280 = vsub.f32 %v3275, %v3279
    %v3281 = vmul.f32 %v3280, 1.442695
    %v3282 = vpow.pop %v3281
    %v3283 = vsel %vm3276, %v3282, 0.0
    %3284 = vadd.xlane.f32.xlu0 %v3283
    %v3285 = vpop.xlane.xlu0 %3284
    %v3286 = vlog2.pop %v3285
    %v3287 = vmul.f32 %v3286, 0.6931472
    %v3288 = vsub.f32 %v3280, %v3287
    %3289 = vst.msk [vmem:[#allocation7] sm:$0x1] %vm3276, %v3288
    // Predicated region
    $region34: #{tpu_custom_call.1} parent=1 // pred_check
      _
    $region35: #{tpu_custom_call.1} parent=1 // pred_check_branch
      %3291 = sbr.rel (0) target = $region37
    $region36: #{tpu_custom_call.1} parent=1 // pred_region
      %s3293 = ssub.s32 16, 16
      %3294 = vsyncadd [#allocation4], %s3293
      %s3296 = sshll.u32 [#allocation7], 4
      %s3297 = int_to_ptr.vmem [resolvable:$true] %s3296
      %3299 = dma.vmem_to_hbm [thread:$0]  %s3297, 16, %s6, [#allocation4]
    $region37: #{tpu_custom_call.1} parent=1 // pred_fallthru
      _
    // Predicated region
    $region38: #{tpu_custom_call.1} parent=1 // pred_check
      _
    $region39: #{tpu_custom_call.1} parent=1 // pred_check_branch
      %3301 = sbr.rel (0) target = $region41
    $region40: #{tpu_custom_call.1} parent=1 // pred_region
      %3302 = dma.done [#allocation4], 16
    $region41: #{tpu_custom_call.1} parent=1 // pred_fallthru
      _
    %3303 = vsyncpa [#allocation3], 1
    %3304 = vsyncpa [#allocation6], 1
    %3305 = vsyncpa [#allocation4], 1

</llo_original>
